<compile_context>
chip_gen: v7x
topology: tpu7x:2x2x1
jax: 0.10.0
libtpu: 0.0.40
codegen_flags: <defaults>
</compile_context>

<pallas_src>
import functools
import math

import jax
import jax.numpy as jnp
from jax.experimental import pallas as pl
from jax.experimental.pallas import tpu as pltpu


NEG_INF = -1e9


# ----------------------------- in-kernel helpers -----------------------------

def _layernorm(x, g, b, eps=1e-5):
    mu = jnp.mean(x, axis=-1, keepdims=True)
    var = jnp.mean((x - mu) ** 2, axis=-1, keepdims=True)
    return (x - mu) * jax.lax.rsqrt(var + eps) * g + b


def _mha_heads(q, k, v, bias, num_heads):
    """All-heads scaled-dot-product attention on 2-D tiles.

    q: (T, D), k/v: (S, D), bias broadcastable to (T, S). Returns (T, D).
    Heads are a short static unroll on static lane slices (no 3-D
    reshape/transpose, no K transpose).
    """
    T, D = q.shape
    Dh = D // num_heads
    scale = 1.0 / math.sqrt(Dh)
    outs = []
    for h in range(num_heads):                       # static unroll, H small
        qh = q[:, h * Dh:(h + 1) * Dh]
        kh = k[:, h * Dh:(h + 1) * Dh]
        vh = v[:, h * Dh:(h + 1) * Dh]
        # contract last axes of both operands -> no explicit K transpose
        s = jax.lax.dot_general(qh, kh, (((1,), (1,)), ((), ())),
                                preferred_element_type=jnp.float32) * scale
        s = s + bias
        m = jnp.max(s, axis=-1, keepdims=True)
        p = jnp.exp(s - m)
        p = p / jnp.sum(p, axis=-1, keepdims=True)
        outs.append(jnp.dot(p, vh, preferred_element_type=jnp.float32))
    return jnp.concatenate(outs, axis=-1)            # (T, D)


# --------------------------- fused decoder layer ------------------------------

def _decoder_layer_kernel(x_ref, enc_ref, dpad_ref, epad_ref, causal_ref,
                          sa_wqkv_ref, sa_bqkv_ref, sa_wo_ref, sa_bo_ref,
                          ca_wq_ref, ca_bq_ref, ca_wkv_ref, ca_bkv_ref,
                          ca_wo_ref, ca_bo_ref, ln_ref,
                          ff_w1_ref, ff_b1_ref, ff_w2_ref, ff_b2_ref,
                          o_ref, *, num_heads, embed_dim):
    D = embed_dim
    x = x_ref[0]                                     # (T, D)
    enc = enc_ref[0]                                 # (S, D)

    # additive biases built in-kernel from float masks (1.0 == masked)
    self_bias = (causal_ref[...] + dpad_ref[0]) * NEG_INF    # (T, T)
    cross_bias = epad_ref[0] * NEG_INF                       # (1, S) -> bcast

    # --- self attention: fused QKV proj + attention + out proj + add + LN1 ---
    qkv = jnp.dot(x, sa_wqkv_ref[...], preferred_element_type=jnp.float32)
    qkv = qkv + sa_bqkv_ref[...]                     # (T, 3D)
    q, k, v = qkv[:, :D], qkv[:, D:2 * D], qkv[:, 2 * D:]
    sa = _mha_heads(q, k, v, self_bias, num_heads)
    sa = jnp.dot(sa, sa_wo_ref[...],
                 preferred_element_type=jnp.float32) + sa_bo_ref[...]
    x = _layernorm(x + sa, ln_ref[0:1, :], ln_ref[1:2, :])

    # --- cross attention: fused KV proj + attention + out proj + add + LN2 ---
    qc = jnp.dot(x, ca_wq_ref[...],
                 preferred_element_type=jnp.float32) + ca_bq_ref[...]
    kv = jnp.dot(enc, ca_wkv_ref[...],
                 preferred_element_type=jnp.float32) + ca_bkv_ref[...]
    kc, vc = kv[:, :D], kv[:, D:]
    ca = _mha_heads(qc, kc, vc, cross_bias, num_heads)
    ca = jnp.dot(ca, ca_wo_ref[...],
                 preferred_element_type=jnp.float32) + ca_bo_ref[...]
    x = _layernorm(x + ca, ln_ref[2:3, :], ln_ref[3:4, :])

    # --- FFN (lin -> ReLU -> lin) + add + LN3, hidden never leaves VMEM ---
    h = jnp.maximum(
        jnp.dot(x, ff_w1_ref[...],
                preferred_element_type=jnp.float32) + ff_b1_ref[...], 0.0)
    ff = jnp.dot(h, ff_w2_ref[...],
                 preferred_element_type=jnp.float32) + ff_b2_ref[...]
    x = _layernorm(x + ff, ln_ref[4:5, :], ln_ref[5:6, :])

    o_ref[0] = x


def _decoder_layer(x, enc, dpad_f, epad_f, causal_f, lp, num_heads):
    B, T, D = x.shape
    S = enc.shape[1]
    sa = lp["self_attn"]
    ca = lp["cross_attn"]

    # fuse Q/K/V (self) and K/V (cross) projection weights
    sa_wqkv = jnp.concatenate([sa["wq"], sa["wk"], sa["wv"]], axis=1)
    sa_bqkv = jnp.concatenate([sa["bq"], sa["bk"], sa["bv"]]).reshape(1, 3 * D)
    ca_wkv = jnp.concatenate([ca["wk"], ca["wv"]], axis=1)
    ca_bkv = jnp.concatenate([ca["bk"], ca["bv"]]).reshape(1, 2 * D)
    ln = jnp.stack([lp["ln1_g"], lp["ln1_b"], lp["ln2_g"], lp["ln2_b"],
                    lp["ln3_g"], lp["ln3_b"]])                       # (6, D)
    Dff = lp["ff_w1"].shape[1]

    def full(shape):
        nd = len(shape)
        return pl.BlockSpec(shape, lambda b, _nd=nd: (0,) * _nd)

    kernel = functools.partial(_decoder_layer_kernel,
                               num_heads=num_heads, embed_dim=D)

    return pl.pallas_call(
        kernel,
        grid=(B,),
        in_specs=[
            pl.BlockSpec((1, T, D), lambda b: (b, 0, 0)),   # x
            pl.BlockSpec((1, S, D), lambda b: (b, 0, 0)),   # enc
            pl.BlockSpec((1, 1, T), lambda b: (b, 0, 0)),   # dec pad mask
            pl.BlockSpec((1, 1, S), lambda b: (b, 0, 0)),   # enc pad mask
            full((T, T)),                                   # causal mask
            full((D, 3 * D)), full((1, 3 * D)),             # self-attn QKV
            full((D, D)), full((1, D)),                     # self-attn out
            full((D, D)), full((1, D)),                     # cross-attn Q
            full((D, 2 * D)), full((1, 2 * D)),             # cross-attn KV
            full((D, D)), full((1, D)),                     # cross-attn out
            full((6, D)),                                   # LayerNorm params
            full((D, Dff)), full((1, Dff)),                 # FFN 1
            full((Dff, D)), full((1, D)),                   # FFN 2
        ],
        out_specs=pl.BlockSpec((1, T, D), lambda b: (b, 0, 0)),
        out_shape=jax.ShapeDtypeStruct((B, T, D), jnp.float32),
        compiler_params=pltpu.CompilerParams(
            dimension_semantics=("parallel",)),
    )(x, enc, dpad_f, epad_f, causal_f,
      sa_wqkv, sa_bqkv, sa["wo"], sa["bo"].reshape(1, D),
      ca["wq"], ca["bq"].reshape(1, D), ca_wkv, ca_bkv,
      ca["wo"], ca["bo"].reshape(1, D), ln,
      lp["ff_w1"], lp["ff_b1"].reshape(1, Dff),
      lp["ff_w2"], lp["ff_b2"].reshape(1, D))


# ------------------------------ fused output heads ----------------------------

def _head_kernel(x_ref, w1_ref, b1_ref, w2_ref, b2_ref, pmw_ref, pmb_ref,
                 logits_ref, prog_ref):
    x = x_ref[...]
    h = jnp.maximum(
        jnp.dot(x, w1_ref[...], preferred_element_type=jnp.float32)
        + b1_ref[...], 0.0)
    logits_ref[...] = (jnp.dot(h, w2_ref[...],
                               preferred_element_type=jnp.float32)
                       + b2_ref[...])
    prog_ref[...] = jnp.tanh(
        jnp.dot(x, pmw_ref[...], preferred_element_type=jnp.float32)
        + pmb_ref[...])


def _head_kernel_noprog(x_ref, w1_ref, b1_ref, w2_ref, b2_ref, logits_ref):
    x = x_ref[...]
    h = jnp.maximum(
        jnp.dot(x, w1_ref[...], preferred_element_type=jnp.float32)
        + b1_ref[...], 0.0)
    logits_ref[...] = (jnp.dot(h, w2_ref[...],
                               preferred_element_type=jnp.float32)
                       + b2_ref[...])


# --------------------------------- forward ------------------------------------

def _sinusoidal_pe(T, D):
    pos = jnp.arange(T, dtype=jnp.float32)[:, None]
    div = jnp.exp(jnp.arange(0, D, 2, dtype=jnp.float32)
                  * (-math.log(10000.0) / D))
    pe = jnp.zeros((T, D), dtype=jnp.float32)
    pe = pe.at[:, 0::2].set(jnp.sin(pos * div))
    pe = pe.at[:, 1::2].set(jnp.cos(pos * div))
    return pe


def trajectory_decoder_forward(params, dec_input, dec_pad_mask, enc_out,
                               enc_pad_mask, causal_mask, num_heads=4,
                               use_progress_monitor=True):
    B, T, D = dec_input.shape
    S = enc_out.shape[1]

    # PositionalEncoding (dropout = identity in eval)
    x = dec_input + _sinusoidal_pe(T, D)[None]

    # boolean masks -> f32 (1.0 == masked); additive bias built inside kernel,
    # no (B,T,S)/(B*H,T,S) f32 bias arrays are materialized in HBM.
    dpad_f = dec_pad_mask.astype(jnp.float32).reshape(B, 1, T)
    epad_f = enc_pad_mask.astype(jnp.float32).reshape(B, 1, S)
    causal_f = causal_mask.astype(jnp.float32)

    for lp in params["layers"]:
        x = _decoder_layer(x, enc_out, dpad_f, epad_f, causal_f, lp, num_heads)
    # Attention weights (self.avg_weights in torch) are never returned by
    # forward(); they are intentionally not computed here.

    flat = x.reshape(B * T, D)
    A = params["ap_w2"].shape[1]

    if use_progress_monitor:
        logits, progress = pl.pallas_call(
            _head_kernel,
            out_shape=(jax.ShapeDtypeStruct((B * T, A), jnp.float32),
                       jax.ShapeDtypeStruct((B * T, 1), jnp.float32)),
        )(flat, params["ap_w1"], params["ap_b1"].reshape(1, -1),
          params["ap_w2"], params["ap_b2"].reshape(1, -1),
          params["pm_w"], params["pm_b"].reshape(1, 1))
        return logits.reshape(B, T, A), progress.reshape(B, T, 1)

    logits = pl.pallas_call(
        _head_kernel_noprog,
        out_shape=jax.ShapeDtypeStruct((B * T, A), jnp.float32),
    )(flat, params["ap_w1"], params["ap_b1"].reshape(1, -1),
      params["ap_w2"], params["ap_b2"].reshape(1, -1))
    return logits.reshape(B, T, A), None


# ----------------------------- parameter init ---------------------------------

def init_params(key, D, H, L, A, ff_mult=4):
    keys = iter(jax.random.split(key, 16 * (L + 1) + 8))

    def lin(k_in, k_out):
        w = jax.random.normal(next(keys), (k_in, k_out), jnp.float32) * 0.02
        b = jnp.zeros((k_out,), jnp.float32)
        return w, b

    def attn_block():
        wq, bq = lin(D, D)
        wk, bk = lin(D, D)
        wv, bv = lin(D, D)
        wo, bo = lin(D, D)
        return dict(wq=wq, bq=bq, wk=wk, bk=bk, wv=wv, bv=bv, wo=wo, bo=bo)

    layers = []
    for _ in range(L):
        ff_w1, ff_b1 = lin(D, ff_mult * D)
        ff_w2, ff_b2 = lin(ff_mult * D, D)
        layers.append(dict(
            self_attn=attn_block(), cross_attn=attn_block(),
            ln1_g=jnp.ones((D,), jnp.float32), ln1_b=jnp.zeros((D,), jnp.float32),
            ln2_g=jnp.ones((D,), jnp.float32), ln2_b=jnp.zeros((D,), jnp.float32),
            ln3_g=jnp.ones((D,), jnp.float32), ln3_b=jnp.zeros((D,), jnp.float32),
            ff_w1=ff_w1, ff_b1=ff_b1, ff_w2=ff_w2, ff_b2=ff_b2,
        ))

    ap_w1, ap_b1 = lin(D, D)
    ap_w2, ap_b2 = lin(D, A)
    pm_w, pm_b = lin(D, 1)
    return dict(layers=layers,
                ap_w1=ap_w1, ap_b1=ap_b1, ap_w2=ap_w2, ap_b2=ap_b2,
                pm_w=pm_w, pm_b=pm_b)


# ----------------------------------- main --------------------------------------

if __name__ == "__main__":
    B, T, S, D, H, L, A = 2, 8, 8, 32, 4, 2, 6

    key = jax.random.PRNGKey(0)
    k_params, k_dec, k_enc = jax.random.split(key, 3)
    params = init_params(k_params, D, H, L, A)

    dec_input = jax.random.normal(k_dec, (B, T, D), jnp.float32)
    enc_out = jax.random.normal(k_enc, (B, S, D), jnp.float32)
    dec_pad_mask = jnp.zeros((B, T), jnp.bool_).at[1, T - 2:].set(True)
    enc_pad_mask = jnp.zeros((B, S), jnp.bool_).at[1, S - 3:].set(True)
    causal_mask = jnp.triu(jnp.ones((T, T), jnp.float32), k=1).astype(jnp.bool_)

    fwd = jax.jit(trajectory_decoder_forward,
                  static_argnames=("num_heads", "use_progress_monitor"))
    logits, progress = fwd(params, dec_input, dec_pad_mask, enc_out,
                           enc_pad_mask, causal_mask,
                           num_heads=H, use_progress_monitor=True)
    jax.block_until_ready((logits, progress))

    assert logits.shape == (B, T, A)
    assert progress.shape == (B, T, 1)
    assert bool(jnp.all(jnp.isfinite(logits))) and bool(jnp.all(jnp.isfinite(progress)))
    print("KERNEL_OK")
</pallas_src>

<mosaic_0001>
module attributes {stable_mosaic.version = 11 : i64} {
  func.func @_head_kernel(%arg0: memref<16x32xf32, #tpu.memory_space<vmem>>, %arg1: memref<32x32xf32, #tpu.memory_space<vmem>>, %arg2: memref<1x32xf32, #tpu.memory_space<vmem>>, %arg3: memref<32x6xf32, #tpu.memory_space<vmem>>, %arg4: memref<1x6xf32, #tpu.memory_space<vmem>>, %arg5: memref<32x1xf32, #tpu.memory_space<vmem>>, %arg6: memref<1x1xf32, #tpu.memory_space<vmem>>, %arg7: memref<16x6xf32, #tpu.memory_space<vmem>>, %arg8: memref<16x1xf32, #tpu.memory_space<vmem>>) attributes {dimension_semantics = [], scalar_prefetch = 0 : i64, scratch_operands = 0 : i64, tpu.core_type = #tpu.core_type<tc>} {
    %c0 = arith.constant 0 : index
    %c0_0 = arith.constant 0 : index
    %0 = vector.load %arg0[%c0, %c0_0] : memref<16x32xf32, #tpu.memory_space<vmem>>, vector<16x32xf32>
    %c0_1 = arith.constant 0 : index
    %c0_2 = arith.constant 0 : index
    %1 = vector.load %arg1[%c0_1, %c0_2] : memref<32x32xf32, #tpu.memory_space<vmem>>, vector<32x32xf32>
    %cst = arith.constant dense<0.000000e+00> : vector<16x32xf32>
    %2 = tpu.matmul %0, %1, %cst {dimension_numbers = #tpu.dot_dimension_numbers<[1], [0], [0], [1], [0, 0, 1, 1], [], []>} : vector<16x32xf32>, vector<32x32xf32>, vector<16x32xf32> -> vector<16x32xf32>
    %c0_3 = arith.constant 0 : index
    %c0_4 = arith.constant 0 : index
    %3 = vector.load %arg2[%c0_3, %c0_4] : memref<1x32xf32, #tpu.memory_space<vmem>>, vector<1x32xf32>
    %4 = vector.broadcast %3 : vector<1x32xf32> to vector<16x32xf32>
    %5 = arith.addf %2, %4 : vector<16x32xf32>
    %cst_5 = arith.constant 0.000000e+00 : f32
    %6 = vector.broadcast %cst_5 : f32 to vector<16x32xf32>
    %7 = arith.maximumf %5, %6 : vector<16x32xf32>
    %c0_6 = arith.constant 0 : index
    %c0_7 = arith.constant 0 : index
    %8 = vector.load %arg3[%c0_6, %c0_7] : memref<32x6xf32, #tpu.memory_space<vmem>>, vector<32x6xf32>
    %cst_8 = arith.constant dense<0.000000e+00> : vector<16x6xf32>
    %9 = tpu.matmul %7, %8, %cst_8 {dimension_numbers = #tpu.dot_dimension_numbers<[1], [0], [0], [1], [0, 0, 1, 1], [], []>} : vector<16x32xf32>, vector<32x6xf32>, vector<16x6xf32> -> vector<16x6xf32>
    %c0_9 = arith.constant 0 : index
    %c0_10 = arith.constant 0 : index
    %10 = vector.load %arg4[%c0_9, %c0_10] : memref<1x6xf32, #tpu.memory_space<vmem>>, vector<1x6xf32>
    %11 = vector.broadcast %10 : vector<1x6xf32> to vector<16x6xf32>
    %12 = arith.addf %9, %11 : vector<16x6xf32>
    %c0_11 = arith.constant 0 : index
    %c0_12 = arith.constant 0 : index
    %13 = vector.load %arg7[%c0_11, %c0_12] : memref<16x6xf32, #tpu.memory_space<vmem>>, vector<16x6xf32>
    tpu.vector_store %arg7[%c0_11, %c0_12], %12 {strides = array<i32>} : memref<16x6xf32, #tpu.memory_space<vmem>>, vector<16x6xf32>,
    %c0_13 = arith.constant 0 : index
    %c0_14 = arith.constant 0 : index
    %14 = vector.load %arg5[%c0_13, %c0_14] : memref<32x1xf32, #tpu.memory_space<vmem>>, vector<32x1xf32>
    %cst_15 = arith.constant dense<0.000000e+00> : vector<16x1xf32>
    %15 = tpu.matmul %0, %14, %cst_15 {dimension_numbers = #tpu.dot_dimension_numbers<[1], [0], [0], [1], [0, 0, 1, 1], [], []>} : vector<16x32xf32>, vector<32x1xf32>, vector<16x1xf32> -> vector<16x1xf32>
    %c0_16 = arith.constant 0 : index
    %c0_17 = arith.constant 0 : index
    %16 = vector.load %arg6[%c0_16, %c0_17] : memref<1x1xf32, #tpu.memory_space<vmem>>, vector<1x1xf32>
    %17 = vector.broadcast %16 : vector<1x1xf32> to vector<16x1xf32>
    %18 = arith.addf %15, %17 : vector<16x1xf32>
    %19 = math.tanh %18 : vector<16x1xf32>
    %c0_18 = arith.constant 0 : index
    %c0_19 = arith.constant 0 : index
    %20 = vector.load %arg8[%c0_18, %c0_19] : memref<16x1xf32, #tpu.memory_space<vmem>>, vector<16x1xf32>
    tpu.vector_store %arg8[%c0_18, %c0_19], %19 {strides = array<i32>} : memref<16x1xf32, #tpu.memory_space<vmem>>, vector<16x1xf32>,
    return
  }
}

module attributes {stable_mosaic.version = 11 : i64} {
  func.func @_decoder_layer_kernel(%arg0: i32, %arg1: memref<1x8x32xf32, #tpu.memory_space<vmem>>, %arg2: memref<1x8x32xf32, #tpu.memory_space<vmem>>, %arg3: memref<1x1x8xf32, #tpu.memory_space<vmem>>, %arg4: memref<1x1x8xf32, #tpu.memory_space<vmem>>, %arg5: memref<8x8xf32, #tpu.memory_space<vmem>>, %arg6: memref<32x96xf32, #tpu.memory_space<vmem>>, %arg7: memref<1x96xf32, #tpu.memory_space<vmem>>, %arg8: memref<32x32xf32, #tpu.memory_space<vmem>>, %arg9: memref<1x32xf32, #tpu.memory_space<vmem>>, %arg10: memref<32x32xf32, #tpu.memory_space<vmem>>, %arg11: memref<1x32xf32, #tpu.memory_space<vmem>>, %arg12: memref<32x64xf32, #tpu.memory_space<vmem>>, %arg13: memref<1x64xf32, #tpu.memory_space<vmem>>, %arg14: memref<32x32xf32, #tpu.memory_space<vmem>>, %arg15: memref<1x32xf32, #tpu.memory_space<vmem>>, %arg16: memref<6x32xf32, #tpu.memory_space<vmem>>, %arg17: memref<32x128xf32, #tpu.memory_space<vmem>>, %arg18: memref<1x128xf32, #tpu.memory_space<vmem>>, %arg19: memref<128x32xf32, #tpu.memory_space<vmem>>, %arg20: memref<1x32xf32, #tpu.memory_space<vmem>>, %arg21: memref<1x8x32xf32, #tpu.memory_space<vmem>>) attributes {dimension_semantics = [#tpu.dimension_semantics<parallel>], iteration_bounds = array<i64: 2>, scalar_prefetch = 0 : i64, scratch_operands = 0 : i64, tpu.core_type = #tpu.core_type<tc>, window_params = [{transform_indices = @transform_0, window_bounds = array<i64: 1, 8, 32>}, {transform_indices = @transform_1, window_bounds = array<i64: 1, 8, 32>}, {transform_indices = @transform_2, window_bounds = array<i64: 1, 1, 8>}, {transform_indices = @transform_3, window_bounds = array<i64: 1, 1, 8>}, {pipeline_mode = #tpu.pipeline_mode<synchronous>, transform_indices = @transform_4, window_bounds = array<i64: 8, 8>}, {pipeline_mode = #tpu.pipeline_mode<synchronous>, transform_indices = @transform_5, window_bounds = array<i64: 32, 96>}, {pipeline_mode = #tpu.pipeline_mode<synchronous>, transform_indices = @transform_6, window_bounds = array<i64: 1, 96>}, {pipeline_mode = #tpu.pipeline_mode<synchronous>, transform_indices = @transform_7, window_bounds = array<i64: 32, 32>}, {pipeline_mode = #tpu.pipeline_mode<synchronous>, transform_indices = @transform_8, window_bounds = array<i64: 1, 32>}, {pipeline_mode = #tpu.pipeline_mode<synchronous>, transform_indices = @transform_9, window_bounds = array<i64: 32, 32>}, {pipeline_mode = #tpu.pipeline_mode<synchronous>, transform_indices = @transform_10, window_bounds = array<i64: 1, 32>}, {pipeline_mode = #tpu.pipeline_mode<synchronous>, transform_indices = @transform_11, window_bounds = array<i64: 32, 64>}, {pipeline_mode = #tpu.pipeline_mode<synchronous>, transform_indices = @transform_12, window_bounds = array<i64: 1, 64>}, {pipeline_mode = #tpu.pipeline_mode<synchronous>, transform_indices = @transform_13, window_bounds = array<i64: 32, 32>}, {pipeline_mode = #tpu.pipeline_mode<synchronous>, transform_indices = @transform_14, window_bounds = array<i64: 1, 32>}, {pipeline_mode = #tpu.pipeline_mode<synchronous>, transform_indices = @transform_15, window_bounds = array<i64: 6, 32>}, {pipeline_mode = #tpu.pipeline_mode<synchronous>, transform_indices = @transform_16, window_bounds = array<i64: 32, 128>}, {pipeline_mode = #tpu.pipeline_mode<synchronous>, transform_indices = @transform_17, window_bounds = array<i64: 1, 128>}, {pipeline_mode = #tpu.pipeline_mode<synchronous>, transform_indices = @transform_18, window_bounds = array<i64: 128, 32>}, {pipeline_mode = #tpu.pipeline_mode<synchronous>, transform_indices = @transform_19, window_bounds = array<i64: 1, 32>}, {transform_indices = @transform_20, window_bounds = array<i64: 1, 8, 32>}]} {
    %c0 = arith.constant 0 : index
    %c0_0 = arith.constant 0 : index
    %c0_1 = arith.constant 0 : index
    %0 = vector.load %arg1[%c0, %c0_0, %c0_1] : memref<1x8x32xf32, #tpu.memory_space<vmem>>, vector<1x8x32xf32>
    %1 = vector.shape_cast %0 : vector<1x8x32xf32> to vector<8x32xf32>
    %c0_2 = arith.constant 0 : index
    %c0_3 = arith.constant 0 : index
    %c0_4 = arith.constant 0 : index
    %2 = vector.load %arg2[%c0_2, %c0_3, %c0_4] : memref<1x8x32xf32, #tpu.memory_space<vmem>>, vector<1x8x32xf32>
    %3 = vector.shape_cast %2 : vector<1x8x32xf32> to vector<8x32xf32>
    %c0_5 = arith.constant 0 : index
    %c0_6 = arith.constant 0 : index
    %4 = vector.load %arg5[%c0_5, %c0_6] : memref<8x8xf32, #tpu.memory_space<vmem>>, vector<8x8xf32>
    %c0_7 = arith.constant 0 : index
    %c0_8 = arith.constant 0 : index
    %c0_9 = arith.constant 0 : index
    %5 = vector.load %arg3[%c0_7, %c0_8, %c0_9] : memref<1x1x8xf32, #tpu.memory_space<vmem>>, vector<1x1x8xf32>
    %6 = vector.shape_cast %5 : vector<1x1x8xf32> to vector<1x8xf32>
    %7 = vector.broadcast %6 : vector<1x8xf32> to vector<8x8xf32>
    %8 = arith.addf %4, %7 : vector<8x8xf32>
    %cst = arith.constant -1.000000e+09 : f32
    %9 = vector.broadcast %cst : f32 to vector<8x8xf32>
    %10 = arith.mulf %8, %9 : vector<8x8xf32>
    %c0_10 = arith.constant 0 : index
    %c0_11 = arith.constant 0 : index
    %c0_12 = arith.constant 0 : index
    %11 = vector.load %arg4[%c0_10, %c0_11, %c0_12] : memref<1x1x8xf32, #tpu.memory_space<vmem>>, vector<1x1x8xf32>
    %12 = vector.shape_cast %11 : vector<1x1x8xf32> to vector<1x8xf32>
    %cst_13 = arith.constant -1.000000e+09 : f32
    %13 = vector.broadcast %cst_13 : f32 to vector<1x8xf32>
    %14 = arith.mulf %12, %13 : vector<1x8xf32>
    %c0_14 = arith.constant 0 : index
    %c0_15 = arith.constant 0 : index
    %15 = vector.load %arg6[%c0_14, %c0_15] : memref<32x96xf32, #tpu.memory_space<vmem>>, vector<32x96xf32>
    %cst_16 = arith.constant dense<0.000000e+00> : vector<8x96xf32>
    %16 = tpu.matmul %1, %15, %cst_16 {dimension_numbers = #tpu.dot_dimension_numbers<[1], [0], [0], [1], [0, 0, 1, 1], [], []>} : vector<8x32xf32>, vector<32x96xf32>, vector<8x96xf32> -> vector<8x96xf32>
    %c0_17 = arith.constant 0 : index
    %c0_18 = arith.constant 0 : index
    %17 = vector.load %arg7[%c0_17, %c0_18] : memref<1x96xf32, #tpu.memory_space<vmem>>, vector<1x96xf32>
    %18 = vector.broadcast %17 : vector<1x96xf32> to vector<8x96xf32>
    %19 = arith.addf %16, %18 : vector<8x96xf32>
    %20 = vector.extract_strided_slice %19 {offsets = [0, 0], sizes = [8, 32], strides = [1, 1]} : vector<8x96xf32> to vector<8x32xf32>
    %21 = vector.extract_strided_slice %19 {offsets = [0, 32], sizes = [8, 32], strides = [1, 1]} : vector<8x96xf32> to vector<8x32xf32>
    %22 = vector.extract_strided_slice %19 {offsets = [0, 64], sizes = [8, 32], strides = [1, 1]} : vector<8x96xf32> to vector<8x32xf32>
    %23 = vector.extract_strided_slice %20 {offsets = [0, 0], sizes = [8, 8], strides = [1, 1]} : vector<8x32xf32> to vector<8x8xf32>
    %24 = vector.extract_strided_slice %21 {offsets = [0, 0], sizes = [8, 8], strides = [1, 1]} : vector<8x32xf32> to vector<8x8xf32>
    %25 = vector.extract_strided_slice %22 {offsets = [0, 0], sizes = [8, 8], strides = [1, 1]} : vector<8x32xf32> to vector<8x8xf32>
    %cst_19 = arith.constant dense<0.000000e+00> : vector<8x8xf32>
    %26 = tpu.matmul %23, %24, %cst_19 {dimension_numbers = #tpu.dot_dimension_numbers<[1], [1], [0], [0], [0, 0, 1, 0], [], []>} : vector<8x8xf32>, vector<8x8xf32>, vector<8x8xf32> -> vector<8x8xf32>
    %cst_20 = arith.constant 0.353553385 : f32
    %27 = vector.broadcast %cst_20 : f32 to vector<8x8xf32>
    %28 = arith.mulf %26, %27 : vector<8x8xf32>
    %29 = arith.addf %28, %10 : vector<8x8xf32>
    %cst_21 = arith.constant dense<0xFF800000> : vector<8xf32>
    %30 = vector.multi_reduction <maximumf>, %29, %cst_21 [1] : vector<8x8xf32> to vector<8xf32>
    %31 = vector.shape_cast %30 : vector<8xf32> to vector<8x1xf32>
    %32 = vector.broadcast %31 : vector<8x1xf32> to vector<8x8xf32>
    %33 = arith.subf %29, %32 : vector<8x8xf32>
    %34 = math.exp %33 : vector<8x8xf32>
    %cst_22 = arith.constant dense<0.000000e+00> : vector<8xf32>
    %35 = vector.multi_reduction <add>, %34, %cst_22 [1] : vector<8x8xf32> to vector<8xf32>
    %36 = vector.shape_cast %35 : vector<8xf32> to vector<8x1xf32>
    %37 = vector.broadcast %36 : vector<8x1xf32> to vector<8x8xf32>
    %38 = arith.divf %34, %37 : vector<8x8xf32>
    %cst_23 = arith.constant dense<0.000000e+00> : vector<8x8xf32>
    %39 = tpu.matmul %38, %25, %cst_23 {dimension_numbers = #tpu.dot_dimension_numbers<[1], [0], [0], [1], [0, 0, 1, 1], [], []>} : vector<8x8xf32>, vector<8x8xf32>, vector<8x8xf32> -> vector<8x8xf32>
    %40 = vector.extract_strided_slice %20 {offsets = [0, 8], sizes = [8, 8], strides = [1, 1]} : vector<8x32xf32> to vector<8x8xf32>
    %41 = vector.extract_strided_slice %21 {offsets = [0, 8], sizes = [8, 8], strides = [1, 1]} : vector<8x32xf32> to vector<8x8xf32>
    %42 = vector.extract_strided_slice %22 {offsets = [0, 8], sizes = [8, 8], strides = [1, 1]} : vector<8x32xf32> to vector<8x8xf32>
    %cst_24 = arith.constant dense<0.000000e+00> : vector<8x8xf32>
    %43 = tpu.matmul %40, %41, %cst_24 {dimension_numbers = #tpu.dot_dimension_numbers<[1], [1], [0], [0], [0, 0, 1, 0], [], []>} : vector<8x8xf32>, vector<8x8xf32>, vector<8x8xf32> -> vector<8x8xf32>
    %cst_25 = arith.constant 0.353553385 : f32
    %44 = vector.broadcast %cst_25 : f32 to vector<8x8xf32>
    %45 = arith.mulf %43, %44 : vector<8x8xf32>
    %46 = arith.addf %45, %10 : vector<8x8xf32>
    %cst_26 = arith.constant dense<0xFF800000> : vector<8xf32>
    %47 = vector.multi_reduction <maximumf>, %46, %cst_26 [1] : vector<8x8xf32> to vector<8xf32>
    %48 = vector.shape_cast %47 : vector<8xf32> to vector<8x1xf32>
    %49 = vector.broadcast %48 : vector<8x1xf32> to vector<8x8xf32>
    %50 = arith.subf %46, %49 : vector<8x8xf32>
    %51 = math.exp %50 : vector<8x8xf32>
    %cst_27 = arith.constant dense<0.000000e+00> : vector<8xf32>
    %52 = vector.multi_reduction <add>, %51, %cst_27 [1] : vector<8x8xf32> to vector<8xf32>
    %53 = vector.shape_cast %52 : vector<8xf32> to vector<8x1xf32>
    %54 = vector.broadcast %53 : vector<8x1xf32> to vector<8x8xf32>
    %55 = arith.divf %51, %54 : vector<8x8xf32>
    %cst_28 = arith.constant dense<0.000000e+00> : vector<8x8xf32>
    %56 = tpu.matmul %55, %42, %cst_28 {dimension_numbers = #tpu.dot_dimension_numbers<[1], [0], [0], [1], [0, 0, 1, 1], [], []>} : vector<8x8xf32>, vector<8x8xf32>, vector<8x8xf32> -> vector<8x8xf32>
    %57 = vector.extract_strided_slice %20 {offsets = [0, 16], sizes = [8, 8], strides = [1, 1]} : vector<8x32xf32> to vector<8x8xf32>
    %58 = vector.extract_strided_slice %21 {offsets = [0, 16], sizes = [8, 8], strides = [1, 1]} : vector<8x32xf32> to vector<8x8xf32>
    %59 = vector.extract_strided_slice %22 {offsets = [0, 16], sizes = [8, 8], strides = [1, 1]} : vector<8x32xf32> to vector<8x8xf32>
    %cst_29 = arith.constant dense<0.000000e+00> : vector<8x8xf32>
    %60 = tpu.matmul %57, %58, %cst_29 {dimension_numbers = #tpu.dot_dimension_numbers<[1], [1], [0], [0], [0, 0, 1, 0], [], []>} : vector<8x8xf32>, vector<8x8xf32>, vector<8x8xf32> -> vector<8x8xf32>
    %cst_30 = arith.constant 0.353553385 : f32
    %61 = vector.broadcast %cst_30 : f32 to vector<8x8xf32>
    %62 = arith.mulf %60, %61 : vector<8x8xf32>
    %63 = arith.addf %62, %10 : vector<8x8xf32>
    %cst_31 = arith.constant dense<0xFF800000> : vector<8xf32>
    %64 = vector.multi_reduction <maximumf>, %63, %cst_31 [1] : vector<8x8xf32> to vector<8xf32>
    %65 = vector.shape_cast %64 : vector<8xf32> to vector<8x1xf32>
    %66 = vector.broadcast %65 : vector<8x1xf32> to vector<8x8xf32>
    %67 = arith.subf %63, %66 : vector<8x8xf32>
    %68 = math.exp %67 : vector<8x8xf32>
    %cst_32 = arith.constant dense<0.000000e+00> : vector<8xf32>
    %69 = vector.multi_reduction <add>, %68, %cst_32 [1] : vector<8x8xf32> to vector<8xf32>
    %70 = vector.shape_cast %69 : vector<8xf32> to vector<8x1xf32>
    %71 = vector.broadcast %70 : vector<8x1xf32> to vector<8x8xf32>
    %72 = arith.divf %68, %71 : vector<8x8xf32>
    %cst_33 = arith.constant dense<0.000000e+00> : vector<8x8xf32>
    %73 = tpu.matmul %72, %59, %cst_33 {dimension_numbers = #tpu.dot_dimension_numbers<[1], [0], [0], [1], [0, 0, 1, 1], [], []>} : vector<8x8xf32>, vector<8x8xf32>, vector<8x8xf32> -> vector<8x8xf32>
    %74 = vector.extract_strided_slice %20 {offsets = [0, 24], sizes = [8, 8], strides = [1, 1]} : vector<8x32xf32> to vector<8x8xf32>
    %75 = vector.extract_strided_slice %21 {offsets = [0, 24], sizes = [8, 8], strides = [1, 1]} : vector<8x32xf32> to vector<8x8xf32>
    %76 = vector.extract_strided_slice %22 {offsets = [0, 24], sizes = [8, 8], strides = [1, 1]} : vector<8x32xf32> to vector<8x8xf32>
    %cst_34 = arith.constant dense<0.000000e+00> : vector<8x8xf32>
    %77 = tpu.matmul %74, %75, %cst_34 {dimension_numbers = #tpu.dot_dimension_numbers<[1], [1], [0], [0], [0, 0, 1, 0], [], []>} : vector<8x8xf32>, vector<8x8xf32>, vector<8x8xf32> -> vector<8x8xf32>
    %cst_35 = arith.constant 0.353553385 : f32
    %78 = vector.broadcast %cst_35 : f32 to vector<8x8xf32>
    %79 = arith.mulf %77, %78 : vector<8x8xf32>
    %80 = arith.addf %79, %10 : vector<8x8xf32>
    %cst_36 = arith.constant dense<0xFF800000> : vector<8xf32>
    %81 = vector.multi_reduction <maximumf>, %80, %cst_36 [1] : vector<8x8xf32> to vector<8xf32>
    %82 = vector.shape_cast %81 : vector<8xf32> to vector<8x1xf32>
    %83 = vector.broadcast %82 : vector<8x1xf32> to vector<8x8xf32>
    %84 = arith.subf %80, %83 : vector<8x8xf32>
    %85 = math.exp %84 : vector<8x8xf32>
    %cst_37 = arith.constant dense<0.000000e+00> : vector<8xf32>
    %86 = vector.multi_reduction <add>, %85, %cst_37 [1] : vector<8x8xf32> to vector<8xf32>
    %87 = vector.shape_cast %86 : vector<8xf32> to vector<8x1xf32>
    %88 = vector.broadcast %87 : vector<8x1xf32> to vector<8x8xf32>
    %89 = arith.divf %85, %88 : vector<8x8xf32>
    %cst_38 = arith.constant dense<0.000000e+00> : vector<8x8xf32>
    %90 = tpu.matmul %89, %76, %cst_38 {dimension_numbers = #tpu.dot_dimension_numbers<[1], [0], [0], [1], [0, 0, 1, 1], [], []>} : vector<8x8xf32>, vector<8x8xf32>, vector<8x8xf32> -> vector<8x8xf32>
    %91 = tpu.concatenate %39, %56, %73, %90 in 1 : vector<8x8xf32>, vector<8x8xf32>, vector<8x8xf32>, vector<8x8xf32> -> vector<8x32xf32>
    %c0_39 = arith.constant 0 : index
    %c0_40 = arith.constant 0 : index
    %92 = vector.load %arg8[%c0_39, %c0_40] : memref<32x32xf32, #tpu.memory_space<vmem>>, vector<32x32xf32>
    %cst_41 = arith.constant dense<0.000000e+00> : vector<8x32xf32>
    %93 = tpu.matmul %91, %92, %cst_41 {dimension_numbers = #tpu.dot_dimension_numbers<[1], [0], [0], [1], [0, 0, 1, 1], [], []>} : vector<8x32xf32>, vector<32x32xf32>, vector<8x32xf32> -> vector<8x32xf32>
    %c0_42 = arith.constant 0 : index
    %c0_43 = arith.constant 0 : index
    %94 = vector.load %arg9[%c0_42, %c0_43] : memref<1x32xf32, #tpu.memory_space<vmem>>, vector<1x32xf32>
    %95 = vector.broadcast %94 : vector<1x32xf32> to vector<8x32xf32>
    %96 = arith.addf %93, %95 : vector<8x32xf32>
    %97 = arith.addf %1, %96 : vector<8x32xf32>
    %c0_44 = arith.constant 0 : index
    %c0_45 = arith.constant 0 : index
    %98 = vector.load %arg16[%c0_44, %c0_45] : memref<6x32xf32, #tpu.memory_space<vmem>>, vector<1x32xf32>
    %c1 = arith.constant 1 : index
    %c0_46 = arith.constant 0 : index
    %99 = vector.load %arg16[%c1, %c0_46] : memref<6x32xf32, #tpu.memory_space<vmem>>, vector<1x32xf32>
    %cst_47 = arith.constant dense<0.000000e+00> : vector<8xf32>
    %100 = vector.multi_reduction <add>, %97, %cst_47 [1] : vector<8x32xf32> to vector<8xf32>
    %101 = vector.shape_cast %100 : vector<8xf32> to vector<8x1xf32>
    %cst_48 = arith.constant 3.200000e+01 : f32
    %102 = vector.broadcast %cst_48 : f32 to vector<8x1xf32>
    %103 = arith.divf %101, %102 : vector<8x1xf32>
    %104 = vector.broadcast %103 : vector<8x1xf32> to vector<8x32xf32>
    %105 = arith.subf %97, %104 : vector<8x32xf32>
    %106 = arith.mulf %105, %105 : vector<8x32xf32>
    %cst_49 = arith.constant dense<0.000000e+00> : vector<8xf32>
    %107 = vector.multi_reduction <add>, %106, %cst_49 [1] : vector<8x32xf32> to vector<8xf32>
    %108 = vector.shape_cast %107 : vector<8xf32> to vector<8x1xf32>
    %cst_50 = arith.constant 3.200000e+01 : f32
    %109 = vector.broadcast %cst_50 : f32 to vector<8x1xf32>
    %110 = arith.divf %108, %109 : vector<8x1xf32>
    %111 = vector.broadcast %103 : vector<8x1xf32> to vector<8x32xf32>
    %112 = arith.subf %97, %111 : vector<8x32xf32>
    %cst_51 = arith.constant 9.99999974E-6 : f32
    %113 = vector.broadcast %cst_51 : f32 to vector<8x1xf32>
    %114 = arith.addf %110, %113 : vector<8x1xf32>
    %115 = math.rsqrt %114 : vector<8x1xf32>
    %116 = vector.broadcast %115 : vector<8x1xf32> to vector<8x32xf32>
    %117 = arith.mulf %112, %116 : vector<8x32xf32>
    %118 = vector.broadcast %98 : vector<1x32xf32> to vector<8x32xf32>
    %119 = arith.mulf %117, %118 : vector<8x32xf32>
    %120 = vector.broadcast %99 : vector<1x32xf32> to vector<8x32xf32>
    %121 = arith.addf %119, %120 : vector<8x32xf32>
    %c0_52 = arith.constant 0 : index
    %c0_53 = arith.constant 0 : index
    %122 = vector.load %arg10[%c0_52, %c0_53] : memref<32x32xf32, #tpu.memory_space<vmem>>, vector<32x32xf32>
    %cst_54 = arith.constant dense<0.000000e+00> : vector<8x32xf32>
    %123 = tpu.matmul %121, %122, %cst_54 {dimension_numbers = #tpu.dot_dimension_numbers<[1], [0], [0], [1], [0, 0, 1, 1], [], []>} : vector<8x32xf32>, vector<32x32xf32>, vector<8x32xf32> -> vector<8x32xf32>
    %c0_55 = arith.constant 0 : index
    %c0_56 = arith.constant 0 : index
    %124 = vector.load %arg11[%c0_55, %c0_56] : memref<1x32xf32, #tpu.memory_space<vmem>>, vector<1x32xf32>
    %125 = vector.broadcast %124 : vector<1x32xf32> to vector<8x32xf32>
    %126 = arith.addf %123, %125 : vector<8x32xf32>
    %c0_57 = arith.constant 0 : index
    %c0_58 = arith.constant 0 : index
    %127 = vector.load %arg12[%c0_57, %c0_58] : memref<32x64xf32, #tpu.memory_space<vmem>>, vector<32x64xf32>
    %cst_59 = arith.constant dense<0.000000e+00> : vector<8x64xf32>
    %128 = tpu.matmul %3, %127, %cst_59 {dimension_numbers = #tpu.dot_dimension_numbers<[1], [0], [0], [1], [0, 0, 1, 1], [], []>} : vector<8x32xf32>, vector<32x64xf32>, vector<8x64xf32> -> vector<8x64xf32>
    %c0_60 = arith.constant 0 : index
    %c0_61 = arith.constant 0 : index
    %129 = vector.load %arg13[%c0_60, %c0_61] : memref<1x64xf32, #tpu.memory_space<vmem>>, vector<1x64xf32>
    %130 = vector.broadcast %129 : vector<1x64xf32> to vector<8x64xf32>
    %131 = arith.addf %128, %130 : vector<8x64xf32>
    %132 = vector.extract_strided_slice %131 {offsets = [0, 0], sizes = [8, 32], strides = [1, 1]} : vector<8x64xf32> to vector<8x32xf32>
    %133 = vector.extract_strided_slice %131 {offsets = [0, 32], sizes = [8, 32], strides = [1, 1]} : vector<8x64xf32> to vector<8x32xf32>
    %134 = vector.extract_strided_slice %126 {offsets = [0, 0], sizes = [8, 8], strides = [1, 1]} : vector<8x32xf32> to vector<8x8xf32>
    %135 = vector.extract_strided_slice %132 {offsets = [0, 0], sizes = [8, 8], strides = [1, 1]} : vector<8x32xf32> to vector<8x8xf32>
    %136 = vector.extract_strided_slice %133 {offsets = [0, 0], sizes = [8, 8], strides = [1, 1]} : vector<8x32xf32> to vector<8x8xf32>
    %cst_62 = arith.constant dense<0.000000e+00> : vector<8x8xf32>
    %137 = tpu.matmul %134, %135, %cst_62 {dimension_numbers = #tpu.dot_dimension_numbers<[1], [1], [0], [0], [0, 0, 1, 0], [], []>} : vector<8x8xf32>, vector<8x8xf32>, vector<8x8xf32> -> vector<8x8xf32>
    %cst_63 = arith.constant 0.353553385 : f32
    %138 = vector.broadcast %cst_63 : f32 to vector<8x8xf32>
    %139 = arith.mulf %137, %138 : vector<8x8xf32>
    %140 = vector.broadcast %14 : vector<1x8xf32> to vector<8x8xf32>
    %141 = arith.addf %139, %140 : vector<8x8xf32>
    %cst_64 = arith.constant dense<0xFF800000> : vector<8xf32>
    %142 = vector.multi_reduction <maximumf>, %141, %cst_64 [1] : vector<8x8xf32> to vector<8xf32>
    %143 = vector.shape_cast %142 : vector<8xf32> to vector<8x1xf32>
    %144 = vector.broadcast %143 : vector<8x1xf32> to vector<8x8xf32>
    %145 = arith.subf %141, %144 : vector<8x8xf32>
    %146 = math.exp %145 : vector<8x8xf32>
    %cst_65 = arith.constant dense<0.000000e+00> : vector<8xf32>
    %147 = vector.multi_reduction <add>, %146, %cst_65 [1] : vector<8x8xf32> to vector<8xf32>
    %148 = vector.shape_cast %147 : vector<8xf32> to vector<8x1xf32>
    %149 = vector.broadcast %148 : vector<8x1xf32> to vector<8x8xf32>
    %150 = arith.divf %146, %149 : vector<8x8xf32>
    %cst_66 = arith.constant dense<0.000000e+00> : vector<8x8xf32>
    %151 = tpu.matmul %150, %136, %cst_66 {dimension_numbers = #tpu.dot_dimension_numbers<[1], [0], [0], [1], [0, 0, 1, 1], [], []>} : vector<8x8xf32>, vector<8x8xf32>, vector<8x8xf32> -> vector<8x8xf32>
    %152 = vector.extract_strided_slice %126 {offsets = [0, 8], sizes = [8, 8], strides = [1, 1]} : vector<8x32xf32> to vector<8x8xf32>
    %153 = vector.extract_strided_slice %132 {offsets = [0, 8], sizes = [8, 8], strides = [1, 1]} : vector<8x32xf32> to vector<8x8xf32>
    %154 = vector.extract_strided_slice %133 {offsets = [0, 8], sizes = [8, 8], strides = [1, 1]} : vector<8x32xf32> to vector<8x8xf32>
    %cst_67 = arith.constant dense<0.000000e+00> : vector<8x8xf32>
    %155 = tpu.matmul %152, %153, %cst_67 {dimension_numbers = #tpu.dot_dimension_numbers<[1], [1], [0], [0], [0, 0, 1, 0], [], []>} : vector<8x8xf32>, vector<8x8xf32>, vector<8x8xf32> -> vector<8x8xf32>
    %cst_68 = arith.constant 0.353553385 : f32
    %156 = vector.broadcast %cst_68 : f32 to vector<8x8xf32>
    %157 = arith.mulf %155, %156 : vector<8x8xf32>
    %158 = vector.broadcast %14 : vector<1x8xf32> to vector<8x8xf32>
    %159 = arith.addf %157, %158 : vector<8x8xf32>
    %cst_69 = arith.constant dense<0xFF800000> : vector<8xf32>
    %160 = vector.multi_reduction <maximumf>, %159, %cst_69 [1] : vector<8x8xf32> to vector<8xf32>
    %161 = vector.shape_cast %160 : vector<8xf32> to vector<8x1xf32>
    %162 = vector.broadcast %161 : vector<8x1xf32> to vector<8x8xf32>
    %163 = arith.subf %159, %162 : vector<8x8xf32>
    %164 = math.exp %163 : vector<8x8xf32>
    %cst_70 = arith.constant dense<0.000000e+00> : vector<8xf32>
    %165 = vector.multi_reduction <add>, %164, %cst_70 [1] : vector<8x8xf32> to vector<8xf32>
    %166 = vector.shape_cast %165 : vector<8xf32> to vector<8x1xf32>
    %167 = vector.broadcast %166 : vector<8x1xf32> to vector<8x8xf32>
    %168 = arith.divf %164, %167 : vector<8x8xf32>
    %cst_71 = arith.constant dense<0.000000e+00> : vector<8x8xf32>
    %169 = tpu.matmul %168, %154, %cst_71 {dimension_numbers = #tpu.dot_dimension_numbers<[1], [0], [0], [1], [0, 0, 1, 1], [], []>} : vector<8x8xf32>, vector<8x8xf32>, vector<8x8xf32> -> vector<8x8xf32>
    %170 = vector.extract_strided_slice %126 {offsets = [0, 16], sizes = [8, 8], strides = [1, 1]} : vector<8x32xf32> to vector<8x8xf32>
    %171 = vector.extract_strided_slice %132 {offsets = [0, 16], sizes = [8, 8], strides = [1, 1]} : vector<8x32xf32> to vector<8x8xf32>
    %172 = vector.extract_strided_slice %133 {offsets = [0, 16], sizes = [8, 8], strides = [1, 1]} : vector<8x32xf32> to vector<8x8xf32>
    %cst_72 = arith.constant dense<0.000000e+00> : vector<8x8xf32>
    %173 = tpu.matmul %170, %171, %cst_72 {dimension_numbers = #tpu.dot_dimension_numbers<[1], [1], [0], [0], [0, 0, 1, 0], [], []>} : vector<8x8xf32>, vector<8x8xf32>, vector<8x8xf32> -> vector<8x8xf32>
    %cst_73 = arith.constant 0.353553385 : f32
    %174 = vector.broadcast %cst_73 : f32 to vector<8x8xf32>
    %175 = arith.mulf %173, %174 : vector<8x8xf32>
    %176 = vector.broadcast %14 : vector<1x8xf32> to vector<8x8xf32>
    %177 = arith.addf %175, %176 : vector<8x8xf32>
    %cst_74 = arith.constant dense<0xFF800000> : vector<8xf32>
    %178 = vector.multi_reduction <maximumf>, %177, %cst_74 [1] : vector<8x8xf32> to vector<8xf32>
    %179 = vector.shape_cast %178 : vector<8xf32> to vector<8x1xf32>
    %180 = vector.broadcast %179 : vector<8x1xf32> to vector<8x8xf32>
    %181 = arith.subf %177, %180 : vector<8x8xf32>
    %182 = math.exp %181 : vector<8x8xf32>
    %cst_75 = arith.constant dense<0.000000e+00> : vector<8xf32>
    %183 = vector.multi_reduction <add>, %182, %cst_75 [1] : vector<8x8xf32> to vector<8xf32>
    %184 = vector.shape_cast %183 : vector<8xf32> to vector<8x1xf32>
    %185 = vector.broadcast %184 : vector<8x1xf32> to vector<8x8xf32>
    %186 = arith.divf %182, %185 : vector<8x8xf32>
    %cst_76 = arith.constant dense<0.000000e+00> : vector<8x8xf32>
    %187 = tpu.matmul %186, %172, %cst_76 {dimension_numbers = #tpu.dot_dimension_numbers<[1], [0], [0], [1], [0, 0, 1, 1], [], []>} : vector<8x8xf32>, vector<8x8xf32>, vector<8x8xf32> -> vector<8x8xf32>
    %188 = vector.extract_strided_slice %126 {offsets = [0, 24], sizes = [8, 8], strides = [1, 1]} : vector<8x32xf32> to vector<8x8xf32>
    %189 = vector.extract_strided_slice %132 {offsets = [0, 24], sizes = [8, 8], strides = [1, 1]} : vector<8x32xf32> to vector<8x8xf32>
    %190 = vector.extract_strided_slice %133 {offsets = [0, 24], sizes = [8, 8], strides = [1, 1]} : vector<8x32xf32> to vector<8x8xf32>
    %cst_77 = arith.constant dense<0.000000e+00> : vector<8x8xf32>
    %191 = tpu.matmul %188, %189, %cst_77 {dimension_numbers = #tpu.dot_dimension_numbers<[1], [1], [0], [0], [0, 0, 1, 0], [], []>} : vector<8x8xf32>, vector<8x8xf32>, vector<8x8xf32> -> vector<8x8xf32>
    %cst_78 = arith.constant 0.353553385 : f32
    %192 = vector.broadcast %cst_78 : f32 to vector<8x8xf32>
    %193 = arith.mulf %191, %192 : vector<8x8xf32>
    %194 = vector.broadcast %14 : vector<1x8xf32> to vector<8x8xf32>
    %195 = arith.addf %193, %194 : vector<8x8xf32>
    %cst_79 = arith.constant dense<0xFF800000> : vector<8xf32>
    %196 = vector.multi_reduction <maximumf>, %195, %cst_79 [1] : vector<8x8xf32> to vector<8xf32>
    %197 = vector.shape_cast %196 : vector<8xf32> to vector<8x1xf32>
    %198 = vector.broadcast %197 : vector<8x1xf32> to vector<8x8xf32>
    %199 = arith.subf %195, %198 : vector<8x8xf32>
    %200 = math.exp %199 : vector<8x8xf32>
    %cst_80 = arith.constant dense<0.000000e+00> : vector<8xf32>
    %201 = vector.multi_reduction <add>, %200, %cst_80 [1] : vector<8x8xf32> to vector<8xf32>
    %202 = vector.shape_cast %201 : vector<8xf32> to vector<8x1xf32>
    %203 = vector.broadcast %202 : vector<8x1xf32> to vector<8x8xf32>
    %204 = arith.divf %200, %203 : vector<8x8xf32>
    %cst_81 = arith.constant dense<0.000000e+00> : vector<8x8xf32>
    %205 = tpu.matmul %204, %190, %cst_81 {dimension_numbers = #tpu.dot_dimension_numbers<[1], [0], [0], [1], [0, 0, 1, 1], [], []>} : vector<8x8xf32>, vector<8x8xf32>, vector<8x8xf32> -> vector<8x8xf32>
    %206 = tpu.concatenate %151, %169, %187, %205 in 1 : vector<8x8xf32>, vector<8x8xf32>, vector<8x8xf32>, vector<8x8xf32> -> vector<8x32xf32>
    %c0_82 = arith.constant 0 : index
    %c0_83 = arith.constant 0 : index
    %207 = vector.load %arg14[%c0_82, %c0_83] : memref<32x32xf32, #tpu.memory_space<vmem>>, vector<32x32xf32>
    %cst_84 = arith.constant dense<0.000000e+00> : vector<8x32xf32>
    %208 = tpu.matmul %206, %207, %cst_84 {dimension_numbers = #tpu.dot_dimension_numbers<[1], [0], [0], [1], [0, 0, 1, 1], [], []>} : vector<8x32xf32>, vector<32x32xf32>, vector<8x32xf32> -> vector<8x32xf32>
    %c0_85 = arith.constant 0 : index
    %c0_86 = arith.constant 0 : index
    %209 = vector.load %arg15[%c0_85, %c0_86] : memref<1x32xf32, #tpu.memory_space<vmem>>, vector<1x32xf32>
    %210 = vector.broadcast %209 : vector<1x32xf32> to vector<8x32xf32>
    %211 = arith.addf %208, %210 : vector<8x32xf32>
    %212 = arith.addf %121, %211 : vector<8x32xf32>
    %c2 = arith.constant 2 : index
    %c0_87 = arith.constant 0 : index
    %213 = vector.load %arg16[%c2, %c0_87] : memref<6x32xf32, #tpu.memory_space<vmem>>, vector<1x32xf32>
    %c3 = arith.constant 3 : index
    %c0_88 = arith.constant 0 : index
    %214 = vector.load %arg16[%c3, %c0_88] : memref<6x32xf32, #tpu.memory_space<vmem>>, vector<1x32xf32>
    %cst_89 = arith.constant dense<0.000000e+00> : vector<8xf32>
    %215 = vector.multi_reduction <add>, %212, %cst_89 [1] : vector<8x32xf32> to vector<8xf32>
    %216 = vector.shape_cast %215 : vector<8xf32> to vector<8x1xf32>
    %cst_90 = arith.constant 3.200000e+01 : f32
    %217 = vector.broadcast %cst_90 : f32 to vector<8x1xf32>
    %218 = arith.divf %216, %217 : vector<8x1xf32>
    %219 = vector.broadcast %218 : vector<8x1xf32> to vector<8x32xf32>
    %220 = arith.subf %212, %219 : vector<8x32xf32>
    %221 = arith.mulf %220, %220 : vector<8x32xf32>
    %cst_91 = arith.constant dense<0.000000e+00> : vector<8xf32>
    %222 = vector.multi_reduction <add>, %221, %cst_91 [1] : vector<8x32xf32> to vector<8xf32>
    %223 = vector.shape_cast %222 : vector<8xf32> to vector<8x1xf32>
    %cst_92 = arith.constant 3.200000e+01 : f32
    %224 = vector.broadcast %cst_92 : f32 to vector<8x1xf32>
    %225 = arith.divf %223, %224 : vector<8x1xf32>
    %226 = vector.broadcast %218 : vector<8x1xf32> to vector<8x32xf32>
    %227 = arith.subf %212, %226 : vector<8x32xf32>
    %cst_93 = arith.constant 9.99999974E-6 : f32
    %228 = vector.broadcast %cst_93 : f32 to vector<8x1xf32>
    %229 = arith.addf %225, %228 : vector<8x1xf32>
    %230 = math.rsqrt %229 : vector<8x1xf32>
    %231 = vector.broadcast %230 : vector<8x1xf32> to vector<8x32xf32>
    %232 = arith.mulf %227, %231 : vector<8x32xf32>
    %233 = vector.broadcast %213 : vector<1x32xf32> to vector<8x32xf32>
    %234 = arith.mulf %232, %233 : vector<8x32xf32>
    %235 = vector.broadcast %214 : vector<1x32xf32> to vector<8x32xf32>
    %236 = arith.addf %234, %235 : vector<8x32xf32>
    %c0_94 = arith.constant 0 : index
    %c0_95 = arith.constant 0 : index
    %237 = vector.load %arg17[%c0_94, %c0_95] : memref<32x128xf32, #tpu.memory_space<vmem>>, vector<32x128xf32>
    %cst_96 = arith.constant dense<0.000000e+00> : vector<8x128xf32>
    %238 = tpu.matmul %236, %237, %cst_96 {dimension_numbers = #tpu.dot_dimension_numbers<[1], [0], [0], [1], [0, 0, 1, 1], [], []>} : vector<8x32xf32>, vector<32x128xf32>, vector<8x128xf32> -> vector<8x128xf32>
    %c0_97 = arith.constant 0 : index
    %c0_98 = arith.constant 0 : index
    %239 = vector.load %arg18[%c0_97, %c0_98] : memref<1x128xf32, #tpu.memory_space<vmem>>, vector<1x128xf32>
    %240 = vector.broadcast %239 : vector<1x128xf32> to vector<8x128xf32>
    %241 = arith.addf %238, %240 : vector<8x128xf32>
    %cst_99 = arith.constant 0.000000e+00 : f32
    %242 = vector.broadcast %cst_99 : f32 to vector<8x128xf32>
    %243 = arith.maximumf %241, %242 : vector<8x128xf32>
    %c0_100 = arith.constant 0 : index
    %c0_101 = arith.constant 0 : index
    %244 = vector.load %arg19[%c0_100, %c0_101] : memref<128x32xf32, #tpu.memory_space<vmem>>, vector<128x32xf32>
    %cst_102 = arith.constant dense<0.000000e+00> : vector<8x32xf32>
    %245 = tpu.matmul %243, %244, %cst_102 {dimension_numbers = #tpu.dot_dimension_numbers<[1], [0], [0], [1], [0, 0, 1, 1], [], []>} : vector<8x128xf32>, vector<128x32xf32>, vector<8x32xf32> -> vector<8x32xf32>
    %c0_103 = arith.constant 0 : index
    %c0_104 = arith.constant 0 : index
    %246 = vector.load %arg20[%c0_103, %c0_104] : memref<1x32xf32, #tpu.memory_space<vmem>>, vector<1x32xf32>
    %247 = vector.broadcast %246 : vector<1x32xf32> to vector<8x32xf32>
    %248 = arith.addf %245, %247 : vector<8x32xf32>
    %249 = arith.addf %236, %248 : vector<8x32xf32>
    %c4 = arith.constant 4 : index
    %c0_105 = arith.constant 0 : index
    %250 = vector.load %arg16[%c4, %c0_105] : memref<6x32xf32, #tpu.memory_space<vmem>>, vector<1x32xf32>
    %c5 = arith.constant 5 : index
    %c0_106 = arith.constant 0 : index
    %251 = vector.load %arg16[%c5, %c0_106] : memref<6x32xf32, #tpu.memory_space<vmem>>, vector<1x32xf32>
    %cst_107 = arith.constant dense<0.000000e+00> : vector<8xf32>
    %252 = vector.multi_reduction <add>, %249, %cst_107 [1] : vector<8x32xf32> to vector<8xf32>
    %253 = vector.shape_cast %252 : vector<8xf32> to vector<8x1xf32>
    %cst_108 = arith.constant 3.200000e+01 : f32
    %254 = vector.broadcast %cst_108 : f32 to vector<8x1xf32>
    %255 = arith.divf %253, %254 : vector<8x1xf32>
    %256 = vector.broadcast %255 : vector<8x1xf32> to vector<8x32xf32>
    %257 = arith.subf %249, %256 : vector<8x32xf32>
    %258 = arith.mulf %257, %257 : vector<8x32xf32>
    %cst_109 = arith.constant dense<0.000000e+00> : vector<8xf32>
    %259 = vector.multi_reduction <add>, %258, %cst_109 [1] : vector<8x32xf32> to vector<8xf32>
    %260 = vector.shape_cast %259 : vector<8xf32> to vector<8x1xf32>
    %cst_110 = arith.constant 3.200000e+01 : f32
    %261 = vector.broadcast %cst_110 : f32 to vector<8x1xf32>
    %262 = arith.divf %260, %261 : vector<8x1xf32>
    %263 = vector.broadcast %255 : vector<8x1xf32> to vector<8x32xf32>
    %264 = arith.subf %249, %263 : vector<8x32xf32>
    %cst_111 = arith.constant 9.99999974E-6 : f32
    %265 = vector.broadcast %cst_111 : f32 to vector<8x1xf32>
    %266 = arith.addf %262, %265 : vector<8x1xf32>
    %267 = math.rsqrt %266 : vector<8x1xf32>
    %268 = vector.broadcast %267 : vector<8x1xf32> to vector<8x32xf32>
    %269 = arith.mulf %264, %268 : vector<8x32xf32>
    %270 = vector.broadcast %250 : vector<1x32xf32> to vector<8x32xf32>
    %271 = arith.mulf %269, %270 : vector<8x32xf32>
    %272 = vector.broadcast %251 : vector<1x32xf32> to vector<8x32xf32>
    %273 = arith.addf %271, %272 : vector<8x32xf32>
    %c0_112 = arith.constant 0 : index
    %c0_113 = arith.constant 0 : index
    %c0_114 = arith.constant 0 : index
    %274 = vector.load %arg21[%c0_112, %c0_113, %c0_114] : memref<1x8x32xf32, #tpu.memory_space<vmem>>, vector<1x8x32xf32>
    %275 = vector.shape_cast %274 : vector<1x8x32xf32> to vector<8x32xf32>
    %276 = vector.shape_cast %273 : vector<8x32xf32> to vector<1x8x32xf32>
    tpu.vector_store %arg21[%c0_112, %c0_113, %c0_114], %276 {strides = array<i32>} : memref<1x8x32xf32, #tpu.memory_space<vmem>>, vector<1x8x32xf32>,
    return
  }
  func.func @transform_0(%arg0: i32) -> (i32, i32, i32) {
    %c0_i32 = arith.constant 0 : i32
    %c0_i32_0 = arith.constant 0 : i32
    %c0_i32_1 = arith.constant 0 : i32
    return %arg0, %c0_i32, %c0_i32_0 : i32, i32, i32
  }
  func.func @transform_1(%arg0: i32) -> (i32, i32, i32) {
    %c0_i32 = arith.constant 0 : i32
    %c0_i32_0 = arith.constant 0 : i32
    %c0_i32_1 = arith.constant 0 : i32
    return %arg0, %c0_i32, %c0_i32_0 : i32, i32, i32
  }
  func.func @transform_2(%arg0: i32) -> (i32, i32, i32) {
    %c0_i32 = arith.constant 0 : i32
    %c0_i32_0 = arith.constant 0 : i32
    %c0_i32_1 = arith.constant 0 : i32
    return %arg0, %c0_i32, %c0_i32_0 : i32, i32, i32
  }
  func.func @transform_3(%arg0: i32) -> (i32, i32, i32) {
    %c0_i32 = arith.constant 0 : i32
    %c0_i32_0 = arith.constant 0 : i32
    %c0_i32_1 = arith.constant 0 : i32
    return %arg0, %c0_i32, %c0_i32_0 : i32, i32, i32
  }
  func.func @transform_4(%arg0: i32) -> (i32, i32) {
    %c0_i32 = arith.constant 0 : i32
    %c0_i32_0 = arith.constant 0 : i32
    %c0_i32_1 = arith.constant 0 : i32
    return %c0_i32, %c0_i32_0 : i32, i32
  }
  func.func @transform_5(%arg0: i32) -> (i32, i32) {
    %c0_i32 = arith.constant 0 : i32
    %c0_i32_0 = arith.constant 0 : i32
    %c0_i32_1 = arith.constant 0 : i32
    return %c0_i32, %c0_i32_0 : i32, i32
  }
  func.func @transform_6(%arg0: i32) -> (i32, i32) {
    %c0_i32 = arith.constant 0 : i32
    %c0_i32_0 = arith.constant 0 : i32
    %c0_i32_1 = arith.constant 0 : i32
    return %c0_i32, %c0_i32_0 : i32, i32
  }
  func.func @transform_7(%arg0: i32) -> (i32, i32) {
    %c0_i32 = arith.constant 0 : i32
    %c0_i32_0 = arith.constant 0 : i32
    %c0_i32_1 = arith.constant 0 : i32
    return %c0_i32, %c0_i32_0 : i32, i32
  }
  func.func @transform_8(%arg0: i32) -> (i32, i32) {
    %c0_i32 = arith.constant 0 : i32
    %c0_i32_0 = arith.constant 0 : i32
    %c0_i32_1 = arith.constant 0 : i32
    return %c0_i32, %c0_i32_0 : i32, i32
  }
  func.func @transform_9(%arg0: i32) -> (i32, i32) {
    %c0_i32 = arith.constant 0 : i32
    %c0_i32_0 = arith.constant 0 : i32
    %c0_i32_1 = arith.constant 0 : i32
    return %c0_i32, %c0_i32_0 : i32, i32
  }
  func.func @transform_10(%arg0: i32) -> (i32, i32) {
    %c0_i32 = arith.constant 0 : i32
    %c0_i32_0 = arith.constant 0 : i32
    %c0_i32_1 = arith.constant 0 : i32
    return %c0_i32, %c0_i32_0 : i32, i32
  }
  func.func @transform_11(%arg0: i32) -> (i32, i32) {
    %c0_i32 = arith.constant 0 : i32
    %c0_i32_0 = arith.constant 0 : i32
    %c0_i32_1 = arith.constant 0 : i32
    return %c0_i32, %c0_i32_0 : i32, i32
  }
  func.func @transform_12(%arg0: i32) -> (i32, i32) {
    %c0_i32 = arith.constant 0 : i32
    %c0_i32_0 = arith.constant 0 : i32
    %c0_i32_1 = arith.constant 0 : i32
    return %c0_i32, %c0_i32_0 : i32, i32
  }
  func.func @transform_13(%arg0: i32) -> (i32, i32) {
    %c0_i32 = arith.constant 0 : i32
    %c0_i32_0 = arith.constant 0 : i32
    %c0_i32_1 = arith.constant 0 : i32
    return %c0_i32, %c0_i32_0 : i32, i32
  }
  func.func @transform_14(%arg0: i32) -> (i32, i32) {
    %c0_i32 = arith.constant 0 : i32
    %c0_i32_0 = arith.constant 0 : i32
    %c0_i32_1 = arith.constant 0 : i32
    return %c0_i32, %c0_i32_0 : i32, i32
  }
  func.func @transform_15(%arg0: i32) -> (i32, i32) {
    %c0_i32 = arith.constant 0 : i32
    %c0_i32_0 = arith.constant 0 : i32
    %c0_i32_1 = arith.constant 0 : i32
    return %c0_i32, %c0_i32_0 : i32, i32
  }
  func.func @transform_16(%arg0: i32) -> (i32, i32) {
    %c0_i32 = arith.constant 0 : i32
    %c0_i32_0 = arith.constant 0 : i32
    %c0_i32_1 = arith.constant 0 : i32
    return %c0_i32, %c0_i32_0 : i32, i32
  }
  func.func @transform_17(%arg0: i32) -> (i32, i32) {
    %c0_i32 = arith.constant 0 : i32
    %c0_i32_0 = arith.constant 0 : i32
    %c0_i32_1 = arith.constant 0 : i32
    return %c0_i32, %c0_i32_0 : i32, i32
  }
  func.func @transform_18(%arg0: i32) -> (i32, i32) {
    %c0_i32 = arith.constant 0 : i32
    %c0_i32_0 = arith.constant 0 : i32
    %c0_i32_1 = arith.constant 0 : i32
    return %c0_i32, %c0_i32_0 : i32, i32
  }
  func.func @transform_19(%arg0: i32) -> (i32, i32) {
    %c0_i32 = arith.constant 0 : i32
    %c0_i32_0 = arith.constant 0 : i32
    %c0_i32_1 = arith.constant 0 : i32
    return %c0_i32, %c0_i32_0 : i32, i32
  }
  func.func @transform_20(%arg0: i32) -> (i32, i32, i32) {
    %c0_i32 = arith.constant 0 : i32
    %c0_i32_0 = arith.constant 0 : i32
    %c0_i32_1 = arith.constant 0 : i32
    return %arg0, %c0_i32, %c0_i32_0 : i32, i32, i32
  }
}

</mosaic_0001>

<llo_original>
// kernel: trajectory_decoder_forward.5
$region0: #{trajectory_decoder_forward.5}
  #allocation0 [shape = 'u32[]', space=smem, size = 0x4, offset = 0x4, fixed_abs, tag = 'smem constant byte address 0x4 - core index']
  #allocation1 [shape = 'u32[144,128]{1,0:T(1,128)}', space=vmem, size = 0x12000, scoped, tag = 'internal scratch']
  #allocation2 [shape = 'f32[1,1]{1,0:T(1,128)S(1)}', space=vmem, size = 0x200, scoped, tag = 'scoped memory for trajectory_decoder_forward.5']
  %s0 = inlined_call_operand.vmem [shape: f32[16,32], index: 0, kind: input, shape index: {}]
  %s1 = inlined_call_operand.vmem [shape: f32[32,32], index: 1, kind: input, shape index: {}]
  %s2 = inlined_call_operand.vmem [shape: f32[1,32], index: 2, kind: input, shape index: {}]
  %s3 = inlined_call_operand.vmem [shape: f32[32,6], index: 3, kind: input, shape index: {}]
  %s4 = inlined_call_operand.vmem [shape: f32[1,6], index: 4, kind: input, shape index: {}]
  %s5 = inlined_call_operand.vmem [shape: f32[32,1], index: 5, kind: input, shape index: {}]
  %s6 = inlined_call_operand.<no memory space> [shape: f32[1,1], index: 6, kind: input, shape index: {}]
  %s7 = inlined_call_operand.vmem [shape: f32[16,6], index: 7, kind: output, shape index: {0}]
  %s8 = inlined_call_operand.vmem [shape: f32[16,1], index: 8, kind: output, shape index: {1}]
  %9 = xla_tuple %s7, %s8
  %s10 = sld [smem:[#allocation0]]
  $region46: #{trajectory_decoder_forward.5} parent=0
    _
  %s12 = ssub.s32 1, %s10
  %s13 = scalar_select 0, %s12, %s10
  %v14 = vstv %s6
  %15 = vst [vmem:[#allocation2] sm:$0x1] %v14
  // Predicated region
  $region2: #{trajectory_decoder_forward.5} parent=0 // pred_check
    _
  $region3: #{trajectory_decoder_forward.5} parent=0 // pred_check_branch
    %17 = sbr.rel (0) target = $region5
  $region4: #{trajectory_decoder_forward.5} parent=0 // pred_region
    _
  $region5: #{trajectory_decoder_forward.5} parent=0 // pred_fallthru
    _
  // Predicated region
  $region6: #{trajectory_decoder_forward.5} parent=0 // pred_check
    _
  $region7: #{trajectory_decoder_forward.5} parent=0 // pred_check_branch
    %19 = sbr.rel (0) target = $region9
  $region8: #{trajectory_decoder_forward.5} parent=0 // pred_region
    _
  $region9: #{trajectory_decoder_forward.5} parent=0 // pred_fallthru
    _
  // Predicated region
  $region10: #{trajectory_decoder_forward.5} parent=0 // pred_check
    _
  $region11: #{trajectory_decoder_forward.5} parent=0 // pred_check_branch
    %21 = sbr.rel (0) target = $region13
  $region12: #{trajectory_decoder_forward.5} parent=0 // pred_region
    _
  $region13: #{trajectory_decoder_forward.5} parent=0 // pred_fallthru
    _
  // Predicated region
  $region14: #{trajectory_decoder_forward.5} parent=0 // pred_check
    _
  $region15: #{trajectory_decoder_forward.5} parent=0 // pred_check_branch
    %23 = sbr.rel (0) target = $region17
  $region16: #{trajectory_decoder_forward.5} parent=0 // pred_region
    _
  $region17: #{trajectory_decoder_forward.5} parent=0 // pred_fallthru
    _
  // Predicated region
  $region18: #{trajectory_decoder_forward.5} parent=0 // pred_check
    _
  $region19: #{trajectory_decoder_forward.5} parent=0 // pred_check_branch
    %25 = sbr.rel (0) target = $region21
  $region20: #{trajectory_decoder_forward.5} parent=0 // pred_region
    _
  $region21: #{trajectory_decoder_forward.5} parent=0 // pred_fallthru
    _
  // Predicated region
  $region22: #{trajectory_decoder_forward.5} parent=0 // pred_check
    _
  $region23: #{trajectory_decoder_forward.5} parent=0 // pred_check_branch
    %27 = sbr.rel (0) target = $region25
  $region24: #{trajectory_decoder_forward.5} parent=0 // pred_region
    _
  $region25: #{trajectory_decoder_forward.5} parent=0 // pred_fallthru
    _
  // Predicated region
  $region26: #{trajectory_decoder_forward.5} parent=0 // pred_check
    _
  $region27: #{trajectory_decoder_forward.5} parent=0 // pred_check_branch
    %29 = sbr.rel (0) target = $region29
  $region28: #{trajectory_decoder_forward.5} parent=0 // pred_region
    _
  $region29: #{trajectory_decoder_forward.5} parent=0 // pred_fallthru
    _
  %v30 = vld [vmem:[%s0] sm:$0xff]
  %v31 = vld [vmem:[%s0 + $0x8] sm:$0xff]
  %v32 = vld [vmem:[%s1] sm:$0xff]
  %v33 = vld [vmem:[%s1 + $0x8] sm:$0xff]
  %v34 = vld [vmem:[%s1 + $0x10] sm:$0xff]
  %v35 = vld [vmem:[%s1 + $0x18] sm:$0xff]
  %v36 = vld [vmem:[%s2] sm:$0x1]
  %v38 = vlaneseq
  %v39 = vshrl.u32 %v38, 7
  %v40 = vsub.s32 0, %v39
  %v41 = vrot.slane %v36, %v40
  %vm43 = vcmask 261120
  %v45 = vsel %vm43, %v30, 0
  %v48 = vsel %vm43, %v31, 0
  %50 = vmatprep.subr.mxu0 0.0
  %51 = vmatpush1.msra.mxu0 %v32
  %52 = vmatprep.subr.mxu0 0.0
  %53 = vmatpush1.msra.mxu0 %v33
  %54 = vmatprep.subr.mxu0 0.0
  %55 = vmatpush1.msra.mxu0 %v34
  %56 = vmatprep.subr.mxu0 0.0
  %57 = vmatpush1.msra.mxu0 %v35
  %58 = vmatprep.subr.mxu0 0.0
  %59 = vmatpush1.msra.mxu0 0.0
  %60 = vmatprep.subr.mxu0 0.0
  %61 = vmatpush1.msra.mxu0 0.0
  %62 = vmatprep.subr.mxu0 0.0
  %63 = vmatpush1.msra.mxu0 0.0
  %64 = vmatprep.subr.mxu0 0.0
  %65 = vmatpush1.msra.mxu0 0.0
  %66 = vmatprep.subr.mxu0 0.0
  %67 = vmatpush1.msra.mxu0 0.0
  %68 = vmatprep.subr.mxu0 0.0
  %69 = vmatpush1.msra.mxu0 0.0
  %70 = vmatprep.subr.mxu0 0.0
  %71 = vmatpush1.msra.mxu0 0.0
  %72 = vmatprep.subr.mxu0 0.0
  %73 = vmatpush1.msra.mxu0 0.0
  %74 = vmatprep.subr.mxu0 0.0
  %75 = vmatpush1.msra.mxu0 0.0
  %76 = vmatprep.subr.mxu0 0.0
  %77 = vmatpush1.msra.mxu0 0.0
  %78 = vmatprep.subr.mxu0 0.0
  %79 = vmatpush1.msra.mxu0 0.0
  %80 = vmatprep.subr.mxu0 0.0
  %81 = vmatpush1.msra.mxu0 0.0
  %82 = vmatprep.subr.mxu0 0.0
  %83 = vmatpush1.msra.mxu0 0.0
  %84 = vmatprep.subr.mxu0 0.0
  %85 = vmatpush1.msra.mxu0 0.0
  %86 = vmatprep.subr.mxu0 0.0
  %87 = vmatpush1.msra.mxu0 0.0
  %88 = vmatprep.subr.mxu0 0.0
  %89 = vmatpush1.msra.mxu0 0.0
  %90 = vmatprep.subr.mxu0 0.0
  %91 = vmatpush1.msra.mxu0 0.0
  %92 = vmatprep.subr.mxu0 0.0
  %93 = vmatpush1.msra.mxu0 0.0
  %94 = vmatprep.subr.mxu0 0.0
  %95 = vmatpush1.msra.mxu0 0.0
  %96 = vmatprep.subr.mxu0 0.0
  %97 = vmatpush1.msra.mxu0 0.0
  %98 = vmatprep.subr.mxu0 0.0
  %99 = vmatpush1.msra.mxu0 0.0
  %100 = vmatprep.subr.mxu0 0.0
  %101 = vmatpush1.msra.mxu0 0.0
  %102 = vmatprep.subr.mxu0 0.0
  %103 = vmatpush1.msra.mxu0 0.0
  %104 = vmatprep.subr.mxu0 0.0
  %105 = vmatpush1.msra.mxu0 0.0
  %106 = vmatprep.subr.mxu0 0.0
  %107 = vmatpush1.msra.mxu0 0.0
  %108 = vmatprep.subr.mxu0 0.0
  %109 = vmatpush1.msra.mxu0 0.0
  %110 = vmatprep.subr.mxu0 0.0
  %111 = vmatpush1.msra.mxu0 0.0
  %112 = vmatprep.subr.mxu0 0.0
  %113 = vmatpush1.msra.mxu0 0.0
  %114 = vmatprep.mubr.f32.mxu0 0.0
  %115 = vmatmul.mubr.f32.gmra.mrb[0].mxu0 %v45
  %v116 = vpop.f32.mrb[0].mxu0
  %v117 = vadd.f32 %v41, %v116
  %v118 = vpop.f32.mrb[0].mxu0
  %119 = vmatprep.mubr.f32.mxu0 0.0
  %120 = vmatmul.mubr.f32.gmra.mrb[0].mxu0 %v48
  %v121 = vpop.f32.mrb[0].mxu0
  %v122 = vadd.f32 %v41, %v121
  %v123 = vpop.f32.mrb[0].mxu0
  %124 = vdwg.mxu0
  %v125 = vmax.f32 %v117, 0.0
  %v126 = vmax.f32 %v122, 0.0
  %v127 = vld [vmem:[%s3] sm:$0xff]
  %v128 = vld [vmem:[%s3 + $0x8] sm:$0xff]
  %v129 = vld [vmem:[%s3 + $0x10] sm:$0xff]
  %v130 = vld [vmem:[%s3 + $0x18] sm:$0xff]
  %v131 = vld [vmem:[%s4] sm:$0x1]
  %v133 = vlaneseq
  %v134 = vshrl.u32 %v133, 7
  %v135 = vsub.s32 0, %v134
  %v136 = vrot.slane %v131, %v135
  %v139 = vsel %vm43, %v125, 0
  %v142 = vsel %vm43, %v126, 0
  %144 = vmatprep.subr.mxu0 0.0
  %145 = vmatpush1.msra.mxu0 %v127
  %146 = vmatprep.subr.mxu0 0.0
  %147 = vmatpush1.msra.mxu0 %v128
  %148 = vmatprep.subr.mxu0 0.0
  %149 = vmatpush1.msra.mxu0 %v129
  %150 = vmatprep.subr.mxu0 0.0
  %151 = vmatpush1.msra.mxu0 %v130
  %152 = vmatprep.subr.mxu0 0.0
  %153 = vmatpush1.msra.mxu0 0.0
  %154 = vmatprep.subr.mxu0 0.0
  %155 = vmatpush1.msra.mxu0 0.0
  %156 = vmatprep.subr.mxu0 0.0
  %157 = vmatpush1.msra.mxu0 0.0
  %158 = vmatprep.subr.mxu0 0.0
  %159 = vmatpush1.msra.mxu0 0.0
  %160 = vmatprep.subr.mxu0 0.0
  %161 = vmatpush1.msra.mxu0 0.0
  %162 = vmatprep.subr.mxu0 0.0
  %163 = vmatpush1.msra.mxu0 0.0
  %164 = vmatprep.subr.mxu0 0.0
  %165 = vmatpush1.msra.mxu0 0.0
  %166 = vmatprep.subr.mxu0 0.0
  %167 = vmatpush1.msra.mxu0 0.0
  %168 = vmatprep.subr.mxu0 0.0
  %169 = vmatpush1.msra.mxu0 0.0
  %170 = vmatprep.subr.mxu0 0.0
  %171 = vmatpush1.msra.mxu0 0.0
  %172 = vmatprep.subr.mxu0 0.0
  %173 = vmatpush1.msra.mxu0 0.0
  %174 = vmatprep.subr.mxu0 0.0
  %175 = vmatpush1.msra.mxu0 0.0
  %176 = vmatprep.subr.mxu0 0.0
  %177 = vmatpush1.msra.mxu0 0.0
  %178 = vmatprep.subr.mxu0 0.0
  %179 = vmatpush1.msra.mxu0 0.0
  %180 = vmatprep.subr.mxu0 0.0
  %181 = vmatpush1.msra.mxu0 0.0
  %182 = vmatprep.subr.mxu0 0.0
  %183 = vmatpush1.msra.mxu0 0.0
  %184 = vmatprep.subr.mxu0 0.0
  %185 = vmatpush1.msra.mxu0 0.0
  %186 = vmatprep.subr.mxu0 0.0
  %187 = vmatpush1.msra.mxu0 0.0
  %188 = vmatprep.subr.mxu0 0.0
  %189 = vmatpush1.msra.mxu0 0.0
  %190 = vmatprep.subr.mxu0 0.0
  %191 = vmatpush1.msra.mxu0 0.0
  %192 = vmatprep.subr.mxu0 0.0
  %193 = vmatpush1.msra.mxu0 0.0
  %194 = vmatprep.subr.mxu0 0.0
  %195 = vmatpush1.msra.mxu0 0.0
  %196 = vmatprep.subr.mxu0 0.0
  %197 = vmatpush1.msra.mxu0 0.0
  %198 = vmatprep.subr.mxu0 0.0
  %199 = vmatpush1.msra.mxu0 0.0
  %200 = vmatprep.subr.mxu0 0.0
  %201 = vmatpush1.msra.mxu0 0.0
  %202 = vmatprep.subr.mxu0 0.0
  %203 = vmatpush1.msra.mxu0 0.0
  %204 = vmatprep.subr.mxu0 0.0
  %205 = vmatpush1.msra.mxu0 0.0
  %206 = vmatprep.subr.mxu0 0.0
  %207 = vmatpush1.msra.mxu0 0.0
  %208 = vmatprep.mubr.f32.mxu0 0.0
  %209 = vmatmul.mubr.f32.gmra.mrb[0].mxu0 %v139
  %v210 = vpop.f32.mrb[0].mxu0
  %v211 = vadd.f32 %v136, %v210
  %v212 = vpop.f32.mrb[0].mxu0
  %213 = vmatprep.mubr.f32.mxu0 0.0
  %214 = vmatmul.mubr.f32.gmra.mrb[0].mxu0 %v142
  %v215 = vpop.f32.mrb[0].mxu0
  %v216 = vadd.f32 %v136, %v215
  %v217 = vpop.f32.mrb[0].mxu0
  %218 = vdwg.mxu0
  %vm219 = vcmask 48128
  %220 = vst.msk [vmem:[%s7] sm:$0xff] %vm219, %v211
  %221 = vst.msk [vmem:[%s7 + $0x8] sm:$0xff] %vm219, %v216
  %v222 = vld [vmem:[%s5] sm:$0xff]
  %v223 = vld [vmem:[%s5 + $0x8] sm:$0xff]
  %v224 = vld [vmem:[%s5 + $0x10] sm:$0xff]
  %v225 = vld [vmem:[%s5 + $0x18] sm:$0xff]
  %v226 = vld [vmem:[#allocation2] sm:$0x1]
  %v228 = vlaneseq
  %v229 = vshrl.u32 %v228, 7
  %v230 = vsub.s32 0, %v229
  %v231 = vrot.slane %v226, %v230
  %233 = vmatprep.subr.mxu0 0.0
  %234 = vmatpush1.msra.mxu0 %v222
  %235 = vmatprep.subr.mxu0 0.0
  %236 = vmatpush1.msra.mxu0 %v223
  %237 = vmatprep.subr.mxu0 0.0
  %238 = vmatpush1.msra.mxu0 %v224
  %239 = vmatprep.subr.mxu0 0.0
  %240 = vmatpush1.msra.mxu0 %v225
  %241 = vmatprep.subr.mxu0 0.0
  %242 = vmatpush1.msra.mxu0 0.0
  %243 = vmatprep.subr.mxu0 0.0
  %244 = vmatpush1.msra.mxu0 0.0
  %245 = vmatprep.subr.mxu0 0.0
  %246 = vmatpush1.msra.mxu0 0.0
  %247 = vmatprep.subr.mxu0 0.0
  %248 = vmatpush1.msra.mxu0 0.0
  %249 = vmatprep.subr.mxu0 0.0
  %250 = vmatpush1.msra.mxu0 0.0
  %251 = vmatprep.subr.mxu0 0.0
  %252 = vmatpush1.msra.mxu0 0.0
  %253 = vmatprep.subr.mxu0 0.0
  %254 = vmatpush1.msra.mxu0 0.0
  %255 = vmatprep.subr.mxu0 0.0
  %256 = vmatpush1.msra.mxu0 0.0
  %257 = vmatprep.subr.mxu0 0.0
  %258 = vmatpush1.msra.mxu0 0.0
  %259 = vmatprep.subr.mxu0 0.0
  %260 = vmatpush1.msra.mxu0 0.0
  %261 = vmatprep.subr.mxu0 0.0
  %262 = vmatpush1.msra.mxu0 0.0
  %263 = vmatprep.subr.mxu0 0.0
  %264 = vmatpush1.msra.mxu0 0.0
  %265 = vmatprep.subr.mxu0 0.0
  %266 = vmatpush1.msra.mxu0 0.0
  %267 = vmatprep.subr.mxu0 0.0
  %268 = vmatpush1.msra.mxu0 0.0
  %269 = vmatprep.subr.mxu0 0.0
  %270 = vmatpush1.msra.mxu0 0.0
  %271 = vmatprep.subr.mxu0 0.0
  %272 = vmatpush1.msra.mxu0 0.0
  %273 = vmatprep.subr.mxu0 0.0
  %274 = vmatpush1.msra.mxu0 0.0
  %275 = vmatprep.subr.mxu0 0.0
  %276 = vmatpush1.msra.mxu0 0.0
  %277 = vmatprep.subr.mxu0 0.0
  %278 = vmatpush1.msra.mxu0 0.0
  %279 = vmatprep.subr.mxu0 0.0
  %280 = vmatpush1.msra.mxu0 0.0
  %281 = vmatprep.subr.mxu0 0.0
  %282 = vmatpush1.msra.mxu0 0.0
  %283 = vmatprep.subr.mxu0 0.0
  %284 = vmatpush1.msra.mxu0 0.0
  %285 = vmatprep.subr.mxu0 0.0
  %286 = vmatpush1.msra.mxu0 0.0
  %287 = vmatprep.subr.mxu0 0.0
  %288 = vmatpush1.msra.mxu0 0.0
  %289 = vmatprep.subr.mxu0 0.0
  %290 = vmatpush1.msra.mxu0 0.0
  %291 = vmatprep.subr.mxu0 0.0
  %292 = vmatpush1.msra.mxu0 0.0
  %293 = vmatprep.subr.mxu0 0.0
  %294 = vmatpush1.msra.mxu0 0.0
  %295 = vmatprep.subr.mxu0 0.0
  %296 = vmatpush1.msra.mxu0 0.0
  %297 = vmatprep.mubr.f32.mxu0 0.0
  %298 = vmatmul.mubr.f32.gmra.mrb[0].mxu0 %v45
  %v299 = vpop.f32.mrb[0].mxu0
  %v300 = vadd.f32 %v231, %v299
  %v301 = vpop.f32.mrb[0].mxu0
  %302 = vmatprep.mubr.f32.mxu0 0.0
  %303 = vmatmul.mubr.f32.gmra.mrb[0].mxu0 %v48
  %v304 = vpop.f32.mrb[0].mxu0
  %v305 = vadd.f32 %v231, %v304
  %v306 = vpop.f32.mrb[0].mxu0
  %307 = vdwg.mxu0
  %v308 = vtanh.pop %v300
  %v309 = vtanh.pop %v305
  %vm310 = vcmask 7168
  %311 = vst.msk [vmem:[%s8] sm:$0xff] %vm310, %v308
  %312 = vst.msk [vmem:[%s8 + $0x8] sm:$0xff] %vm310, %v309
  // Predicated region
  $region30: #{trajectory_decoder_forward.5} parent=0 // pred_check
    _
  $region31: #{trajectory_decoder_forward.5} parent=0 // pred_check_branch
    %314 = sbr.rel (0) target = $region33
  $region32: #{trajectory_decoder_forward.5} parent=0 // pred_region
    _
  $region33: #{trajectory_decoder_forward.5} parent=0 // pred_fallthru
    _
  // Predicated region
  $region34: #{trajectory_decoder_forward.5} parent=0 // pred_check
    _
  $region35: #{trajectory_decoder_forward.5} parent=0 // pred_check_branch
    %316 = sbr.rel (0) target = $region37
  $region36: #{trajectory_decoder_forward.5} parent=0 // pred_region
    _
  $region37: #{trajectory_decoder_forward.5} parent=0 // pred_fallthru
    _
  // Predicated region
  $region38: #{trajectory_decoder_forward.5} parent=0 // pred_check
    _
  $region39: #{trajectory_decoder_forward.5} parent=0 // pred_check_branch
    %318 = sbr.rel (0) target = $region41
  $region40: #{trajectory_decoder_forward.5} parent=0 // pred_region
    _
  $region41: #{trajectory_decoder_forward.5} parent=0 // pred_fallthru
    _
  // Predicated region
  $region42: #{trajectory_decoder_forward.5} parent=0 // pred_check
    _
  $region43: #{trajectory_decoder_forward.5} parent=0 // pred_check_branch
    %320 = sbr.rel (0) target = $region45
  $region44: #{trajectory_decoder_forward.5} parent=0 // pred_region
    _
  $region45: #{trajectory_decoder_forward.5} parent=0 // pred_fallthru
    _

// kernel: trajectory_decoder_forward.3
$region0: #{trajectory_decoder_forward.3}
  #allocation0 [shape = 'u32[]', space=smem, size = 0x4, offset = 0x4, fixed_abs, tag = 'smem constant byte address 0x4 - core index']
  #allocation1 [shape = 'u32[144,128]{1,0:T(1,128)}', space=vmem, size = 0x12000, scoped, tag = 'internal scratch']
  %s0 = inlined_call_operand.vmem [shape: f32[2,8,32], index: 0, kind: input, shape index: {}]
  %s1 = inlined_call_operand.vmem [shape: f32[2,8,32], index: 1, kind: input, shape index: {}]
  %s2 = inlined_call_operand.vmem [shape: f32[2,1,8], index: 2, kind: input, shape index: {}]
  %s3 = inlined_call_operand.vmem [shape: f32[2,1,8], index: 3, kind: input, shape index: {}]
  %s4 = inlined_call_operand.vmem [shape: f32[8,8], index: 4, kind: input, shape index: {}]
  %s5 = inlined_call_operand.vmem [shape: f32[32,96], index: 5, kind: input, shape index: {}]
  %s6 = inlined_call_operand.vmem [shape: f32[1,96], index: 6, kind: input, shape index: {}]
  %s7 = inlined_call_operand.vmem [shape: f32[32,32], index: 7, kind: input, shape index: {}]
  %s8 = inlined_call_operand.vmem [shape: f32[1,32], index: 8, kind: input, shape index: {}]
  %s9 = inlined_call_operand.vmem [shape: f32[32,32], index: 9, kind: input, shape index: {}]
  %s10 = inlined_call_operand.vmem [shape: f32[1,32], index: 10, kind: input, shape index: {}]
  %s11 = inlined_call_operand.vmem [shape: f32[32,64], index: 11, kind: input, shape index: {}]
  %s12 = inlined_call_operand.vmem [shape: f32[1,64], index: 12, kind: input, shape index: {}]
  %s13 = inlined_call_operand.vmem [shape: f32[32,32], index: 13, kind: input, shape index: {}]
  %s14 = inlined_call_operand.vmem [shape: f32[1,32], index: 14, kind: input, shape index: {}]
  %s15 = inlined_call_operand.vmem [shape: f32[6,32], index: 15, kind: input, shape index: {}]
  %s16 = inlined_call_operand.vmem [shape: f32[32,128], index: 16, kind: input, shape index: {}]
  %s17 = inlined_call_operand.vmem [shape: f32[1,128], index: 17, kind: input, shape index: {}]
  %s18 = inlined_call_operand.vmem [shape: f32[128,32], index: 18, kind: input, shape index: {}]
  %s19 = inlined_call_operand.vmem [shape: f32[1,32], index: 19, kind: input, shape index: {}]
  %s20 = inlined_call_operand.vmem [shape: f32[2,8,32], index: 20, kind: output, shape index: {}]
  %s21 = sld [smem:[#allocation0]]
  $region113: #{trajectory_decoder_forward.3} parent=0
    _
  %s23 = ssub.s32 1, %s21
  %s24 = scalar_select 0, %s23, %s21
  loop: start=0, step=1, limit=4
  $region2: #{trajectory_decoder_forward.3} parent=0 // loop_pre_header
    _
  $region3: #{trajectory_decoder_forward.3} parent=0 // loop_header
    %s26 = sphi 0, %s30
    %p27 = scmp.ge.s32.totalorder %s26, 4
    %s36 = sphi 0, %s38
    %s39 = sphi 0, %s36
    %s40 = sphi 0, %s39
    %s56 = sphi 0, %s40
    %s62 = sphi 0, %s64
    %s65 = sphi 0, %s62
    %s66 = sphi 0, %s65
    %s82 = sphi 0, %s66
    %s88 = sphi 0, %s90
    %s91 = sphi 0, %s88
    %s92 = sphi 0, %s91
    %s108 = sphi 0, %s92
    %s114 = sphi 0, %s116
    %s117 = sphi 0, %s114
    %s118 = sphi 0, %s117
    %s134 = sphi 0, %s118
    %s138 = sphi 0, %s138
    %s140 = sphi 0, %s138
    %s141 = sphi 0, %s140
    %s155 = sphi 0, %s141
    %s159 = sphi 0, %s159
    %s161 = sphi 0, %s159
    %s162 = sphi 0, %s161
    %s176 = sphi 0, %s162
    %s180 = sphi 0, %s180
    %s182 = sphi 0, %s180
    %s183 = sphi 0, %s182
    %s197 = sphi 0, %s183
    %s201 = sphi 0, %s201
    %s203 = sphi 0, %s201
    %s204 = sphi 0, %s203
    %s218 = sphi 0, %s204
    %s222 = sphi 0, %s222
    %s224 = sphi 0, %s222
    %s225 = sphi 0, %s224
    %s239 = sphi 0, %s225
    %s243 = sphi 0, %s243
    %s245 = sphi 0, %s243
    %s246 = sphi 0, %s245
    %s260 = sphi 0, %s246
    %s264 = sphi 0, %s264
    %s266 = sphi 0, %s264
    %s267 = sphi 0, %s266
    %s281 = sphi 0, %s267
    %s285 = sphi 0, %s285
    %s287 = sphi 0, %s285
    %s288 = sphi 0, %s287
    %s302 = sphi 0, %s288
    %s306 = sphi 0, %s306
    %s308 = sphi 0, %s306
    %s309 = sphi 0, %s308
    %s323 = sphi 0, %s309
    %s327 = sphi 0, %s327
    %s329 = sphi 0, %s327
    %s330 = sphi 0, %s329
    %s344 = sphi 0, %s330
    %s348 = sphi 0, %s348
    %s350 = sphi 0, %s348
    %s351 = sphi 0, %s350
    %s365 = sphi 0, %s351
    %s369 = sphi 0, %s369
    %s371 = sphi 0, %s369
    %s372 = sphi 0, %s371
    %s386 = sphi 0, %s372
    %s390 = sphi 0, %s390
    %s392 = sphi 0, %s390
    %s393 = sphi 0, %s392
    %s407 = sphi 0, %s393
    %s411 = sphi 0, %s411
    %s413 = sphi 0, %s411
    %s414 = sphi 0, %s413
    %s428 = sphi 0, %s414
    %s432 = sphi 0, %s432
    %s434 = sphi 0, %s432
    %s435 = sphi 0, %s434
    %s449 = sphi 0, %s435
    %s453 = sphi 0, %s453
    %s455 = sphi 0, %s453
    %s456 = sphi 0, %s455
    %s470 = sphi 0, %s456
    %s476 = sphi 0, %s478
    %s479 = sphi 0, %s476
    %s480 = sphi 0, %s479
    %s496 = sphi 0, %s480
  $region4: #{trajectory_decoder_forward.3} parent=0 // loop_header_branch
    %29 = sbr.rel (%p27) target = $region8
  $region5: #{trajectory_decoder_forward.3} parent=0 // loop_body
    %s31 = ssub.s32 %s26, 1
    %s32 = ssub.s32 %s26, 2
    %s33 = sadd.s32 %s26, 1
    %s34 = ssub.s32 %s26, %s33
    %p35 = scmp.eq.s32.totalorder %s34, 0
    %s37 = sadd.s32 %s36, 1
    %s38 = scalar_select %p35, %s36, %s37
    %p41 = pneg %p35
    %p42 = scmp.eq.s32.totalorder %s26, 1
    %p43 = por %p41, %p42
    %p44 = scmp.ne.s32.totalorder %s36, %s39
    %p45 = scmp.eq.s32.totalorder %s26, 0
    %p46 = por %p44, %p45
    %p47 = scmp.ne.s32.totalorder %s36, %s39
    %p48 = scmp.eq.s32.totalorder %s31, 1
    %p49 = por %p47, %p48
    %p50 = scmp.ne.s32.totalorder %s39, %s40
    %p51 = scmp.eq.s32.totalorder %s31, 0
    %p52 = por %p50, %p51
    %p53 = scmp.ne.s32.totalorder %s39, %s40
    %p54 = scmp.eq.s32.totalorder %s32, 1
    %p55 = por %p53, %p54
    %p57 = scmp.ne.s32.totalorder %s40, %s56
    %p58 = scmp.eq.s32.totalorder %s32, 0
    %p59 = por %p57, %p58
    %s60 = ssub.s32 %s26, %s33
    %p61 = scmp.eq.s32.totalorder %s60, 0
    %s63 = sadd.s32 %s62, 1
    %s64 = scalar_select %p61, %s62, %s63
    %p67 = pneg %p61
    %p68 = scmp.eq.s32.totalorder %s26, 1
    %p69 = por %p67, %p68
    %p70 = scmp.ne.s32.totalorder %s62, %s65
    %p71 = scmp.eq.s32.totalorder %s26, 0
    %p72 = por %p70, %p71
    %p73 = scmp.ne.s32.totalorder %s62, %s65
    %p74 = scmp.eq.s32.totalorder %s31, 1
    %p75 = por %p73, %p74
    %p76 = scmp.ne.s32.totalorder %s65, %s66
    %p77 = scmp.eq.s32.totalorder %s31, 0
    %p78 = por %p76, %p77
    %p79 = scmp.ne.s32.totalorder %s65, %s66
    %p80 = scmp.eq.s32.totalorder %s32, 1
    %p81 = por %p79, %p80
    %p83 = scmp.ne.s32.totalorder %s66, %s82
    %p84 = scmp.eq.s32.totalorder %s32, 0
    %p85 = por %p83, %p84
    %s86 = ssub.s32 %s26, %s33
    %p87 = scmp.eq.s32.totalorder %s86, 0
    %s89 = sadd.s32 %s88, 1
    %s90 = scalar_select %p87, %s88, %s89
    %p93 = pneg %p87
    %p94 = scmp.eq.s32.totalorder %s26, 1
    %p95 = por %p93, %p94
    %p96 = scmp.ne.s32.totalorder %s88, %s91
    %p97 = scmp.eq.s32.totalorder %s26, 0
    %p98 = por %p96, %p97
    %p99 = scmp.ne.s32.totalorder %s88, %s91
    %p100 = scmp.eq.s32.totalorder %s31, 1
    %p101 = por %p99, %p100
    %p102 = scmp.ne.s32.totalorder %s91, %s92
    %p103 = scmp.eq.s32.totalorder %s31, 0
    %p104 = por %p102, %p103
    %p105 = scmp.ne.s32.totalorder %s91, %s92
    %p106 = scmp.eq.s32.totalorder %s32, 1
    %p107 = por %p105, %p106
    %p109 = scmp.ne.s32.totalorder %s92, %s108
    %p110 = scmp.eq.s32.totalorder %s32, 0
    %p111 = por %p109, %p110
    %s112 = ssub.s32 %s26, %s33
    %p113 = scmp.eq.s32.totalorder %s112, 0
    %s115 = sadd.s32 %s114, 1
    %s116 = scalar_select %p113, %s114, %s115
    %p119 = pneg %p113
    %p120 = scmp.eq.s32.totalorder %s26, 1
    %p121 = por %p119, %p120
    %p122 = scmp.ne.s32.totalorder %s114, %s117
    %p123 = scmp.eq.s32.totalorder %s26, 0
    %p124 = por %p122, %p123
    %p125 = scmp.ne.s32.totalorder %s114, %s117
    %p126 = scmp.eq.s32.totalorder %s31, 1
    %p127 = por %p125, %p126
    %p128 = scmp.ne.s32.totalorder %s117, %s118
    %p129 = scmp.eq.s32.totalorder %s31, 0
    %p130 = por %p128, %p129
    %p131 = scmp.ne.s32.totalorder %s117, %s118
    %p132 = scmp.eq.s32.totalorder %s32, 1
    %p133 = por %p131, %p132
    %p135 = scmp.ne.s32.totalorder %s118, %s134
    %p136 = scmp.eq.s32.totalorder %s32, 0
    %p137 = por %p135, %p136
    %s139 = sadd.s32 %s138, 1
    %p142 = scmp.eq.s32.totalorder %s26, 1
    %p143 = scmp.ne.s32.totalorder %s138, %s140
    %p144 = scmp.eq.s32.totalorder %s26, 0
    %p145 = por %p143, %p144
    %p146 = scmp.ne.s32.totalorder %s138, %s140
    %p147 = scmp.eq.s32.totalorder %s31, 1
    %p148 = por %p146, %p147
    %p149 = scmp.ne.s32.totalorder %s140, %s141
    %p150 = scmp.eq.s32.totalorder %s31, 0
    %p151 = por %p149, %p150
    %p152 = scmp.ne.s32.totalorder %s140, %s141
    %p153 = scmp.eq.s32.totalorder %s32, 1
    %p154 = por %p152, %p153
    %p156 = scmp.ne.s32.totalorder %s141, %s155
    %p157 = scmp.eq.s32.totalorder %s32, 0
    %p158 = por %p156, %p157
    %s160 = sadd.s32 %s159, 1
    %p163 = scmp.eq.s32.totalorder %s26, 1
    %p164 = scmp.ne.s32.totalorder %s159, %s161
    %p165 = scmp.eq.s32.totalorder %s26, 0
    %p166 = por %p164, %p165
    %p167 = scmp.ne.s32.totalorder %s159, %s161
    %p168 = scmp.eq.s32.totalorder %s31, 1
    %p169 = por %p167, %p168
    %p170 = scmp.ne.s32.totalorder %s161, %s162
    %p171 = scmp.eq.s32.totalorder %s31, 0
    %p172 = por %p170, %p171
    %p173 = scmp.ne.s32.totalorder %s161, %s162
    %p174 = scmp.eq.s32.totalorder %s32, 1
    %p175 = por %p173, %p174
    %p177 = scmp.ne.s32.totalorder %s162, %s176
    %p178 = scmp.eq.s32.totalorder %s32, 0
    %p179 = por %p177, %p178
    %s181 = sadd.s32 %s180, 1
    %p184 = scmp.eq.s32.totalorder %s26, 1
    %p185 = scmp.ne.s32.totalorder %s180, %s182
    %p186 = scmp.eq.s32.totalorder %s26, 0
    %p187 = por %p185, %p186
    %p188 = scmp.ne.s32.totalorder %s180, %s182
    %p189 = scmp.eq.s32.totalorder %s31, 1
    %p190 = por %p188, %p189
    %p191 = scmp.ne.s32.totalorder %s182, %s183
    %p192 = scmp.eq.s32.totalorder %s31, 0
    %p193 = por %p191, %p192
    %p194 = scmp.ne.s32.totalorder %s182, %s183
    %p195 = scmp.eq.s32.totalorder %s32, 1
    %p196 = por %p194, %p195
    %p198 = scmp.ne.s32.totalorder %s183, %s197
    %p199 = scmp.eq.s32.totalorder %s32, 0
    %p200 = por %p198, %p199
    %s202 = sadd.s32 %s201, 1
    %p205 = scmp.eq.s32.totalorder %s26, 1
    %p206 = scmp.ne.s32.totalorder %s201, %s203
    %p207 = scmp.eq.s32.totalorder %s26, 0
    %p208 = por %p206, %p207
    %p209 = scmp.ne.s32.totalorder %s201, %s203
    %p210 = scmp.eq.s32.totalorder %s31, 1
    %p211 = por %p209, %p210
    %p212 = scmp.ne.s32.totalorder %s203, %s204
    %p213 = scmp.eq.s32.totalorder %s31, 0
    %p214 = por %p212, %p213
    %p215 = scmp.ne.s32.totalorder %s203, %s204
    %p216 = scmp.eq.s32.totalorder %s32, 1
    %p217 = por %p215, %p216
    %p219 = scmp.ne.s32.totalorder %s204, %s218
    %p220 = scmp.eq.s32.totalorder %s32, 0
    %p221 = por %p219, %p220
    %s223 = sadd.s32 %s222, 1
    %p226 = scmp.eq.s32.totalorder %s26, 1
    %p227 = scmp.ne.s32.totalorder %s222, %s224
    %p228 = scmp.eq.s32.totalorder %s26, 0
    %p229 = por %p227, %p228
    %p230 = scmp.ne.s32.totalorder %s222, %s224
    %p231 = scmp.eq.s32.totalorder %s31, 1
    %p232 = por %p230, %p231
    %p233 = scmp.ne.s32.totalorder %s224, %s225
    %p234 = scmp.eq.s32.totalorder %s31, 0
    %p235 = por %p233, %p234
    %p236 = scmp.ne.s32.totalorder %s224, %s225
    %p237 = scmp.eq.s32.totalorder %s32, 1
    %p238 = por %p236, %p237
    %p240 = scmp.ne.s32.totalorder %s225, %s239
    %p241 = scmp.eq.s32.totalorder %s32, 0
    %p242 = por %p240, %p241
    %s244 = sadd.s32 %s243, 1
    %p247 = scmp.eq.s32.totalorder %s26, 1
    %p248 = scmp.ne.s32.totalorder %s243, %s245
    %p249 = scmp.eq.s32.totalorder %s26, 0
    %p250 = por %p248, %p249
    %p251 = scmp.ne.s32.totalorder %s243, %s245
    %p252 = scmp.eq.s32.totalorder %s31, 1
    %p253 = por %p251, %p252
    %p254 = scmp.ne.s32.totalorder %s245, %s246
    %p255 = scmp.eq.s32.totalorder %s31, 0
    %p256 = por %p254, %p255
    %p257 = scmp.ne.s32.totalorder %s245, %s246
    %p258 = scmp.eq.s32.totalorder %s32, 1
    %p259 = por %p257, %p258
    %p261 = scmp.ne.s32.totalorder %s246, %s260
    %p262 = scmp.eq.s32.totalorder %s32, 0
    %p263 = por %p261, %p262
    %s265 = sadd.s32 %s264, 1
    %p268 = scmp.eq.s32.totalorder %s26, 1
    %p269 = scmp.ne.s32.totalorder %s264, %s266
    %p270 = scmp.eq.s32.totalorder %s26, 0
    %p271 = por %p269, %p270
    %p272 = scmp.ne.s32.totalorder %s264, %s266
    %p273 = scmp.eq.s32.totalorder %s31, 1
    %p274 = por %p272, %p273
    %p275 = scmp.ne.s32.totalorder %s266, %s267
    %p276 = scmp.eq.s32.totalorder %s31, 0
    %p277 = por %p275, %p276
    %p278 = scmp.ne.s32.totalorder %s266, %s267
    %p279 = scmp.eq.s32.totalorder %s32, 1
    %p280 = por %p278, %p279
    %p282 = scmp.ne.s32.totalorder %s267, %s281
    %p283 = scmp.eq.s32.totalorder %s32, 0
    %p284 = por %p282, %p283
    %s286 = sadd.s32 %s285, 1
    %p289 = scmp.eq.s32.totalorder %s26, 1
    %p290 = scmp.ne.s32.totalorder %s285, %s287
    %p291 = scmp.eq.s32.totalorder %s26, 0
    %p292 = por %p290, %p291
    %p293 = scmp.ne.s32.totalorder %s285, %s287
    %p294 = scmp.eq.s32.totalorder %s31, 1
    %p295 = por %p293, %p294
    %p296 = scmp.ne.s32.totalorder %s287, %s288
    %p297 = scmp.eq.s32.totalorder %s31, 0
    %p298 = por %p296, %p297
    %p299 = scmp.ne.s32.totalorder %s287, %s288
    %p300 = scmp.eq.s32.totalorder %s32, 1
    %p301 = por %p299, %p300
    %p303 = scmp.ne.s32.totalorder %s288, %s302
    %p304 = scmp.eq.s32.totalorder %s32, 0
    %p305 = por %p303, %p304
    %s307 = sadd.s32 %s306, 1
    %p310 = scmp.eq.s32.totalorder %s26, 1
    %p311 = scmp.ne.s32.totalorder %s306, %s308
    %p312 = scmp.eq.s32.totalorder %s26, 0
    %p313 = por %p311, %p312
    %p314 = scmp.ne.s32.totalorder %s306, %s308
    %p315 = scmp.eq.s32.totalorder %s31, 1
    %p316 = por %p314, %p315
    %p317 = scmp.ne.s32.totalorder %s308, %s309
    %p318 = scmp.eq.s32.totalorder %s31, 0
    %p319 = por %p317, %p318
    %p320 = scmp.ne.s32.totalorder %s308, %s309
    %p321 = scmp.eq.s32.totalorder %s32, 1
    %p322 = por %p320, %p321
    %p324 = scmp.ne.s32.totalorder %s309, %s323
    %p325 = scmp.eq.s32.totalorder %s32, 0
    %p326 = por %p324, %p325
    %s328 = sadd.s32 %s327, 1
    %p331 = scmp.eq.s32.totalorder %s26, 1
    %p332 = scmp.ne.s32.totalorder %s327, %s329
    %p333 = scmp.eq.s32.totalorder %s26, 0
    %p334 = por %p332, %p333
    %p335 = scmp.ne.s32.totalorder %s327, %s329
    %p336 = scmp.eq.s32.totalorder %s31, 1
    %p337 = por %p335, %p336
    %p338 = scmp.ne.s32.totalorder %s329, %s330
    %p339 = scmp.eq.s32.totalorder %s31, 0
    %p340 = por %p338, %p339
    %p341 = scmp.ne.s32.totalorder %s329, %s330
    %p342 = scmp.eq.s32.totalorder %s32, 1
    %p343 = por %p341, %p342
    %p345 = scmp.ne.s32.totalorder %s330, %s344
    %p346 = scmp.eq.s32.totalorder %s32, 0
    %p347 = por %p345, %p346
    %s349 = sadd.s32 %s348, 1
    %p352 = scmp.eq.s32.totalorder %s26, 1
    %p353 = scmp.ne.s32.totalorder %s348, %s350
    %p354 = scmp.eq.s32.totalorder %s26, 0
    %p355 = por %p353, %p354
    %p356 = scmp.ne.s32.totalorder %s348, %s350
    %p357 = scmp.eq.s32.totalorder %s31, 1
    %p358 = por %p356, %p357
    %p359 = scmp.ne.s32.totalorder %s350, %s351
    %p360 = scmp.eq.s32.totalorder %s31, 0
    %p361 = por %p359, %p360
    %p362 = scmp.ne.s32.totalorder %s350, %s351
    %p363 = scmp.eq.s32.totalorder %s32, 1
    %p364 = por %p362, %p363
    %p366 = scmp.ne.s32.totalorder %s351, %s365
    %p367 = scmp.eq.s32.totalorder %s32, 0
    %p368 = por %p366, %p367
    %s370 = sadd.s32 %s369, 1
    %p373 = scmp.eq.s32.totalorder %s26, 1
    %p374 = scmp.ne.s32.totalorder %s369, %s371
    %p375 = scmp.eq.s32.totalorder %s26, 0
    %p376 = por %p374, %p375
    %p377 = scmp.ne.s32.totalorder %s369, %s371
    %p378 = scmp.eq.s32.totalorder %s31, 1
    %p379 = por %p377, %p378
    %p380 = scmp.ne.s32.totalorder %s371, %s372
    %p381 = scmp.eq.s32.totalorder %s31, 0
    %p382 = por %p380, %p381
    %p383 = scmp.ne.s32.totalorder %s371, %s372
    %p384 = scmp.eq.s32.totalorder %s32, 1
    %p385 = por %p383, %p384
    %p387 = scmp.ne.s32.totalorder %s372, %s386
    %p388 = scmp.eq.s32.totalorder %s32, 0
    %p389 = por %p387, %p388
    %s391 = sadd.s32 %s390, 1
    %p394 = scmp.eq.s32.totalorder %s26, 1
    %p395 = scmp.ne.s32.totalorder %s390, %s392
    %p396 = scmp.eq.s32.totalorder %s26, 0
    %p397 = por %p395, %p396
    %p398 = scmp.ne.s32.totalorder %s390, %s392
    %p399 = scmp.eq.s32.totalorder %s31, 1
    %p400 = por %p398, %p399
    %p401 = scmp.ne.s32.totalorder %s392, %s393
    %p402 = scmp.eq.s32.totalorder %s31, 0
    %p403 = por %p401, %p402
    %p404 = scmp.ne.s32.totalorder %s392, %s393
    %p405 = scmp.eq.s32.totalorder %s32, 1
    %p406 = por %p404, %p405
    %p408 = scmp.ne.s32.totalorder %s393, %s407
    %p409 = scmp.eq.s32.totalorder %s32, 0
    %p410 = por %p408, %p409
    %s412 = sadd.s32 %s411, 1
    %p415 = scmp.eq.s32.totalorder %s26, 1
    %p416 = scmp.ne.s32.totalorder %s411, %s413
    %p417 = scmp.eq.s32.totalorder %s26, 0
    %p418 = por %p416, %p417
    %p419 = scmp.ne.s32.totalorder %s411, %s413
    %p420 = scmp.eq.s32.totalorder %s31, 1
    %p421 = por %p419, %p420
    %p422 = scmp.ne.s32.totalorder %s413, %s414
    %p423 = scmp.eq.s32.totalorder %s31, 0
    %p424 = por %p422, %p423
    %p425 = scmp.ne.s32.totalorder %s413, %s414
    %p426 = scmp.eq.s32.totalorder %s32, 1
    %p427 = por %p425, %p426
    %p429 = scmp.ne.s32.totalorder %s414, %s428
    %p430 = scmp.eq.s32.totalorder %s32, 0
    %p431 = por %p429, %p430
    %s433 = sadd.s32 %s432, 1
    %p436 = scmp.eq.s32.totalorder %s26, 1
    %p437 = scmp.ne.s32.totalorder %s432, %s434
    %p438 = scmp.eq.s32.totalorder %s26, 0
    %p439 = por %p437, %p438
    %p440 = scmp.ne.s32.totalorder %s432, %s434
    %p441 = scmp.eq.s32.totalorder %s31, 1
    %p442 = por %p440, %p441
    %p443 = scmp.ne.s32.totalorder %s434, %s435
    %p444 = scmp.eq.s32.totalorder %s31, 0
    %p445 = por %p443, %p444
    %p446 = scmp.ne.s32.totalorder %s434, %s435
    %p447 = scmp.eq.s32.totalorder %s32, 1
    %p448 = por %p446, %p447
    %p450 = scmp.ne.s32.totalorder %s435, %s449
    %p451 = scmp.eq.s32.totalorder %s32, 0
    %p452 = por %p450, %p451
    %s454 = sadd.s32 %s453, 1
    %p457 = scmp.eq.s32.totalorder %s26, 1
    %p458 = scmp.ne.s32.totalorder %s453, %s455
    %p459 = scmp.eq.s32.totalorder %s26, 0
    %p460 = por %p458, %p459
    %p461 = scmp.ne.s32.totalorder %s453, %s455
    %p462 = scmp.eq.s32.totalorder %s31, 1
    %p463 = por %p461, %p462
    %p464 = scmp.ne.s32.totalorder %s455, %s456
    %p465 = scmp.eq.s32.totalorder %s31, 0
    %p466 = por %p464, %p465
    %p467 = scmp.ne.s32.totalorder %s455, %s456
    %p468 = scmp.eq.s32.totalorder %s32, 1
    %p469 = por %p467, %p468
    %p471 = scmp.ne.s32.totalorder %s456, %s470
    %p472 = scmp.eq.s32.totalorder %s32, 0
    %p473 = por %p471, %p472
    %s474 = ssub.s32 %s26, %s33
    %p475 = scmp.eq.s32.totalorder %s474, 0
    %s477 = sadd.s32 %s476, 1
    %s478 = scalar_select %p475, %s476, %s477
    %p481 = pneg %p475
    %p482 = scmp.eq.s32.totalorder %s26, 1
    %p483 = por %p481, %p482
    %p484 = scmp.ne.s32.totalorder %s476, %s479
    %p485 = scmp.eq.s32.totalorder %s26, 0
    %p486 = por %p484, %p485
    %p487 = scmp.ne.s32.totalorder %s476, %s479
    %p488 = scmp.eq.s32.totalorder %s31, 1
    %p489 = por %p487, %p488
    %p490 = scmp.ne.s32.totalorder %s479, %s480
    %p491 = scmp.eq.s32.totalorder %s31, 0
    %p492 = por %p490, %p491
    %p493 = scmp.ne.s32.totalorder %s479, %s480
    %p494 = scmp.eq.s32.totalorder %s32, 1
    %p495 = por %p493, %p494
    %p497 = scmp.ne.s32.totalorder %s480, %s496
    %p498 = scmp.eq.s32.totalorder %s32, 0
    %p499 = por %p497, %p498
    %p500 = scmp.le.s32.totalorder 1, %s26
    %p501 = scmp.lt.s32.totalorder %s26, 3
    %p502 = pnand %p500, %p501
    %p503 = pneg %p502
    // Predicated region
    $region9: #{trajectory_decoder_forward.3} parent=5 // pred_check
      _
    $region10: #{trajectory_decoder_forward.3} parent=5 // pred_check_branch
      %505 = sbr.rel (%p502) target = $region12
    $region11: #{trajectory_decoder_forward.3} parent=5 // pred_region
      %s506 = ssub.s32 %s26, 1
      // Predicated region
      $region13: #{trajectory_decoder_forward.3} parent=11 // pred_check
        %p507 = pneg %p151
      $region14: #{trajectory_decoder_forward.3} parent=11 // pred_check_branch
        %509 = sbr.rel (%p507) target = $region16
      $region15: #{trajectory_decoder_forward.3} parent=11 // pred_region
        _
      $region16: #{trajectory_decoder_forward.3} parent=11 // pred_fallthru
        _
      // Predicated region
      $region17: #{trajectory_decoder_forward.3} parent=11 // pred_check
        %p510 = pneg %p172
      $region18: #{trajectory_decoder_forward.3} parent=11 // pred_check_branch
        %512 = sbr.rel (%p510) target = $region20
      $region19: #{trajectory_decoder_forward.3} parent=11 // pred_region
        _
      $region20: #{trajectory_decoder_forward.3} parent=11 // pred_fallthru
        _
      // Predicated region
      $region21: #{trajectory_decoder_forward.3} parent=11 // pred_check
        %p513 = pneg %p193
      $region22: #{trajectory_decoder_forward.3} parent=11 // pred_check_branch
        %515 = sbr.rel (%p513) target = $region24
      $region23: #{trajectory_decoder_forward.3} parent=11 // pred_region
        _
      $region24: #{trajectory_decoder_forward.3} parent=11 // pred_fallthru
        _
      // Predicated region
      $region25: #{trajectory_decoder_forward.3} parent=11 // pred_check
        %p516 = pneg %p214
      $region26: #{trajectory_decoder_forward.3} parent=11 // pred_check_branch
        %518 = sbr.rel (%p516) target = $region28
      $region27: #{trajectory_decoder_forward.3} parent=11 // pred_region
        _
      $region28: #{trajectory_decoder_forward.3} parent=11 // pred_fallthru
        _
      // Predicated region
      $region29: #{trajectory_decoder_forward.3} parent=11 // pred_check
        %p519 = pneg %p235
      $region30: #{trajectory_decoder_forward.3} parent=11 // pred_check_branch
        %521 = sbr.rel (%p519) target = $region32
      $region31: #{trajectory_decoder_forward.3} parent=11 // pred_region
        _
      $region32: #{trajectory_decoder_forward.3} parent=11 // pred_fallthru
        _
      // Predicated region
      $region33: #{trajectory_decoder_forward.3} parent=11 // pred_check
        %p522 = pneg %p256
      $region34: #{trajectory_decoder_forward.3} parent=11 // pred_check_branch
        %524 = sbr.rel (%p522) target = $region36
      $region35: #{trajectory_decoder_forward.3} parent=11 // pred_region
        _
      $region36: #{trajectory_decoder_forward.3} parent=11 // pred_fallthru
        _
      // Predicated region
      $region37: #{trajectory_decoder_forward.3} parent=11 // pred_check
        %p525 = pneg %p277
      $region38: #{trajectory_decoder_forward.3} parent=11 // pred_check_branch
        %527 = sbr.rel (%p525) target = $region40
      $region39: #{trajectory_decoder_forward.3} parent=11 // pred_region
        _
      $region40: #{trajectory_decoder_forward.3} parent=11 // pred_fallthru
        _
      // Predicated region
      $region41: #{trajectory_decoder_forward.3} parent=11 // pred_check
        %p528 = pneg %p298
      $region42: #{trajectory_decoder_forward.3} parent=11 // pred_check_branch
        %530 = sbr.rel (%p528) target = $region44
      $region43: #{trajectory_decoder_forward.3} parent=11 // pred_region
        _
      $region44: #{trajectory_decoder_forward.3} parent=11 // pred_fallthru
        _
      // Predicated region
      $region45: #{trajectory_decoder_forward.3} parent=11 // pred_check
        %p531 = pneg %p319
      $region46: #{trajectory_decoder_forward.3} parent=11 // pred_check_branch
        %533 = sbr.rel (%p531) target = $region48
      $region47: #{trajectory_decoder_forward.3} parent=11 // pred_region
        _
      $region48: #{trajectory_decoder_forward.3} parent=11 // pred_fallthru
        _
      // Predicated region
      $region49: #{trajectory_decoder_forward.3} parent=11 // pred_check
        %p534 = pneg %p340
      $region50: #{trajectory_decoder_forward.3} parent=11 // pred_check_branch
        %536 = sbr.rel (%p534) target = $region52
      $region51: #{trajectory_decoder_forward.3} parent=11 // pred_region
        _
      $region52: #{trajectory_decoder_forward.3} parent=11 // pred_fallthru
        _
      // Predicated region
      $region53: #{trajectory_decoder_forward.3} parent=11 // pred_check
        %p537 = pneg %p361
      $region54: #{trajectory_decoder_forward.3} parent=11 // pred_check_branch
        %539 = sbr.rel (%p537) target = $region56
      $region55: #{trajectory_decoder_forward.3} parent=11 // pred_region
        _
      $region56: #{trajectory_decoder_forward.3} parent=11 // pred_fallthru
        _
      // Predicated region
      $region57: #{trajectory_decoder_forward.3} parent=11 // pred_check
        %p540 = pneg %p382
      $region58: #{trajectory_decoder_forward.3} parent=11 // pred_check_branch
        %542 = sbr.rel (%p540) target = $region60
      $region59: #{trajectory_decoder_forward.3} parent=11 // pred_region
        _
      $region60: #{trajectory_decoder_forward.3} parent=11 // pred_fallthru
        _
      // Predicated region
      $region61: #{trajectory_decoder_forward.3} parent=11 // pred_check
        %p543 = pneg %p403
      $region62: #{trajectory_decoder_forward.3} parent=11 // pred_check_branch
        %545 = sbr.rel (%p543) target = $region64
      $region63: #{trajectory_decoder_forward.3} parent=11 // pred_region
        _
      $region64: #{trajectory_decoder_forward.3} parent=11 // pred_fallthru
        _
      // Predicated region
      $region65: #{trajectory_decoder_forward.3} parent=11 // pred_check
        %p546 = pneg %p424
      $region66: #{trajectory_decoder_forward.3} parent=11 // pred_check_branch
        %548 = sbr.rel (%p546) target = $region68
      $region67: #{trajectory_decoder_forward.3} parent=11 // pred_region
        _
      $region68: #{trajectory_decoder_forward.3} parent=11 // pred_fallthru
        _
      // Predicated region
      $region69: #{trajectory_decoder_forward.3} parent=11 // pred_check
        %p549 = pneg %p445
      $region70: #{trajectory_decoder_forward.3} parent=11 // pred_check_branch
        %551 = sbr.rel (%p549) target = $region72
      $region71: #{trajectory_decoder_forward.3} parent=11 // pred_region
        _
      $region72: #{trajectory_decoder_forward.3} parent=11 // pred_fallthru
        _
      // Predicated region
      $region73: #{trajectory_decoder_forward.3} parent=11 // pred_check
        %p552 = pneg %p466
      $region74: #{trajectory_decoder_forward.3} parent=11 // pred_check_branch
        %554 = sbr.rel (%p552) target = $region76
      $region75: #{trajectory_decoder_forward.3} parent=11 // pred_region
        _
      $region76: #{trajectory_decoder_forward.3} parent=11 // pred_fallthru
        _
    $region12: #{trajectory_decoder_forward.3} parent=5 // pred_fallthru
      _
    %p555 = scmp.lt.s32.totalorder %s26, 2
    // Predicated region
    $region77: #{trajectory_decoder_forward.3} parent=5 // pred_check
      %p556 = pneg %p555
    $region78: #{trajectory_decoder_forward.3} parent=5 // pred_check_branch
      %558 = sbr.rel (%p556) target = $region80
    $region79: #{trajectory_decoder_forward.3} parent=5 // pred_region
      // Predicated region
      $region81: #{trajectory_decoder_forward.3} parent=79 // pred_check
        %p559 = pneg %p46
      $region82: #{trajectory_decoder_forward.3} parent=79 // pred_check_branch
        %561 = sbr.rel (%p559) target = $region84
      $region83: #{trajectory_decoder_forward.3} parent=79 // pred_region
        %p562 = scmp.lt.s32.totalorder %s26, 1
        %s563 = scalar_select %p562, %s26, 1
        %s564 = smul.addr %s563, 8
        %s565 = scalar_lea.vmem %s0, %s564
      $region84: #{trajectory_decoder_forward.3} parent=79 // pred_fallthru
        _
      // Predicated region
      $region85: #{trajectory_decoder_forward.3} parent=79 // pred_check
        %p566 = pneg %p72
      $region86: #{trajectory_decoder_forward.3} parent=79 // pred_check_branch
        %568 = sbr.rel (%p566) target = $region88
      $region87: #{trajectory_decoder_forward.3} parent=79 // pred_region
        %p569 = scmp.lt.s32.totalorder %s26, 1
        %s570 = scalar_select %p569, %s26, 1
        %s571 = smul.addr %s570, 8
        %s572 = scalar_lea.vmem %s1, %s571
      $region88: #{trajectory_decoder_forward.3} parent=79 // pred_fallthru
        _
      // Predicated region
      $region89: #{trajectory_decoder_forward.3} parent=79 // pred_check
        %p573 = pneg %p98
      $region90: #{trajectory_decoder_forward.3} parent=79 // pred_check_branch
        %575 = sbr.rel (%p573) target = $region92
      $region91: #{trajectory_decoder_forward.3} parent=79 // pred_region
        %p576 = scmp.lt.s32.totalorder %s26, 1
        %s577 = scalar_select %p576, %s26, 1
        %s578 = scalar_lea.vmem %s2, %s577
      $region92: #{trajectory_decoder_forward.3} parent=79 // pred_fallthru
        _
      // Predicated region
      $region93: #{trajectory_decoder_forward.3} parent=79 // pred_check
        %p579 = pneg %p124
      $region94: #{trajectory_decoder_forward.3} parent=79 // pred_check_branch
        %581 = sbr.rel (%p579) target = $region96
      $region95: #{trajectory_decoder_forward.3} parent=79 // pred_region
        %p582 = scmp.lt.s32.totalorder %s26, 1
        %s583 = scalar_select %p582, %s26, 1
        %s584 = scalar_lea.vmem %s3, %s583
      $region96: #{trajectory_decoder_forward.3} parent=79 // pred_fallthru
        _
    $region80: #{trajectory_decoder_forward.3} parent=5 // pred_fallthru
      _
    %p585 = scmp.le.s32.totalorder 1, %s26
    %p586 = scmp.lt.s32.totalorder %s26, 3
    %p587 = pnand %p585, %p586
    %p588 = pneg %p587
    // Predicated region
    $region97: #{trajectory_decoder_forward.3} parent=5 // pred_check
      _
    $region98: #{trajectory_decoder_forward.3} parent=5 // pred_check_branch
      %590 = sbr.rel (%p587) target = $region100
    $region99: #{trajectory_decoder_forward.3} parent=5 // pred_region
      %s591 = ssub.s32 %s26, 1
      %p592 = scmp.lt.s32.totalorder %s31, 1
      %s593 = scalar_select %p592, %s31, 1
      %s594 = smul.addr %s593, 8
      %s595 = scalar_lea.vmem %s0, %s594
      %p596 = pneg %p52
      %p597 = pneg %p49
      %p598 = scmp.lt.s32.totalorder %s31, 1
      %s599 = scalar_select %p598, %s31, 1
      %s600 = smul.addr %s599, 8
      %s601 = scalar_lea.vmem %s1, %s600
      %p602 = pneg %p78
      %p603 = pneg %p75
      %p604 = scmp.lt.s32.totalorder %s31, 1
      %s605 = scalar_select %p604, %s31, 1
      %s606 = scalar_lea.vmem %s2, %s605
      %p607 = pneg %p104
      %p608 = pneg %p101
      %p609 = scmp.lt.s32.totalorder %s31, 1
      %s610 = scalar_select %p609, %s31, 1
      %s611 = scalar_lea.vmem %s3, %s610
      %p612 = pneg %p130
      %p613 = pneg %p127
      %p614 = pneg %p151
      %p615 = pneg %p148
      %p616 = pneg %p172
      %p617 = pneg %p169
      %p618 = pneg %p193
      %p619 = pneg %p190
      %p620 = pneg %p214
      %p621 = pneg %p211
      %p622 = pneg %p235
      %p623 = pneg %p232
      %p624 = pneg %p256
      %p625 = pneg %p253
      %p626 = pneg %p277
      %p627 = pneg %p274
      %p628 = pneg %p298
      %p629 = pneg %p295
      %p630 = pneg %p319
      %p631 = pneg %p316
      %p632 = pneg %p340
      %p633 = pneg %p337
      %p634 = pneg %p361
      %p635 = pneg %p358
      %p636 = pneg %p382
      %p637 = pneg %p379
      %p638 = pneg %p403
      %p639 = pneg %p400
      %p640 = pneg %p424
      %p641 = pneg %p421
      %p642 = pneg %p445
      %p643 = pneg %p442
      %p644 = pneg %p466
      %p645 = pneg %p463
      %p646 = pneg %p492
      %p647 = pneg %p489
      %p648 = scmp.lt.s32.totalorder %s31, 1
      %s649 = scalar_select %p648, %s31, 1
      %s650 = smul.addr %s649, 8
      %s651 = scalar_lea.vmem %s20, %s650
      %p652 = scmp.lt.s32.totalorder %s31, 1
      %s653 = scalar_select %p652, %s31, 1
      %s654 = smul.addr %s653, 8
      %s655 = scalar_lea.vmem %s0, %s654
      %p656 = scmp.lt.s32.totalorder %s31, 1
      %s657 = scalar_select %p656, %s31, 1
      %s658 = smul.addr %s657, 8
      %s659 = scalar_lea.vmem %s1, %s658
      %p660 = scmp.lt.s32.totalorder %s31, 1
      %s661 = scalar_select %p660, %s31, 1
      %s662 = scalar_lea.vmem %s2, %s661
      %p663 = scmp.lt.s32.totalorder %s31, 1
      %s664 = scalar_select %p663, %s31, 1
      %s665 = scalar_lea.vmem %s3, %s664
      %p666 = scmp.lt.s32.totalorder %s31, 1
      %s667 = scalar_select %p666, %s31, 1
      %s668 = smul.addr %s667, 8
      %s669 = scalar_lea.vmem %s20, %s668
      %v670 = vld [vmem:[%s655] sm:$0xff]
      %v671 = vld [vmem:[%s659] sm:$0xff]
      %v672 = vld [vmem:[%s4] sm:$0xff]
      %v673 = vld [vmem:[%s662] sm:$0x1]
      %v675 = vlaneseq
      %v676 = vshrl.u32 %v675, 7
      %v677 = vsub.s32 0, %v676
      %v678 = vrot.slane %v673, %v677
      %v680 = vadd.f32 %v672, %v678
      %v681 = vmul.f32 %v680, -1e+09
      %v682 = vld [vmem:[%s665] sm:$0x1]
      %v683 = vmul.f32 %v682, -1e+09
      %v684 = vld [vmem:[%s5] sm:$0xff]
      %v685 = vld [vmem:[%s5 + $0x8] sm:$0xff]
      %v686 = vld [vmem:[%s5 + $0x10] sm:$0xff]
      %v687 = vld [vmem:[%s5 + $0x18] sm:$0xff]
      %v688 = vld [vmem:[%s6] sm:$0x1]
      %v690 = vlaneseq
      %v691 = vshrl.u32 %v690, 7
      %v692 = vsub.s32 0, %v691
      %v693 = vrot.slane %v688, %v692
      %vm695 = vcmask 261120
      %v697 = vsel %vm695, %v670, 0
      %699 = vmatprep.subr.mxu0 0.0
      %700 = vmatpush1.msra.mxu0 %v684
      %701 = vmatprep.subr.mxu0 0.0
      %702 = vmatpush1.msra.mxu0 %v685
      %703 = vmatprep.subr.mxu0 0.0
      %704 = vmatpush1.msra.mxu0 %v686
      %705 = vmatprep.subr.mxu0 0.0
      %706 = vmatpush1.msra.mxu0 %v687
      %707 = vmatprep.subr.mxu0 0.0
      %708 = vmatpush1.msra.mxu0 0.0
      %709 = vmatprep.subr.mxu0 0.0
      %710 = vmatpush1.msra.mxu0 0.0
      %711 = vmatprep.subr.mxu0 0.0
      %712 = vmatpush1.msra.mxu0 0.0
      %713 = vmatprep.subr.mxu0 0.0
      %714 = vmatpush1.msra.mxu0 0.0
      %715 = vmatprep.subr.mxu0 0.0
      %716 = vmatpush1.msra.mxu0 0.0
      %717 = vmatprep.subr.mxu0 0.0
      %718 = vmatpush1.msra.mxu0 0.0
      %719 = vmatprep.subr.mxu0 0.0
      %720 = vmatpush1.msra.mxu0 0.0
      %721 = vmatprep.subr.mxu0 0.0
      %722 = vmatpush1.msra.mxu0 0.0
      %723 = vmatprep.subr.mxu0 0.0
      %724 = vmatpush1.msra.mxu0 0.0
      %725 = vmatprep.subr.mxu0 0.0
      %726 = vmatpush1.msra.mxu0 0.0
      %727 = vmatprep.subr.mxu0 0.0
      %728 = vmatpush1.msra.mxu0 0.0
      %729 = vmatprep.subr.mxu0 0.0
      %730 = vmatpush1.msra.mxu0 0.0
      %731 = vmatprep.subr.mxu0 0.0
      %732 = vmatpush1.msra.mxu0 0.0
      %733 = vmatprep.subr.mxu0 0.0
      %734 = vmatpush1.msra.mxu0 0.0
      %735 = vmatprep.subr.mxu0 0.0
      %736 = vmatpush1.msra.mxu0 0.0
      %737 = vmatprep.subr.mxu0 0.0
      %738 = vmatpush1.msra.mxu0 0.0
      %739 = vmatprep.subr.mxu0 0.0
      %740 = vmatpush1.msra.mxu0 0.0
      %741 = vmatprep.subr.mxu0 0.0
      %742 = vmatpush1.msra.mxu0 0.0
      %743 = vmatprep.subr.mxu0 0.0
      %744 = vmatpush1.msra.mxu0 0.0
      %745 = vmatprep.subr.mxu0 0.0
      %746 = vmatpush1.msra.mxu0 0.0
      %747 = vmatprep.subr.mxu0 0.0
      %748 = vmatpush1.msra.mxu0 0.0
      %749 = vmatprep.subr.mxu0 0.0
      %750 = vmatpush1.msra.mxu0 0.0
      %751 = vmatprep.subr.mxu0 0.0
      %752 = vmatpush1.msra.mxu0 0.0
      %753 = vmatprep.subr.mxu0 0.0
      %754 = vmatpush1.msra.mxu0 0.0
      %755 = vmatprep.subr.mxu0 0.0
      %756 = vmatpush1.msra.mxu0 0.0
      %757 = vmatprep.subr.mxu0 0.0
      %758 = vmatpush1.msra.mxu0 0.0
      %759 = vmatprep.subr.mxu0 0.0
      %760 = vmatpush1.msra.mxu0 0.0
      %761 = vmatprep.subr.mxu0 0.0
      %762 = vmatpush1.msra.mxu0 0.0
      %763 = vmatprep.mubr.f32.mxu0 0.0
      %764 = vmatmul.mubr.f32.gmra.mrb[0].mxu0 %v697
      %v765 = vpop.f32.mrb[0].mxu0
      %v766 = vadd.f32 %v693, %v765
      %v767 = vpop.f32.mrb[0].mxu0
      %768 = vdwg.mxu0
      %770 = vrot.lane.b32.xlu0 %v766, 96
      %v771 = vpop.permute.xlu0 %770
      %vm772 = vcmask 64512
      %v773 = vsel %vm772, %v766, 0
      %v775 = vsel %vm772, %v771, 0
      %777 = vmatprep.subr.mxu0 0.0
      %778 = vmatpush1.xpose.msra.mxu0 %v775
      %779 = vmatprep.subr.mxu0 0.0
      %780 = vmatpush1.xpose.msra.mxu0 0.0
      %781 = vmatprep.subr.mxu0 0.0
      %782 = vmatpush1.xpose.msra.mxu0 0.0
      %783 = vmatprep.subr.mxu0 0.0
      %784 = vmatpush1.xpose.msra.mxu0 0.0
      %785 = vmatprep.subr.mxu0 0.0
      %786 = vmatpush1.xpose.msra.mxu0 0.0
      %787 = vmatprep.subr.mxu0 0.0
      %788 = vmatpush1.xpose.msra.mxu0 0.0
      %789 = vmatprep.subr.mxu0 0.0
      %790 = vmatpush1.xpose.msra.mxu0 0.0
      %791 = vmatprep.subr.mxu0 0.0
      %792 = vmatpush1.xpose.msra.mxu0 0.0
      %793 = vmatprep.subr.mxu0 0.0
      %794 = vmatpush1.xpose.msra.mxu0 0.0
      %795 = vmatprep.subr.mxu0 0.0
      %796 = vmatpush1.xpose.msra.mxu0 0.0
      %797 = vmatprep.subr.mxu0 0.0
      %798 = vmatpush1.xpose.msra.mxu0 0.0
      %799 = vmatprep.subr.mxu0 0.0
      %800 = vmatpush1.xpose.msra.mxu0 0.0
      %801 = vmatprep.subr.mxu0 0.0
      %802 = vmatpush1.xpose.msra.mxu0 0.0
      %803 = vmatprep.subr.mxu0 0.0
      %804 = vmatpush1.xpose.msra.mxu0 0.0
      %805 = vmatprep.subr.mxu0 0.0
      %806 = vmatpush1.xpose.msra.mxu0 0.0
      %807 = vmatprep.subr.mxu0 0.0
      %808 = vmatpush1.xpose.msra.mxu0 0.0
      %809 = vmatprep.subr.mxu0 0.0
      %810 = vmatpush1.xpose.msra.mxu0 0.0
      %811 = vmatprep.subr.mxu0 0.0
      %812 = vmatpush1.xpose.msra.mxu0 0.0
      %813 = vmatprep.subr.mxu0 0.0
      %814 = vmatpush1.xpose.msra.mxu0 0.0
      %815 = vmatprep.subr.mxu0 0.0
      %816 = vmatpush1.xpose.msra.mxu0 0.0
      %817 = vmatprep.subr.mxu0 0.0
      %818 = vmatpush1.xpose.msra.mxu0 0.0
      %819 = vmatprep.subr.mxu0 0.0
      %820 = vmatpush1.xpose.msra.mxu0 0.0
      %821 = vmatprep.subr.mxu0 0.0
      %822 = vmatpush1.xpose.msra.mxu0 0.0
      %823 = vmatprep.subr.mxu0 0.0
      %824 = vmatpush1.xpose.msra.mxu0 0.0
      %825 = vmatprep.subr.mxu0 0.0
      %826 = vmatpush1.xpose.msra.mxu0 0.0
      %827 = vmatprep.subr.mxu0 0.0
      %828 = vmatpush1.xpose.msra.mxu0 0.0
      %829 = vmatprep.subr.mxu0 0.0
      %830 = vmatpush1.xpose.msra.mxu0 0.0
      %831 = vmatprep.subr.mxu0 0.0
      %832 = vmatpush1.xpose.msra.mxu0 0.0
      %833 = vmatprep.subr.mxu0 0.0
      %834 = vmatpush1.xpose.msra.mxu0 0.0
      %835 = vmatprep.subr.mxu0 0.0
      %836 = vmatpush1.xpose.msra.mxu0 0.0
      %837 = vmatprep.subr.mxu0 0.0
      %838 = vmatpush1.xpose.msra.mxu0 0.0
      %839 = vmatprep.subr.mxu0 0.0
      %840 = vmatpush1.xpose.msra.mxu0 0.0
      %841 = vmatprep.mubr.f32.mxu0 0.0
      %842 = vmatmul.mubr.f32.gmra.mrb[0].mxu0 %v773
      %v843 = vpop.f32.mrb[0].mxu0
      %v844 = vadd.f32 0.0, %v843
      %v845 = vpop.f32.mrb[0].mxu0
      %846 = vdwg.mxu0
      %v847 = vmul.f32 %v844, 0.35355338
      %v848 = vadd.f32 %v847, %v681
      %v849 = vsel %vm772, %v848, -inf
      %850 = vmax.xlane.f32.xlu0 %v849
      %v851 = vpop.xlane.xlu0 %850
      %v852 = vsub.f32 %v848, %v851
      %v853 = vmul.f32 %v852, 1.442695
      %v854 = vpow.pop %v853
      %v855 = vsel %vm772, %v854, 0.0
      %856 = vadd.xlane.f32.xlu0 %v855
      %v857 = vpop.xlane.xlu0 %856
      %v858 = vrcp.pop %v857
      %v859 = vmul.f32 %v854, %v858
      %860 = vrot.lane.b32.xlu0 %v766, 64
      %v861 = vpop.permute.xlu0 %860
      %v864 = vsel %vm772, %v859, 0
      %866 = vmatprep.subr.mxu0 0.0
      %867 = vmatpush1.msra.mxu0 %v861
      %868 = vmatprep.subr.mxu0 0.0
      %869 = vmatpush1.msra.mxu0 0.0
      %870 = vmatprep.subr.mxu0 0.0
      %871 = vmatpush1.msra.mxu0 0.0
      %872 = vmatprep.subr.mxu0 0.0
      %873 = vmatpush1.msra.mxu0 0.0
      %874 = vmatprep.subr.mxu0 0.0
      %875 = vmatpush1.msra.mxu0 0.0
      %876 = vmatprep.subr.mxu0 0.0
      %877 = vmatpush1.msra.mxu0 0.0
      %878 = vmatprep.subr.mxu0 0.0
      %879 = vmatpush1.msra.mxu0 0.0
      %880 = vmatprep.subr.mxu0 0.0
      %881 = vmatpush1.msra.mxu0 0.0
      %882 = vmatprep.subr.mxu0 0.0
      %883 = vmatpush1.msra.mxu0 0.0
      %884 = vmatprep.subr.mxu0 0.0
      %885 = vmatpush1.msra.mxu0 0.0
      %886 = vmatprep.subr.mxu0 0.0
      %887 = vmatpush1.msra.mxu0 0.0
      %888 = vmatprep.subr.mxu0 0.0
      %889 = vmatpush1.msra.mxu0 0.0
      %890 = vmatprep.subr.mxu0 0.0
      %891 = vmatpush1.msra.mxu0 0.0
      %892 = vmatprep.subr.mxu0 0.0
      %893 = vmatpush1.msra.mxu0 0.0
      %894 = vmatprep.subr.mxu0 0.0
      %895 = vmatpush1.msra.mxu0 0.0
      %896 = vmatprep.subr.mxu0 0.0
      %897 = vmatpush1.msra.mxu0 0.0
      %898 = vmatprep.subr.mxu0 0.0
      %899 = vmatpush1.msra.mxu0 0.0
      %900 = vmatprep.subr.mxu0 0.0
      %901 = vmatpush1.msra.mxu0 0.0
      %902 = vmatprep.subr.mxu0 0.0
      %903 = vmatpush1.msra.mxu0 0.0
      %904 = vmatprep.subr.mxu0 0.0
      %905 = vmatpush1.msra.mxu0 0.0
      %906 = vmatprep.subr.mxu0 0.0
      %907 = vmatpush1.msra.mxu0 0.0
      %908 = vmatprep.subr.mxu0 0.0
      %909 = vmatpush1.msra.mxu0 0.0
      %910 = vmatprep.subr.mxu0 0.0
      %911 = vmatpush1.msra.mxu0 0.0
      %912 = vmatprep.subr.mxu0 0.0
      %913 = vmatpush1.msra.mxu0 0.0
      %914 = vmatprep.subr.mxu0 0.0
      %915 = vmatpush1.msra.mxu0 0.0
      %916 = vmatprep.subr.mxu0 0.0
      %917 = vmatpush1.msra.mxu0 0.0
      %918 = vmatprep.subr.mxu0 0.0
      %919 = vmatpush1.msra.mxu0 0.0
      %920 = vmatprep.subr.mxu0 0.0
      %921 = vmatpush1.msra.mxu0 0.0
      %922 = vmatprep.subr.mxu0 0.0
      %923 = vmatpush1.msra.mxu0 0.0
      %924 = vmatprep.subr.mxu0 0.0
      %925 = vmatpush1.msra.mxu0 0.0
      %926 = vmatprep.subr.mxu0 0.0
      %927 = vmatpush1.msra.mxu0 0.0
      %928 = vmatprep.subr.mxu0 0.0
      %929 = vmatpush1.msra.mxu0 0.0
      %930 = vmatprep.mubr.f32.mxu0 0.0
      %931 = vmatmul.mubr.f32.gmra.mrb[0].mxu0 %v864
      %v932 = vpop.f32.mrb[0].mxu0
      %v933 = vadd.f32 0.0, %v932
      %v934 = vpop.f32.mrb[0].mxu0
      %935 = vdwg.mxu0
      %936 = vrot.lane.b32.xlu0 %v766, 120
      %v937 = vpop.permute.xlu0 %936
      %938 = vrot.lane.b32.xlu0 %v766, 88
      %v939 = vpop.permute.xlu0 %938
      %v940 = vsel %vm772, %v937, 0
      %v942 = vsel %vm772, %v939, 0
      %944 = vmatprep.subr.mxu0 0.0
      %945 = vmatpush1.xpose.msra.mxu0 %v942
      %946 = vmatprep.subr.mxu0 0.0
      %947 = vmatpush1.xpose.msra.mxu0 0.0
      %948 = vmatprep.subr.mxu0 0.0
      %949 = vmatpush1.xpose.msra.mxu0 0.0
      %950 = vmatprep.subr.mxu0 0.0
      %951 = vmatpush1.xpose.msra.mxu0 0.0
      %952 = vmatprep.subr.mxu0 0.0
      %953 = vmatpush1.xpose.msra.mxu0 0.0
      %954 = vmatprep.subr.mxu0 0.0
      %955 = vmatpush1.xpose.msra.mxu0 0.0
      %956 = vmatprep.subr.mxu0 0.0
      %957 = vmatpush1.xpose.msra.mxu0 0.0
      %958 = vmatprep.subr.mxu0 0.0
      %959 = vmatpush1.xpose.msra.mxu0 0.0
      %960 = vmatprep.subr.mxu0 0.0
      %961 = vmatpush1.xpose.msra.mxu0 0.0
      %962 = vmatprep.subr.mxu0 0.0
      %963 = vmatpush1.xpose.msra.mxu0 0.0
      %964 = vmatprep.subr.mxu0 0.0
      %965 = vmatpush1.xpose.msra.mxu0 0.0
      %966 = vmatprep.subr.mxu0 0.0
      %967 = vmatpush1.xpose.msra.mxu0 0.0
      %968 = vmatprep.subr.mxu0 0.0
      %969 = vmatpush1.xpose.msra.mxu0 0.0
      %970 = vmatprep.subr.mxu0 0.0
      %971 = vmatpush1.xpose.msra.mxu0 0.0
      %972 = vmatprep.subr.mxu0 0.0
      %973 = vmatpush1.xpose.msra.mxu0 0.0
      %974 = vmatprep.subr.mxu0 0.0
      %975 = vmatpush1.xpose.msra.mxu0 0.0
      %976 = vmatprep.subr.mxu0 0.0
      %977 = vmatpush1.xpose.msra.mxu0 0.0
      %978 = vmatprep.subr.mxu0 0.0
      %979 = vmatpush1.xpose.msra.mxu0 0.0
      %980 = vmatprep.subr.mxu0 0.0
      %981 = vmatpush1.xpose.msra.mxu0 0.0
      %982 = vmatprep.subr.mxu0 0.0
      %983 = vmatpush1.xpose.msra.mxu0 0.0
      %984 = vmatprep.subr.mxu0 0.0
      %985 = vmatpush1.xpose.msra.mxu0 0.0
      %986 = vmatprep.subr.mxu0 0.0
      %987 = vmatpush1.xpose.msra.mxu0 0.0
      %988 = vmatprep.subr.mxu0 0.0
      %989 = vmatpush1.xpose.msra.mxu0 0.0
      %990 = vmatprep.subr.mxu0 0.0
      %991 = vmatpush1.xpose.msra.mxu0 0.0
      %992 = vmatprep.subr.mxu0 0.0
      %993 = vmatpush1.xpose.msra.mxu0 0.0
      %994 = vmatprep.subr.mxu0 0.0
      %995 = vmatpush1.xpose.msra.mxu0 0.0
      %996 = vmatprep.subr.mxu0 0.0
      %997 = vmatpush1.xpose.msra.mxu0 0.0
      %998 = vmatprep.subr.mxu0 0.0
      %999 = vmatpush1.xpose.msra.mxu0 0.0
      %1000 = vmatprep.subr.mxu0 0.0
      %1001 = vmatpush1.xpose.msra.mxu0 0.0
      %1002 = vmatprep.subr.mxu0 0.0
      %1003 = vmatpush1.xpose.msra.mxu0 0.0
      %1004 = vmatprep.subr.mxu0 0.0
      %1005 = vmatpush1.xpose.msra.mxu0 0.0
      %1006 = vmatprep.subr.mxu0 0.0
      %1007 = vmatpush1.xpose.msra.mxu0 0.0
      %1008 = vmatprep.mubr.f32.mxu0 0.0
      %1009 = vmatmul.mubr.f32.gmra.mrb[0].mxu0 %v940
      %v1010 = vpop.f32.mrb[0].mxu0
      %v1011 = vadd.f32 0.0, %v1010
      %v1012 = vpop.f32.mrb[0].mxu0
      %1013 = vdwg.mxu0
      %v1014 = vmul.f32 %v1011, 0.35355338
      %v1015 = vadd.f32 %v1014, %v681
      %v1016 = vsel %vm772, %v1015, -inf
      %1017 = vmax.xlane.f32.xlu0 %v1016
      %v1018 = vpop.xlane.xlu0 %1017
      %v1019 = vsub.f32 %v1015, %v1018
      %v1020 = vmul.f32 %v1019, 1.442695
      %v1021 = vpow.pop %v1020
      %v1022 = vsel %vm772, %v1021, 0.0
      %1023 = vadd.xlane.f32.xlu0 %v1022
      %v1024 = vpop.xlane.xlu0 %1023
      %v1025 = vrcp.pop %v1024
      %v1026 = vmul.f32 %v1021, %v1025
      %1027 = vrot.lane.b32.xlu0 %v766, 56
      %v1028 = vpop.permute.xlu0 %1027
      %v1031 = vsel %vm772, %v1026, 0
      %1033 = vmatprep.subr.mxu0 0.0
      %1034 = vmatpush1.msra.mxu0 %v1028
      %1035 = vmatprep.subr.mxu0 0.0
      %1036 = vmatpush1.msra.mxu0 0.0
      %1037 = vmatprep.subr.mxu0 0.0
      %1038 = vmatpush1.msra.mxu0 0.0
      %1039 = vmatprep.subr.mxu0 0.0
      %1040 = vmatpush1.msra.mxu0 0.0
      %1041 = vmatprep.subr.mxu0 0.0
      %1042 = vmatpush1.msra.mxu0 0.0
      %1043 = vmatprep.subr.mxu0 0.0
      %1044 = vmatpush1.msra.mxu0 0.0
      %1045 = vmatprep.subr.mxu0 0.0
      %1046 = vmatpush1.msra.mxu0 0.0
      %1047 = vmatprep.subr.mxu0 0.0
      %1048 = vmatpush1.msra.mxu0 0.0
      %1049 = vmatprep.subr.mxu0 0.0
      %1050 = vmatpush1.msra.mxu0 0.0
      %1051 = vmatprep.subr.mxu0 0.0
      %1052 = vmatpush1.msra.mxu0 0.0
      %1053 = vmatprep.subr.mxu0 0.0
      %1054 = vmatpush1.msra.mxu0 0.0
      %1055 = vmatprep.subr.mxu0 0.0
      %1056 = vmatpush1.msra.mxu0 0.0
      %1057 = vmatprep.subr.mxu0 0.0
      %1058 = vmatpush1.msra.mxu0 0.0
      %1059 = vmatprep.subr.mxu0 0.0
      %1060 = vmatpush1.msra.mxu0 0.0
      %1061 = vmatprep.subr.mxu0 0.0
      %1062 = vmatpush1.msra.mxu0 0.0
      %1063 = vmatprep.subr.mxu0 0.0
      %1064 = vmatpush1.msra.mxu0 0.0
      %1065 = vmatprep.subr.mxu0 0.0
      %1066 = vmatpush1.msra.mxu0 0.0
      %1067 = vmatprep.subr.mxu0 0.0
      %1068 = vmatpush1.msra.mxu0 0.0
      %1069 = vmatprep.subr.mxu0 0.0
      %1070 = vmatpush1.msra.mxu0 0.0
      %1071 = vmatprep.subr.mxu0 0.0
      %1072 = vmatpush1.msra.mxu0 0.0
      %1073 = vmatprep.subr.mxu0 0.0
      %1074 = vmatpush1.msra.mxu0 0.0
      %1075 = vmatprep.subr.mxu0 0.0
      %1076 = vmatpush1.msra.mxu0 0.0
      %1077 = vmatprep.subr.mxu0 0.0
      %1078 = vmatpush1.msra.mxu0 0.0
      %1079 = vmatprep.subr.mxu0 0.0
      %1080 = vmatpush1.msra.mxu0 0.0
      %1081 = vmatprep.subr.mxu0 0.0
      %1082 = vmatpush1.msra.mxu0 0.0
      %1083 = vmatprep.subr.mxu0 0.0
      %1084 = vmatpush1.msra.mxu0 0.0
      %1085 = vmatprep.subr.mxu0 0.0
      %1086 = vmatpush1.msra.mxu0 0.0
      %1087 = vmatprep.subr.mxu0 0.0
      %1088 = vmatpush1.msra.mxu0 0.0
      %1089 = vmatprep.subr.mxu0 0.0
      %1090 = vmatpush1.msra.mxu0 0.0
      %1091 = vmatprep.subr.mxu0 0.0
      %1092 = vmatpush1.msra.mxu0 0.0
      %1093 = vmatprep.subr.mxu0 0.0
      %1094 = vmatpush1.msra.mxu0 0.0
      %1095 = vmatprep.subr.mxu0 0.0
      %1096 = vmatpush1.msra.mxu0 0.0
      %1097 = vmatprep.mubr.f32.mxu0 0.0
      %1098 = vmatmul.mubr.f32.gmra.mrb[0].mxu0 %v1031
      %v1099 = vpop.f32.mrb[0].mxu0
      %v1100 = vadd.f32 0.0, %v1099
      %v1101 = vpop.f32.mrb[0].mxu0
      %1102 = vdwg.mxu0
      %1103 = vrot.lane.b32.xlu0 %v766, 112
      %v1104 = vpop.permute.xlu0 %1103
      %1105 = vrot.lane.b32.xlu0 %v766, 80
      %v1106 = vpop.permute.xlu0 %1105
      %v1107 = vsel %vm772, %v1104, 0
      %v1109 = vsel %vm772, %v1106, 0
      %1111 = vmatprep.subr.mxu0 0.0
      %1112 = vmatpush1.xpose.msra.mxu0 %v1109
      %1113 = vmatprep.subr.mxu0 0.0
      %1114 = vmatpush1.xpose.msra.mxu0 0.0
      %1115 = vmatprep.subr.mxu0 0.0
      %1116 = vmatpush1.xpose.msra.mxu0 0.0
      %1117 = vmatprep.subr.mxu0 0.0
      %1118 = vmatpush1.xpose.msra.mxu0 0.0
      %1119 = vmatprep.subr.mxu0 0.0
      %1120 = vmatpush1.xpose.msra.mxu0 0.0
      %1121 = vmatprep.subr.mxu0 0.0
      %1122 = vmatpush1.xpose.msra.mxu0 0.0
      %1123 = vmatprep.subr.mxu0 0.0
      %1124 = vmatpush1.xpose.msra.mxu0 0.0
      %1125 = vmatprep.subr.mxu0 0.0
      %1126 = vmatpush1.xpose.msra.mxu0 0.0
      %1127 = vmatprep.subr.mxu0 0.0
      %1128 = vmatpush1.xpose.msra.mxu0 0.0
      %1129 = vmatprep.subr.mxu0 0.0
      %1130 = vmatpush1.xpose.msra.mxu0 0.0
      %1131 = vmatprep.subr.mxu0 0.0
      %1132 = vmatpush1.xpose.msra.mxu0 0.0
      %1133 = vmatprep.subr.mxu0 0.0
      %1134 = vmatpush1.xpose.msra.mxu0 0.0
      %1135 = vmatprep.subr.mxu0 0.0
      %1136 = vmatpush1.xpose.msra.mxu0 0.0
      %1137 = vmatprep.subr.mxu0 0.0
      %1138 = vmatpush1.xpose.msra.mxu0 0.0
      %1139 = vmatprep.subr.mxu0 0.0
      %1140 = vmatpush1.xpose.msra.mxu0 0.0
      %1141 = vmatprep.subr.mxu0 0.0
      %1142 = vmatpush1.xpose.msra.mxu0 0.0
      %1143 = vmatprep.subr.mxu0 0.0
      %1144 = vmatpush1.xpose.msra.mxu0 0.0
      %1145 = vmatprep.subr.mxu0 0.0
      %1146 = vmatpush1.xpose.msra.mxu0 0.0
      %1147 = vmatprep.subr.mxu0 0.0
      %1148 = vmatpush1.xpose.msra.mxu0 0.0
      %1149 = vmatprep.subr.mxu0 0.0
      %1150 = vmatpush1.xpose.msra.mxu0 0.0
      %1151 = vmatprep.subr.mxu0 0.0
      %1152 = vmatpush1.xpose.msra.mxu0 0.0
      %1153 = vmatprep.subr.mxu0 0.0
      %1154 = vmatpush1.xpose.msra.mxu0 0.0
      %1155 = vmatprep.subr.mxu0 0.0
      %1156 = vmatpush1.xpose.msra.mxu0 0.0
      %1157 = vmatprep.subr.mxu0 0.0
      %1158 = vmatpush1.xpose.msra.mxu0 0.0
      %1159 = vmatprep.subr.mxu0 0.0
      %1160 = vmatpush1.xpose.msra.mxu0 0.0
      %1161 = vmatprep.subr.mxu0 0.0
      %1162 = vmatpush1.xpose.msra.mxu0 0.0
      %1163 = vmatprep.subr.mxu0 0.0
      %1164 = vmatpush1.xpose.msra.mxu0 0.0
      %1165 = vmatprep.subr.mxu0 0.0
      %1166 = vmatpush1.xpose.msra.mxu0 0.0
      %1167 = vmatprep.subr.mxu0 0.0
      %1168 = vmatpush1.xpose.msra.mxu0 0.0
      %1169 = vmatprep.subr.mxu0 0.0
      %1170 = vmatpush1.xpose.msra.mxu0 0.0
      %1171 = vmatprep.subr.mxu0 0.0
      %1172 = vmatpush1.xpose.msra.mxu0 0.0
      %1173 = vmatprep.subr.mxu0 0.0
      %1174 = vmatpush1.xpose.msra.mxu0 0.0
      %1175 = vmatprep.mubr.f32.mxu0 0.0
      %1176 = vmatmul.mubr.f32.gmra.mrb[0].mxu0 %v1107
      %v1177 = vpop.f32.mrb[0].mxu0
      %v1178 = vadd.f32 0.0, %v1177
      %v1179 = vpop.f32.mrb[0].mxu0
      %1180 = vdwg.mxu0
      %v1181 = vmul.f32 %v1178, 0.35355338
      %v1182 = vadd.f32 %v1181, %v681
      %v1183 = vsel %vm772, %v1182, -inf
      %1184 = vmax.xlane.f32.xlu0 %v1183
      %v1185 = vpop.xlane.xlu0 %1184
      %v1186 = vsub.f32 %v1182, %v1185
      %v1187 = vmul.f32 %v1186, 1.442695
      %v1188 = vpow.pop %v1187
      %v1189 = vsel %vm772, %v1188, 0.0
      %1190 = vadd.xlane.f32.xlu0 %v1189
      %v1191 = vpop.xlane.xlu0 %1190
      %v1192 = vrcp.pop %v1191
      %v1193 = vmul.f32 %v1188, %v1192
      %1194 = vrot.lane.b32.xlu0 %v766, 48
      %v1195 = vpop.permute.xlu0 %1194
      %v1198 = vsel %vm772, %v1193, 0
      %1200 = vmatprep.subr.mxu0 0.0
      %1201 = vmatpush1.msra.mxu0 %v1195
      %1202 = vmatprep.subr.mxu0 0.0
      %1203 = vmatpush1.msra.mxu0 0.0
      %1204 = vmatprep.subr.mxu0 0.0
      %1205 = vmatpush1.msra.mxu0 0.0
      %1206 = vmatprep.subr.mxu0 0.0
      %1207 = vmatpush1.msra.mxu0 0.0
      %1208 = vmatprep.subr.mxu0 0.0
      %1209 = vmatpush1.msra.mxu0 0.0
      %1210 = vmatprep.subr.mxu0 0.0
      %1211 = vmatpush1.msra.mxu0 0.0
      %1212 = vmatprep.subr.mxu0 0.0
      %1213 = vmatpush1.msra.mxu0 0.0
      %1214 = vmatprep.subr.mxu0 0.0
      %1215 = vmatpush1.msra.mxu0 0.0
      %1216 = vmatprep.subr.mxu0 0.0
      %1217 = vmatpush1.msra.mxu0 0.0
      %1218 = vmatprep.subr.mxu0 0.0
      %1219 = vmatpush1.msra.mxu0 0.0
      %1220 = vmatprep.subr.mxu0 0.0
      %1221 = vmatpush1.msra.mxu0 0.0
      %1222 = vmatprep.subr.mxu0 0.0
      %1223 = vmatpush1.msra.mxu0 0.0
      %1224 = vmatprep.subr.mxu0 0.0
      %1225 = vmatpush1.msra.mxu0 0.0
      %1226 = vmatprep.subr.mxu0 0.0
      %1227 = vmatpush1.msra.mxu0 0.0
      %1228 = vmatprep.subr.mxu0 0.0
      %1229 = vmatpush1.msra.mxu0 0.0
      %1230 = vmatprep.subr.mxu0 0.0
      %1231 = vmatpush1.msra.mxu0 0.0
      %1232 = vmatprep.subr.mxu0 0.0
      %1233 = vmatpush1.msra.mxu0 0.0
      %1234 = vmatprep.subr.mxu0 0.0
      %1235 = vmatpush1.msra.mxu0 0.0
      %1236 = vmatprep.subr.mxu0 0.0
      %1237 = vmatpush1.msra.mxu0 0.0
      %1238 = vmatprep.subr.mxu0 0.0
      %1239 = vmatpush1.msra.mxu0 0.0
      %1240 = vmatprep.subr.mxu0 0.0
      %1241 = vmatpush1.msra.mxu0 0.0
      %1242 = vmatprep.subr.mxu0 0.0
      %1243 = vmatpush1.msra.mxu0 0.0
      %1244 = vmatprep.subr.mxu0 0.0
      %1245 = vmatpush1.msra.mxu0 0.0
      %1246 = vmatprep.subr.mxu0 0.0
      %1247 = vmatpush1.msra.mxu0 0.0
      %1248 = vmatprep.subr.mxu0 0.0
      %1249 = vmatpush1.msra.mxu0 0.0
      %1250 = vmatprep.subr.mxu0 0.0
      %1251 = vmatpush1.msra.mxu0 0.0
      %1252 = vmatprep.subr.mxu0 0.0
      %1253 = vmatpush1.msra.mxu0 0.0
      %1254 = vmatprep.subr.mxu0 0.0
      %1255 = vmatpush1.msra.mxu0 0.0
      %1256 = vmatprep.subr.mxu0 0.0
      %1257 = vmatpush1.msra.mxu0 0.0
      %1258 = vmatprep.subr.mxu0 0.0
      %1259 = vmatpush1.msra.mxu0 0.0
      %1260 = vmatprep.subr.mxu0 0.0
      %1261 = vmatpush1.msra.mxu0 0.0
      %1262 = vmatprep.subr.mxu0 0.0
      %1263 = vmatpush1.msra.mxu0 0.0
      %1264 = vmatprep.mubr.f32.mxu0 0.0
      %1265 = vmatmul.mubr.f32.gmra.mrb[0].mxu0 %v1198
      %v1266 = vpop.f32.mrb[0].mxu0
      %v1267 = vadd.f32 0.0, %v1266
      %v1268 = vpop.f32.mrb[0].mxu0
      %1269 = vdwg.mxu0
      %1270 = vrot.lane.b32.xlu0 %v766, 104
      %v1271 = vpop.permute.xlu0 %1270
      %1272 = vrot.lane.b32.xlu0 %v766, 72
      %v1273 = vpop.permute.xlu0 %1272
      %v1274 = vsel %vm772, %v1271, 0
      %v1276 = vsel %vm772, %v1273, 0
      %1278 = vmatprep.subr.mxu0 0.0
      %1279 = vmatpush1.xpose.msra.mxu0 %v1276
      %1280 = vmatprep.subr.mxu0 0.0
      %1281 = vmatpush1.xpose.msra.mxu0 0.0
      %1282 = vmatprep.subr.mxu0 0.0
      %1283 = vmatpush1.xpose.msra.mxu0 0.0
      %1284 = vmatprep.subr.mxu0 0.0
      %1285 = vmatpush1.xpose.msra.mxu0 0.0
      %1286 = vmatprep.subr.mxu0 0.0
      %1287 = vmatpush1.xpose.msra.mxu0 0.0
      %1288 = vmatprep.subr.mxu0 0.0
      %1289 = vmatpush1.xpose.msra.mxu0 0.0
      %1290 = vmatprep.subr.mxu0 0.0
      %1291 = vmatpush1.xpose.msra.mxu0 0.0
      %1292 = vmatprep.subr.mxu0 0.0
      %1293 = vmatpush1.xpose.msra.mxu0 0.0
      %1294 = vmatprep.subr.mxu0 0.0
      %1295 = vmatpush1.xpose.msra.mxu0 0.0
      %1296 = vmatprep.subr.mxu0 0.0
      %1297 = vmatpush1.xpose.msra.mxu0 0.0
      %1298 = vmatprep.subr.mxu0 0.0
      %1299 = vmatpush1.xpose.msra.mxu0 0.0
      %1300 = vmatprep.subr.mxu0 0.0
      %1301 = vmatpush1.xpose.msra.mxu0 0.0
      %1302 = vmatprep.subr.mxu0 0.0
      %1303 = vmatpush1.xpose.msra.mxu0 0.0
      %1304 = vmatprep.subr.mxu0 0.0
      %1305 = vmatpush1.xpose.msra.mxu0 0.0
      %1306 = vmatprep.subr.mxu0 0.0
      %1307 = vmatpush1.xpose.msra.mxu0 0.0
      %1308 = vmatprep.subr.mxu0 0.0
      %1309 = vmatpush1.xpose.msra.mxu0 0.0
      %1310 = vmatprep.subr.mxu0 0.0
      %1311 = vmatpush1.xpose.msra.mxu0 0.0
      %1312 = vmatprep.subr.mxu0 0.0
      %1313 = vmatpush1.xpose.msra.mxu0 0.0
      %1314 = vmatprep.subr.mxu0 0.0
      %1315 = vmatpush1.xpose.msra.mxu0 0.0
      %1316 = vmatprep.subr.mxu0 0.0
      %1317 = vmatpush1.xpose.msra.mxu0 0.0
      %1318 = vmatprep.subr.mxu0 0.0
      %1319 = vmatpush1.xpose.msra.mxu0 0.0
      %1320 = vmatprep.subr.mxu0 0.0
      %1321 = vmatpush1.xpose.msra.mxu0 0.0
      %1322 = vmatprep.subr.mxu0 0.0
      %1323 = vmatpush1.xpose.msra.mxu0 0.0
      %1324 = vmatprep.subr.mxu0 0.0
      %1325 = vmatpush1.xpose.msra.mxu0 0.0
      %1326 = vmatprep.subr.mxu0 0.0
      %1327 = vmatpush1.xpose.msra.mxu0 0.0
      %1328 = vmatprep.subr.mxu0 0.0
      %1329 = vmatpush1.xpose.msra.mxu0 0.0
      %1330 = vmatprep.subr.mxu0 0.0
      %1331 = vmatpush1.xpose.msra.mxu0 0.0
      %1332 = vmatprep.subr.mxu0 0.0
      %1333 = vmatpush1.xpose.msra.mxu0 0.0
      %1334 = vmatprep.subr.mxu0 0.0
      %1335 = vmatpush1.xpose.msra.mxu0 0.0
      %1336 = vmatprep.subr.mxu0 0.0
      %1337 = vmatpush1.xpose.msra.mxu0 0.0
      %1338 = vmatprep.subr.mxu0 0.0
      %1339 = vmatpush1.xpose.msra.mxu0 0.0
      %1340 = vmatprep.subr.mxu0 0.0
      %1341 = vmatpush1.xpose.msra.mxu0 0.0
      %1342 = vmatprep.mubr.f32.mxu0 0.0
      %1343 = vmatmul.mubr.f32.gmra.mrb[0].mxu0 %v1274
      %v1344 = vpop.f32.mrb[0].mxu0
      %v1345 = vadd.f32 0.0, %v1344
      %v1346 = vpop.f32.mrb[0].mxu0
      %1347 = vdwg.mxu0
      %v1348 = vmul.f32 %v1345, 0.35355338
      %v1349 = vadd.f32 %v1348, %v681
      %v1350 = vsel %vm772, %v1349, -inf
      %1351 = vmax.xlane.f32.xlu0 %v1350
      %v1352 = vpop.xlane.xlu0 %1351
      %v1353 = vsub.f32 %v1349, %v1352
      %v1354 = vmul.f32 %v1353, 1.442695
      %v1355 = vpow.pop %v1354
      %v1356 = vsel %vm772, %v1355, 0.0
      %1357 = vadd.xlane.f32.xlu0 %v1356
      %v1358 = vpop.xlane.xlu0 %1357
      %v1359 = vrcp.pop %v1358
      %v1360 = vmul.f32 %v1355, %v1359
      %1361 = vrot.lane.b32.xlu0 %v766, 40
      %v1362 = vpop.permute.xlu0 %1361
      %v1365 = vsel %vm772, %v1360, 0
      %1367 = vmatprep.subr.mxu0 0.0
      %1368 = vmatpush1.msra.mxu0 %v1362
      %1369 = vmatprep.subr.mxu0 0.0
      %1370 = vmatpush1.msra.mxu0 0.0
      %1371 = vmatprep.subr.mxu0 0.0
      %1372 = vmatpush1.msra.mxu0 0.0
      %1373 = vmatprep.subr.mxu0 0.0
      %1374 = vmatpush1.msra.mxu0 0.0
      %1375 = vmatprep.subr.mxu0 0.0
      %1376 = vmatpush1.msra.mxu0 0.0
      %1377 = vmatprep.subr.mxu0 0.0
      %1378 = vmatpush1.msra.mxu0 0.0
      %1379 = vmatprep.subr.mxu0 0.0
      %1380 = vmatpush1.msra.mxu0 0.0
      %1381 = vmatprep.subr.mxu0 0.0
      %1382 = vmatpush1.msra.mxu0 0.0
      %1383 = vmatprep.subr.mxu0 0.0
      %1384 = vmatpush1.msra.mxu0 0.0
      %1385 = vmatprep.subr.mxu0 0.0
      %1386 = vmatpush1.msra.mxu0 0.0
      %1387 = vmatprep.subr.mxu0 0.0
      %1388 = vmatpush1.msra.mxu0 0.0
      %1389 = vmatprep.subr.mxu0 0.0
      %1390 = vmatpush1.msra.mxu0 0.0
      %1391 = vmatprep.subr.mxu0 0.0
      %1392 = vmatpush1.msra.mxu0 0.0
      %1393 = vmatprep.subr.mxu0 0.0
      %1394 = vmatpush1.msra.mxu0 0.0
      %1395 = vmatprep.subr.mxu0 0.0
      %1396 = vmatpush1.msra.mxu0 0.0
      %1397 = vmatprep.subr.mxu0 0.0
      %1398 = vmatpush1.msra.mxu0 0.0
      %1399 = vmatprep.subr.mxu0 0.0
      %1400 = vmatpush1.msra.mxu0 0.0
      %1401 = vmatprep.subr.mxu0 0.0
      %1402 = vmatpush1.msra.mxu0 0.0
      %1403 = vmatprep.subr.mxu0 0.0
      %1404 = vmatpush1.msra.mxu0 0.0
      %1405 = vmatprep.subr.mxu0 0.0
      %1406 = vmatpush1.msra.mxu0 0.0
      %1407 = vmatprep.subr.mxu0 0.0
      %1408 = vmatpush1.msra.mxu0 0.0
      %1409 = vmatprep.subr.mxu0 0.0
      %1410 = vmatpush1.msra.mxu0 0.0
      %1411 = vmatprep.subr.mxu0 0.0
      %1412 = vmatpush1.msra.mxu0 0.0
      %1413 = vmatprep.subr.mxu0 0.0
      %1414 = vmatpush1.msra.mxu0 0.0
      %1415 = vmatprep.subr.mxu0 0.0
      %1416 = vmatpush1.msra.mxu0 0.0
      %1417 = vmatprep.subr.mxu0 0.0
      %1418 = vmatpush1.msra.mxu0 0.0
      %1419 = vmatprep.subr.mxu0 0.0
      %1420 = vmatpush1.msra.mxu0 0.0
      %1421 = vmatprep.subr.mxu0 0.0
      %1422 = vmatpush1.msra.mxu0 0.0
      %1423 = vmatprep.subr.mxu0 0.0
      %1424 = vmatpush1.msra.mxu0 0.0
      %1425 = vmatprep.subr.mxu0 0.0
      %1426 = vmatpush1.msra.mxu0 0.0
      %1427 = vmatprep.subr.mxu0 0.0
      %1428 = vmatpush1.msra.mxu0 0.0
      %1429 = vmatprep.subr.mxu0 0.0
      %1430 = vmatpush1.msra.mxu0 0.0
      %1431 = vmatprep.mubr.f32.mxu0 0.0
      %1432 = vmatmul.mubr.f32.gmra.mrb[0].mxu0 %v1365
      %v1433 = vpop.f32.mrb[0].mxu0
      %v1434 = vadd.f32 0.0, %v1433
      %v1435 = vpop.f32.mrb[0].mxu0
      %1436 = vdwg.mxu0
      %1438 = vrot.lane.b32.xlu0 %v1100, 8
      %v1439 = vpop.permute.xlu0 %1438
      %1442 = vrot.lane.b32.xlu0 %v1267, 16
      %v1443 = vpop.permute.xlu0 %1442
      %1446 = vrot.lane.b32.xlu0 %v1434, 24
      %v1447 = vpop.permute.xlu0 %1446
      %v1449 = vsel %vm772, %v933, %v1439
      %vm1450 = vcmask 130048
      %v1451 = vsel %vm1450, %v1449, %v1443
      %vm1452 = vcmask 195584
      %v1453 = vsel %vm1452, %v1451, %v1447
      %v1454 = vld [vmem:[%s7] sm:$0xff]
      %v1455 = vld [vmem:[%s7 + $0x8] sm:$0xff]
      %v1456 = vld [vmem:[%s7 + $0x10] sm:$0xff]
      %v1457 = vld [vmem:[%s7 + $0x18] sm:$0xff]
      %v1458 = vld [vmem:[%s8] sm:$0x1]
      %v1460 = vlaneseq
      %v1461 = vshrl.u32 %v1460, 7
      %v1462 = vsub.s32 0, %v1461
      %v1463 = vrot.slane %v1458, %v1462
      %v1466 = vsel %vm695, %v1453, 0
      %1468 = vmatprep.subr.mxu0 0.0
      %1469 = vmatpush1.msra.mxu0 %v1454
      %1470 = vmatprep.subr.mxu0 0.0
      %1471 = vmatpush1.msra.mxu0 %v1455
      %1472 = vmatprep.subr.mxu0 0.0
      %1473 = vmatpush1.msra.mxu0 %v1456
      %1474 = vmatprep.subr.mxu0 0.0
      %1475 = vmatpush1.msra.mxu0 %v1457
      %1476 = vmatprep.subr.mxu0 0.0
      %1477 = vmatpush1.msra.mxu0 0.0
      %1478 = vmatprep.subr.mxu0 0.0
      %1479 = vmatpush1.msra.mxu0 0.0
      %1480 = vmatprep.subr.mxu0 0.0
      %1481 = vmatpush1.msra.mxu0 0.0
      %1482 = vmatprep.subr.mxu0 0.0
      %1483 = vmatpush1.msra.mxu0 0.0
      %1484 = vmatprep.subr.mxu0 0.0
      %1485 = vmatpush1.msra.mxu0 0.0
      %1486 = vmatprep.subr.mxu0 0.0
      %1487 = vmatpush1.msra.mxu0 0.0
      %1488 = vmatprep.subr.mxu0 0.0
      %1489 = vmatpush1.msra.mxu0 0.0
      %1490 = vmatprep.subr.mxu0 0.0
      %1491 = vmatpush1.msra.mxu0 0.0
      %1492 = vmatprep.subr.mxu0 0.0
      %1493 = vmatpush1.msra.mxu0 0.0
      %1494 = vmatprep.subr.mxu0 0.0
      %1495 = vmatpush1.msra.mxu0 0.0
      %1496 = vmatprep.subr.mxu0 0.0
      %1497 = vmatpush1.msra.mxu0 0.0
      %1498 = vmatprep.subr.mxu0 0.0
      %1499 = vmatpush1.msra.mxu0 0.0
      %1500 = vmatprep.subr.mxu0 0.0
      %1501 = vmatpush1.msra.mxu0 0.0
      %1502 = vmatprep.subr.mxu0 0.0
      %1503 = vmatpush1.msra.mxu0 0.0
      %1504 = vmatprep.subr.mxu0 0.0
      %1505 = vmatpush1.msra.mxu0 0.0
      %1506 = vmatprep.subr.mxu0 0.0
      %1507 = vmatpush1.msra.mxu0 0.0
      %1508 = vmatprep.subr.mxu0 0.0
      %1509 = vmatpush1.msra.mxu0 0.0
      %1510 = vmatprep.subr.mxu0 0.0
      %1511 = vmatpush1.msra.mxu0 0.0
      %1512 = vmatprep.subr.mxu0 0.0
      %1513 = vmatpush1.msra.mxu0 0.0
      %1514 = vmatprep.subr.mxu0 0.0
      %1515 = vmatpush1.msra.mxu0 0.0
      %1516 = vmatprep.subr.mxu0 0.0
      %1517 = vmatpush1.msra.mxu0 0.0
      %1518 = vmatprep.subr.mxu0 0.0
      %1519 = vmatpush1.msra.mxu0 0.0
      %1520 = vmatprep.subr.mxu0 0.0
      %1521 = vmatpush1.msra.mxu0 0.0
      %1522 = vmatprep.subr.mxu0 0.0
      %1523 = vmatpush1.msra.mxu0 0.0
      %1524 = vmatprep.subr.mxu0 0.0
      %1525 = vmatpush1.msra.mxu0 0.0
      %1526 = vmatprep.subr.mxu0 0.0
      %1527 = vmatpush1.msra.mxu0 0.0
      %1528 = vmatprep.subr.mxu0 0.0
      %1529 = vmatpush1.msra.mxu0 0.0
      %1530 = vmatprep.subr.mxu0 0.0
      %1531 = vmatpush1.msra.mxu0 0.0
      %1532 = vmatprep.mubr.f32.mxu0 0.0
      %1533 = vmatmul.mubr.f32.gmra.mrb[0].mxu0 %v1466
      %v1534 = vpop.f32.mrb[0].mxu0
      %v1535 = vadd.f32 %v1463, %v1534
      %v1536 = vpop.f32.mrb[0].mxu0
      %1537 = vdwg.mxu0
      %v1538 = vadd.f32 %v670, %v1535
      %v1539 = vld [vmem:[%s15] sm:$0x1]
      %v1540 = vld [vmem:[%s15 + $0x1] sm:$0x1]
      %v1541 = vsel %vm695, %v1538, 0.0
      %1542 = vadd.xlane.f32.xlu0 %v1541
      %v1543 = vpop.xlane.xlu0 %1542
      %v1544 = vrcp.pop 32.0
      %v1545 = vmul.f32 %v1543, %v1544
      %v1546 = vsub.f32 %v1538, %v1545
      %v1547 = vmul.f32 %v1546, %v1546
      %v1548 = vsel %vm695, %v1547, 0.0
      %1549 = vadd.xlane.f32.xlu0 %v1548
      %v1550 = vpop.xlane.xlu0 %1549
      %v1551 = vmul.f32 %v1550, %v1544
      %v1552 = vadd.f32 %v1551, 1e-05
      %v1553 = vrsqrt.pop %v1552
      %v1554 = vmul.f32 %v1546, %v1553
      %v1555 = vlaneseq
      %v1556 = vshrl.u32 %v1555, 7
      %v1557 = vsub.s32 0, %v1556
      %v1558 = vrot.slane %v1539, %v1557
      %v1559 = vmul.f32 %v1554, %v1558
      %v1560 = vlaneseq
      %v1561 = vshrl.u32 %v1560, 7
      %v1562 = vsub.s32 0, %v1561
      %v1563 = vrot.slane %v1540, %v1562
      %v1564 = vadd.f32 %v1559, %v1563
      %v1565 = vld [vmem:[%s9] sm:$0xff]
      %v1566 = vld [vmem:[%s9 + $0x8] sm:$0xff]
      %v1567 = vld [vmem:[%s9 + $0x10] sm:$0xff]
      %v1568 = vld [vmem:[%s9 + $0x18] sm:$0xff]
      %v1569 = vld [vmem:[%s10] sm:$0x1]
      %v1571 = vlaneseq
      %v1572 = vshrl.u32 %v1571, 7
      %v1573 = vsub.s32 0, %v1572
      %v1574 = vrot.slane %v1569, %v1573
      %v1577 = vsel %vm695, %v1564, 0
      %1579 = vmatprep.subr.mxu0 0.0
      %1580 = vmatpush1.msra.mxu0 %v1565
      %1581 = vmatprep.subr.mxu0 0.0
      %1582 = vmatpush1.msra.mxu0 %v1566
      %1583 = vmatprep.subr.mxu0 0.0
      %1584 = vmatpush1.msra.mxu0 %v1567
      %1585 = vmatprep.subr.mxu0 0.0
      %1586 = vmatpush1.msra.mxu0 %v1568
      %1587 = vmatprep.subr.mxu0 0.0
      %1588 = vmatpush1.msra.mxu0 0.0
      %1589 = vmatprep.subr.mxu0 0.0
      %1590 = vmatpush1.msra.mxu0 0.0
      %1591 = vmatprep.subr.mxu0 0.0
      %1592 = vmatpush1.msra.mxu0 0.0
      %1593 = vmatprep.subr.mxu0 0.0
      %1594 = vmatpush1.msra.mxu0 0.0
      %1595 = vmatprep.subr.mxu0 0.0
      %1596 = vmatpush1.msra.mxu0 0.0
      %1597 = vmatprep.subr.mxu0 0.0
      %1598 = vmatpush1.msra.mxu0 0.0
      %1599 = vmatprep.subr.mxu0 0.0
      %1600 = vmatpush1.msra.mxu0 0.0
      %1601 = vmatprep.subr.mxu0 0.0
      %1602 = vmatpush1.msra.mxu0 0.0
      %1603 = vmatprep.subr.mxu0 0.0
      %1604 = vmatpush1.msra.mxu0 0.0
      %1605 = vmatprep.subr.mxu0 0.0
      %1606 = vmatpush1.msra.mxu0 0.0
      %1607 = vmatprep.subr.mxu0 0.0
      %1608 = vmatpush1.msra.mxu0 0.0
      %1609 = vmatprep.subr.mxu0 0.0
      %1610 = vmatpush1.msra.mxu0 0.0
      %1611 = vmatprep.subr.mxu0 0.0
      %1612 = vmatpush1.msra.mxu0 0.0
      %1613 = vmatprep.subr.mxu0 0.0
      %1614 = vmatpush1.msra.mxu0 0.0
      %1615 = vmatprep.subr.mxu0 0.0
      %1616 = vmatpush1.msra.mxu0 0.0
      %1617 = vmatprep.subr.mxu0 0.0
      %1618 = vmatpush1.msra.mxu0 0.0
      %1619 = vmatprep.subr.mxu0 0.0
      %1620 = vmatpush1.msra.mxu0 0.0
      %1621 = vmatprep.subr.mxu0 0.0
      %1622 = vmatpush1.msra.mxu0 0.0
      %1623 = vmatprep.subr.mxu0 0.0
      %1624 = vmatpush1.msra.mxu0 0.0
      %1625 = vmatprep.subr.mxu0 0.0
      %1626 = vmatpush1.msra.mxu0 0.0
      %1627 = vmatprep.subr.mxu0 0.0
      %1628 = vmatpush1.msra.mxu0 0.0
      %1629 = vmatprep.subr.mxu0 0.0
      %1630 = vmatpush1.msra.mxu0 0.0
      %1631 = vmatprep.subr.mxu0 0.0
      %1632 = vmatpush1.msra.mxu0 0.0
      %1633 = vmatprep.subr.mxu0 0.0
      %1634 = vmatpush1.msra.mxu0 0.0
      %1635 = vmatprep.subr.mxu0 0.0
      %1636 = vmatpush1.msra.mxu0 0.0
      %1637 = vmatprep.subr.mxu0 0.0
      %1638 = vmatpush1.msra.mxu0 0.0
      %1639 = vmatprep.subr.mxu0 0.0
      %1640 = vmatpush1.msra.mxu0 0.0
      %1641 = vmatprep.subr.mxu0 0.0
      %1642 = vmatpush1.msra.mxu0 0.0
      %1643 = vmatprep.mubr.f32.mxu0 0.0
      %1644 = vmatmul.mubr.f32.gmra.mrb[0].mxu0 %v1577
      %v1645 = vpop.f32.mrb[0].mxu0
      %v1646 = vadd.f32 %v1574, %v1645
      %v1647 = vpop.f32.mrb[0].mxu0
      %1648 = vdwg.mxu0
      %v1649 = vld [vmem:[%s11] sm:$0xff]
      %v1650 = vld [vmem:[%s11 + $0x8] sm:$0xff]
      %v1651 = vld [vmem:[%s11 + $0x10] sm:$0xff]
      %v1652 = vld [vmem:[%s11 + $0x18] sm:$0xff]
      %v1653 = vld [vmem:[%s12] sm:$0x1]
      %v1655 = vlaneseq
      %v1656 = vshrl.u32 %v1655, 7
      %v1657 = vsub.s32 0, %v1656
      %v1658 = vrot.slane %v1653, %v1657
      %v1661 = vsel %vm695, %v671, 0
      %1663 = vmatprep.subr.mxu0 0.0
      %1664 = vmatpush1.msra.mxu0 %v1649
      %1665 = vmatprep.subr.mxu0 0.0
      %1666 = vmatpush1.msra.mxu0 %v1650
      %1667 = vmatprep.subr.mxu0 0.0
      %1668 = vmatpush1.msra.mxu0 %v1651
      %1669 = vmatprep.subr.mxu0 0.0
      %1670 = vmatpush1.msra.mxu0 %v1652
      %1671 = vmatprep.subr.mxu0 0.0
      %1672 = vmatpush1.msra.mxu0 0.0
      %1673 = vmatprep.subr.mxu0 0.0
      %1674 = vmatpush1.msra.mxu0 0.0
      %1675 = vmatprep.subr.mxu0 0.0
      %1676 = vmatpush1.msra.mxu0 0.0
      %1677 = vmatprep.subr.mxu0 0.0
      %1678 = vmatpush1.msra.mxu0 0.0
      %1679 = vmatprep.subr.mxu0 0.0
      %1680 = vmatpush1.msra.mxu0 0.0
      %1681 = vmatprep.subr.mxu0 0.0
      %1682 = vmatpush1.msra.mxu0 0.0
      %1683 = vmatprep.subr.mxu0 0.0
      %1684 = vmatpush1.msra.mxu0 0.0
      %1685 = vmatprep.subr.mxu0 0.0
      %1686 = vmatpush1.msra.mxu0 0.0
      %1687 = vmatprep.subr.mxu0 0.0
      %1688 = vmatpush1.msra.mxu0 0.0
      %1689 = vmatprep.subr.mxu0 0.0
      %1690 = vmatpush1.msra.mxu0 0.0
      %1691 = vmatprep.subr.mxu0 0.0
      %1692 = vmatpush1.msra.mxu0 0.0
      %1693 = vmatprep.subr.mxu0 0.0
      %1694 = vmatpush1.msra.mxu0 0.0
      %1695 = vmatprep.subr.mxu0 0.0
      %1696 = vmatpush1.msra.mxu0 0.0
      %1697 = vmatprep.subr.mxu0 0.0
      %1698 = vmatpush1.msra.mxu0 0.0
      %1699 = vmatprep.subr.mxu0 0.0
      %1700 = vmatpush1.msra.mxu0 0.0
      %1701 = vmatprep.subr.mxu0 0.0
      %1702 = vmatpush1.msra.mxu0 0.0
      %1703 = vmatprep.subr.mxu0 0.0
      %1704 = vmatpush1.msra.mxu0 0.0
      %1705 = vmatprep.subr.mxu0 0.0
      %1706 = vmatpush1.msra.mxu0 0.0
      %1707 = vmatprep.subr.mxu0 0.0
      %1708 = vmatpush1.msra.mxu0 0.0
      %1709 = vmatprep.subr.mxu0 0.0
      %1710 = vmatpush1.msra.mxu0 0.0
      %1711 = vmatprep.subr.mxu0 0.0
      %1712 = vmatpush1.msra.mxu0 0.0
      %1713 = vmatprep.subr.mxu0 0.0
      %1714 = vmatpush1.msra.mxu0 0.0
      %1715 = vmatprep.subr.mxu0 0.0
      %1716 = vmatpush1.msra.mxu0 0.0
      %1717 = vmatprep.subr.mxu0 0.0
      %1718 = vmatpush1.msra.mxu0 0.0
      %1719 = vmatprep.subr.mxu0 0.0
      %1720 = vmatpush1.msra.mxu0 0.0
      %1721 = vmatprep.subr.mxu0 0.0
      %1722 = vmatpush1.msra.mxu0 0.0
      %1723 = vmatprep.subr.mxu0 0.0
      %1724 = vmatpush1.msra.mxu0 0.0
      %1725 = vmatprep.subr.mxu0 0.0
      %1726 = vmatpush1.msra.mxu0 0.0
      %1727 = vmatprep.mubr.f32.mxu0 0.0
      %1728 = vmatmul.mubr.f32.gmra.mrb[0].mxu0 %v1661
      %v1729 = vpop.f32.mrb[0].mxu0
      %v1730 = vadd.f32 %v1658, %v1729
      %v1731 = vpop.f32.mrb[0].mxu0
      %1732 = vdwg.mxu0
      %v1734 = vsel %vm772, %v1646, 0
      %v1737 = vsel %vm772, %v1730, 0
      %1739 = vmatprep.subr.mxu0 0.0
      %1740 = vmatpush1.xpose.msra.mxu0 %v1737
      %1741 = vmatprep.subr.mxu0 0.0
      %1742 = vmatpush1.xpose.msra.mxu0 0.0
      %1743 = vmatprep.subr.mxu0 0.0
      %1744 = vmatpush1.xpose.msra.mxu0 0.0
      %1745 = vmatprep.subr.mxu0 0.0
      %1746 = vmatpush1.xpose.msra.mxu0 0.0
      %1747 = vmatprep.subr.mxu0 0.0
      %1748 = vmatpush1.xpose.msra.mxu0 0.0
      %1749 = vmatprep.subr.mxu0 0.0
      %1750 = vmatpush1.xpose.msra.mxu0 0.0
      %1751 = vmatprep.subr.mxu0 0.0
      %1752 = vmatpush1.xpose.msra.mxu0 0.0
      %1753 = vmatprep.subr.mxu0 0.0
      %1754 = vmatpush1.xpose.msra.mxu0 0.0
      %1755 = vmatprep.subr.mxu0 0.0
      %1756 = vmatpush1.xpose.msra.mxu0 0.0
      %1757 = vmatprep.subr.mxu0 0.0
      %1758 = vmatpush1.xpose.msra.mxu0 0.0
      %1759 = vmatprep.subr.mxu0 0.0
      %1760 = vmatpush1.xpose.msra.mxu0 0.0
      %1761 = vmatprep.subr.mxu0 0.0
      %1762 = vmatpush1.xpose.msra.mxu0 0.0
      %1763 = vmatprep.subr.mxu0 0.0
      %1764 = vmatpush1.xpose.msra.mxu0 0.0
      %1765 = vmatprep.subr.mxu0 0.0
      %1766 = vmatpush1.xpose.msra.mxu0 0.0
      %1767 = vmatprep.subr.mxu0 0.0
      %1768 = vmatpush1.xpose.msra.mxu0 0.0
      %1769 = vmatprep.subr.mxu0 0.0
      %1770 = vmatpush1.xpose.msra.mxu0 0.0
      %1771 = vmatprep.subr.mxu0 0.0
      %1772 = vmatpush1.xpose.msra.mxu0 0.0
      %1773 = vmatprep.subr.mxu0 0.0
      %1774 = vmatpush1.xpose.msra.mxu0 0.0
      %1775 = vmatprep.subr.mxu0 0.0
      %1776 = vmatpush1.xpose.msra.mxu0 0.0
      %1777 = vmatprep.subr.mxu0 0.0
      %1778 = vmatpush1.xpose.msra.mxu0 0.0
      %1779 = vmatprep.subr.mxu0 0.0
      %1780 = vmatpush1.xpose.msra.mxu0 0.0
      %1781 = vmatprep.subr.mxu0 0.0
      %1782 = vmatpush1.xpose.msra.mxu0 0.0
      %1783 = vmatprep.subr.mxu0 0.0
      %1784 = vmatpush1.xpose.msra.mxu0 0.0
      %1785 = vmatprep.subr.mxu0 0.0
      %1786 = vmatpush1.xpose.msra.mxu0 0.0
      %1787 = vmatprep.subr.mxu0 0.0
      %1788 = vmatpush1.xpose.msra.mxu0 0.0
      %1789 = vmatprep.subr.mxu0 0.0
      %1790 = vmatpush1.xpose.msra.mxu0 0.0
      %1791 = vmatprep.subr.mxu0 0.0
      %1792 = vmatpush1.xpose.msra.mxu0 0.0
      %1793 = vmatprep.subr.mxu0 0.0
      %1794 = vmatpush1.xpose.msra.mxu0 0.0
      %1795 = vmatprep.subr.mxu0 0.0
      %1796 = vmatpush1.xpose.msra.mxu0 0.0
      %1797 = vmatprep.subr.mxu0 0.0
      %1798 = vmatpush1.xpose.msra.mxu0 0.0
      %1799 = vmatprep.subr.mxu0 0.0
      %1800 = vmatpush1.xpose.msra.mxu0 0.0
      %1801 = vmatprep.subr.mxu0 0.0
      %1802 = vmatpush1.xpose.msra.mxu0 0.0
      %1803 = vmatprep.mubr.f32.mxu0 0.0
      %1804 = vmatmul.mubr.f32.gmra.mrb[0].mxu0 %v1734
      %v1805 = vpop.f32.mrb[0].mxu0
      %v1806 = vadd.f32 0.0, %v1805
      %v1807 = vpop.f32.mrb[0].mxu0
      %1808 = vdwg.mxu0
      %v1809 = vmul.f32 %v1806, 0.35355338
      %v1811 = vlaneseq
      %v1812 = vshrl.u32 %v1811, 7
      %v1813 = vsub.s32 0, %v1812
      %v1814 = vrot.slane %v683, %v1813
      %v1816 = vadd.f32 %v1809, %v1814
      %v1817 = vsel %vm772, %v1816, -inf
      %1818 = vmax.xlane.f32.xlu0 %v1817
      %v1819 = vpop.xlane.xlu0 %1818
      %v1820 = vsub.f32 %v1816, %v1819
      %v1821 = vmul.f32 %v1820, 1.442695
      %v1822 = vpow.pop %v1821
      %v1823 = vsel %vm772, %v1822, 0.0
      %1824 = vadd.xlane.f32.xlu0 %v1823
      %v1825 = vpop.xlane.xlu0 %1824
      %v1826 = vrcp.pop %v1825
      %v1827 = vmul.f32 %v1822, %v1826
      %1828 = vrot.lane.b32.xlu0 %v1730, 96
      %v1829 = vpop.permute.xlu0 %1828
      %v1832 = vsel %vm772, %v1827, 0
      %1834 = vmatprep.subr.mxu0 0.0
      %1835 = vmatpush1.msra.mxu0 %v1829
      %1836 = vmatprep.subr.mxu0 0.0
      %1837 = vmatpush1.msra.mxu0 0.0
      %1838 = vmatprep.subr.mxu0 0.0
      %1839 = vmatpush1.msra.mxu0 0.0
      %1840 = vmatprep.subr.mxu0 0.0
      %1841 = vmatpush1.msra.mxu0 0.0
      %1842 = vmatprep.subr.mxu0 0.0
      %1843 = vmatpush1.msra.mxu0 0.0
      %1844 = vmatprep.subr.mxu0 0.0
      %1845 = vmatpush1.msra.mxu0 0.0
      %1846 = vmatprep.subr.mxu0 0.0
      %1847 = vmatpush1.msra.mxu0 0.0
      %1848 = vmatprep.subr.mxu0 0.0
      %1849 = vmatpush1.msra.mxu0 0.0
      %1850 = vmatprep.subr.mxu0 0.0
      %1851 = vmatpush1.msra.mxu0 0.0
      %1852 = vmatprep.subr.mxu0 0.0
      %1853 = vmatpush1.msra.mxu0 0.0
      %1854 = vmatprep.subr.mxu0 0.0
      %1855 = vmatpush1.msra.mxu0 0.0
      %1856 = vmatprep.subr.mxu0 0.0
      %1857 = vmatpush1.msra.mxu0 0.0
      %1858 = vmatprep.subr.mxu0 0.0
      %1859 = vmatpush1.msra.mxu0 0.0
      %1860 = vmatprep.subr.mxu0 0.0
      %1861 = vmatpush1.msra.mxu0 0.0
      %1862 = vmatprep.subr.mxu0 0.0
      %1863 = vmatpush1.msra.mxu0 0.0
      %1864 = vmatprep.subr.mxu0 0.0
      %1865 = vmatpush1.msra.mxu0 0.0
      %1866 = vmatprep.subr.mxu0 0.0
      %1867 = vmatpush1.msra.mxu0 0.0
      %1868 = vmatprep.subr.mxu0 0.0
      %1869 = vmatpush1.msra.mxu0 0.0
      %1870 = vmatprep.subr.mxu0 0.0
      %1871 = vmatpush1.msra.mxu0 0.0
      %1872 = vmatprep.subr.mxu0 0.0
      %1873 = vmatpush1.msra.mxu0 0.0
      %1874 = vmatprep.subr.mxu0 0.0
      %1875 = vmatpush1.msra.mxu0 0.0
      %1876 = vmatprep.subr.mxu0 0.0
      %1877 = vmatpush1.msra.mxu0 0.0
      %1878 = vmatprep.subr.mxu0 0.0
      %1879 = vmatpush1.msra.mxu0 0.0
      %1880 = vmatprep.subr.mxu0 0.0
      %1881 = vmatpush1.msra.mxu0 0.0
      %1882 = vmatprep.subr.mxu0 0.0
      %1883 = vmatpush1.msra.mxu0 0.0
      %1884 = vmatprep.subr.mxu0 0.0
      %1885 = vmatpush1.msra.mxu0 0.0
      %1886 = vmatprep.subr.mxu0 0.0
      %1887 = vmatpush1.msra.mxu0 0.0
      %1888 = vmatprep.subr.mxu0 0.0
      %1889 = vmatpush1.msra.mxu0 0.0
      %1890 = vmatprep.subr.mxu0 0.0
      %1891 = vmatpush1.msra.mxu0 0.0
      %1892 = vmatprep.subr.mxu0 0.0
      %1893 = vmatpush1.msra.mxu0 0.0
      %1894 = vmatprep.subr.mxu0 0.0
      %1895 = vmatpush1.msra.mxu0 0.0
      %1896 = vmatprep.subr.mxu0 0.0
      %1897 = vmatpush1.msra.mxu0 0.0
      %1898 = vmatprep.mubr.f32.mxu0 0.0
      %1899 = vmatmul.mubr.f32.gmra.mrb[0].mxu0 %v1832
      %v1900 = vpop.f32.mrb[0].mxu0
      %v1901 = vadd.f32 0.0, %v1900
      %v1902 = vpop.f32.mrb[0].mxu0
      %1903 = vdwg.mxu0
      %1904 = vrot.lane.b32.xlu0 %v1646, 120
      %v1905 = vpop.permute.xlu0 %1904
      %1906 = vrot.lane.b32.xlu0 %v1730, 120
      %v1907 = vpop.permute.xlu0 %1906
      %v1908 = vsel %vm772, %v1905, 0
      %v1910 = vsel %vm772, %v1907, 0
      %1912 = vmatprep.subr.mxu0 0.0
      %1913 = vmatpush1.xpose.msra.mxu0 %v1910
      %1914 = vmatprep.subr.mxu0 0.0
      %1915 = vmatpush1.xpose.msra.mxu0 0.0
      %1916 = vmatprep.subr.mxu0 0.0
      %1917 = vmatpush1.xpose.msra.mxu0 0.0
      %1918 = vmatprep.subr.mxu0 0.0
      %1919 = vmatpush1.xpose.msra.mxu0 0.0
      %1920 = vmatprep.subr.mxu0 0.0
      %1921 = vmatpush1.xpose.msra.mxu0 0.0
      %1922 = vmatprep.subr.mxu0 0.0
      %1923 = vmatpush1.xpose.msra.mxu0 0.0
      %1924 = vmatprep.subr.mxu0 0.0
      %1925 = vmatpush1.xpose.msra.mxu0 0.0
      %1926 = vmatprep.subr.mxu0 0.0
      %1927 = vmatpush1.xpose.msra.mxu0 0.0
      %1928 = vmatprep.subr.mxu0 0.0
      %1929 = vmatpush1.xpose.msra.mxu0 0.0
      %1930 = vmatprep.subr.mxu0 0.0
      %1931 = vmatpush1.xpose.msra.mxu0 0.0
      %1932 = vmatprep.subr.mxu0 0.0
      %1933 = vmatpush1.xpose.msra.mxu0 0.0
      %1934 = vmatprep.subr.mxu0 0.0
      %1935 = vmatpush1.xpose.msra.mxu0 0.0
      %1936 = vmatprep.subr.mxu0 0.0
      %1937 = vmatpush1.xpose.msra.mxu0 0.0
      %1938 = vmatprep.subr.mxu0 0.0
      %1939 = vmatpush1.xpose.msra.mxu0 0.0
      %1940 = vmatprep.subr.mxu0 0.0
      %1941 = vmatpush1.xpose.msra.mxu0 0.0
      %1942 = vmatprep.subr.mxu0 0.0
      %1943 = vmatpush1.xpose.msra.mxu0 0.0
      %1944 = vmatprep.subr.mxu0 0.0
      %1945 = vmatpush1.xpose.msra.mxu0 0.0
      %1946 = vmatprep.subr.mxu0 0.0
      %1947 = vmatpush1.xpose.msra.mxu0 0.0
      %1948 = vmatprep.subr.mxu0 0.0
      %1949 = vmatpush1.xpose.msra.mxu0 0.0
      %1950 = vmatprep.subr.mxu0 0.0
      %1951 = vmatpush1.xpose.msra.mxu0 0.0
      %1952 = vmatprep.subr.mxu0 0.0
      %1953 = vmatpush1.xpose.msra.mxu0 0.0
      %1954 = vmatprep.subr.mxu0 0.0
      %1955 = vmatpush1.xpose.msra.mxu0 0.0
      %1956 = vmatprep.subr.mxu0 0.0
      %1957 = vmatpush1.xpose.msra.mxu0 0.0
      %1958 = vmatprep.subr.mxu0 0.0
      %1959 = vmatpush1.xpose.msra.mxu0 0.0
      %1960 = vmatprep.subr.mxu0 0.0
      %1961 = vmatpush1.xpose.msra.mxu0 0.0
      %1962 = vmatprep.subr.mxu0 0.0
      %1963 = vmatpush1.xpose.msra.mxu0 0.0
      %1964 = vmatprep.subr.mxu0 0.0
      %1965 = vmatpush1.xpose.msra.mxu0 0.0
      %1966 = vmatprep.subr.mxu0 0.0
      %1967 = vmatpush1.xpose.msra.mxu0 0.0
      %1968 = vmatprep.subr.mxu0 0.0
      %1969 = vmatpush1.xpose.msra.mxu0 0.0
      %1970 = vmatprep.subr.mxu0 0.0
      %1971 = vmatpush1.xpose.msra.mxu0 0.0
      %1972 = vmatprep.subr.mxu0 0.0
      %1973 = vmatpush1.xpose.msra.mxu0 0.0
      %1974 = vmatprep.subr.mxu0 0.0
      %1975 = vmatpush1.xpose.msra.mxu0 0.0
      %1976 = vmatprep.mubr.f32.mxu0 0.0
      %1977 = vmatmul.mubr.f32.gmra.mrb[0].mxu0 %v1908
      %v1978 = vpop.f32.mrb[0].mxu0
      %v1979 = vadd.f32 0.0, %v1978
      %v1980 = vpop.f32.mrb[0].mxu0
      %1981 = vdwg.mxu0
      %v1982 = vmul.f32 %v1979, 0.35355338
      %v1983 = vadd.f32 %v1982, %v1814
      %v1984 = vsel %vm772, %v1983, -inf
      %1985 = vmax.xlane.f32.xlu0 %v1984
      %v1986 = vpop.xlane.xlu0 %1985
      %v1987 = vsub.f32 %v1983, %v1986
      %v1988 = vmul.f32 %v1987, 1.442695
      %v1989 = vpow.pop %v1988
      %v1990 = vsel %vm772, %v1989, 0.0
      %1991 = vadd.xlane.f32.xlu0 %v1990
      %v1992 = vpop.xlane.xlu0 %1991
      %v1993 = vrcp.pop %v1992
      %v1994 = vmul.f32 %v1989, %v1993
      %1995 = vrot.lane.b32.xlu0 %v1730, 88
      %v1996 = vpop.permute.xlu0 %1995
      %v1999 = vsel %vm772, %v1994, 0
      %2001 = vmatprep.subr.mxu0 0.0
      %2002 = vmatpush1.msra.mxu0 %v1996
      %2003 = vmatprep.subr.mxu0 0.0
      %2004 = vmatpush1.msra.mxu0 0.0
      %2005 = vmatprep.subr.mxu0 0.0
      %2006 = vmatpush1.msra.mxu0 0.0
      %2007 = vmatprep.subr.mxu0 0.0
      %2008 = vmatpush1.msra.mxu0 0.0
      %2009 = vmatprep.subr.mxu0 0.0
      %2010 = vmatpush1.msra.mxu0 0.0
      %2011 = vmatprep.subr.mxu0 0.0
      %2012 = vmatpush1.msra.mxu0 0.0
      %2013 = vmatprep.subr.mxu0 0.0
      %2014 = vmatpush1.msra.mxu0 0.0
      %2015 = vmatprep.subr.mxu0 0.0
      %2016 = vmatpush1.msra.mxu0 0.0
      %2017 = vmatprep.subr.mxu0 0.0
      %2018 = vmatpush1.msra.mxu0 0.0
      %2019 = vmatprep.subr.mxu0 0.0
      %2020 = vmatpush1.msra.mxu0 0.0
      %2021 = vmatprep.subr.mxu0 0.0
      %2022 = vmatpush1.msra.mxu0 0.0
      %2023 = vmatprep.subr.mxu0 0.0
      %2024 = vmatpush1.msra.mxu0 0.0
      %2025 = vmatprep.subr.mxu0 0.0
      %2026 = vmatpush1.msra.mxu0 0.0
      %2027 = vmatprep.subr.mxu0 0.0
      %2028 = vmatpush1.msra.mxu0 0.0
      %2029 = vmatprep.subr.mxu0 0.0
      %2030 = vmatpush1.msra.mxu0 0.0
      %2031 = vmatprep.subr.mxu0 0.0
      %2032 = vmatpush1.msra.mxu0 0.0
      %2033 = vmatprep.subr.mxu0 0.0
      %2034 = vmatpush1.msra.mxu0 0.0
      %2035 = vmatprep.subr.mxu0 0.0
      %2036 = vmatpush1.msra.mxu0 0.0
      %2037 = vmatprep.subr.mxu0 0.0
      %2038 = vmatpush1.msra.mxu0 0.0
      %2039 = vmatprep.subr.mxu0 0.0
      %2040 = vmatpush1.msra.mxu0 0.0
      %2041 = vmatprep.subr.mxu0 0.0
      %2042 = vmatpush1.msra.mxu0 0.0
      %2043 = vmatprep.subr.mxu0 0.0
      %2044 = vmatpush1.msra.mxu0 0.0
      %2045 = vmatprep.subr.mxu0 0.0
      %2046 = vmatpush1.msra.mxu0 0.0
      %2047 = vmatprep.subr.mxu0 0.0
      %2048 = vmatpush1.msra.mxu0 0.0
      %2049 = vmatprep.subr.mxu0 0.0
      %2050 = vmatpush1.msra.mxu0 0.0
      %2051 = vmatprep.subr.mxu0 0.0
      %2052 = vmatpush1.msra.mxu0 0.0
      %2053 = vmatprep.subr.mxu0 0.0
      %2054 = vmatpush1.msra.mxu0 0.0
      %2055 = vmatprep.subr.mxu0 0.0
      %2056 = vmatpush1.msra.mxu0 0.0
      %2057 = vmatprep.subr.mxu0 0.0
      %2058 = vmatpush1.msra.mxu0 0.0
      %2059 = vmatprep.subr.mxu0 0.0
      %2060 = vmatpush1.msra.mxu0 0.0
      %2061 = vmatprep.subr.mxu0 0.0
      %2062 = vmatpush1.msra.mxu0 0.0
      %2063 = vmatprep.subr.mxu0 0.0
      %2064 = vmatpush1.msra.mxu0 0.0
      %2065 = vmatprep.mubr.f32.mxu0 0.0
      %2066 = vmatmul.mubr.f32.gmra.mrb[0].mxu0 %v1999
      %v2067 = vpop.f32.mrb[0].mxu0
      %v2068 = vadd.f32 0.0, %v2067
      %v2069 = vpop.f32.mrb[0].mxu0
      %2070 = vdwg.mxu0
      %2071 = vrot.lane.b32.xlu0 %v1646, 112
      %v2072 = vpop.permute.xlu0 %2071
      %2073 = vrot.lane.b32.xlu0 %v1730, 112
      %v2074 = vpop.permute.xlu0 %2073
      %v2075 = vsel %vm772, %v2072, 0
      %v2077 = vsel %vm772, %v2074, 0
      %2079 = vmatprep.subr.mxu0 0.0
      %2080 = vmatpush1.xpose.msra.mxu0 %v2077
      %2081 = vmatprep.subr.mxu0 0.0
      %2082 = vmatpush1.xpose.msra.mxu0 0.0
      %2083 = vmatprep.subr.mxu0 0.0
      %2084 = vmatpush1.xpose.msra.mxu0 0.0
      %2085 = vmatprep.subr.mxu0 0.0
      %2086 = vmatpush1.xpose.msra.mxu0 0.0
      %2087 = vmatprep.subr.mxu0 0.0
      %2088 = vmatpush1.xpose.msra.mxu0 0.0
      %2089 = vmatprep.subr.mxu0 0.0
      %2090 = vmatpush1.xpose.msra.mxu0 0.0
      %2091 = vmatprep.subr.mxu0 0.0
      %2092 = vmatpush1.xpose.msra.mxu0 0.0
      %2093 = vmatprep.subr.mxu0 0.0
      %2094 = vmatpush1.xpose.msra.mxu0 0.0
      %2095 = vmatprep.subr.mxu0 0.0
      %2096 = vmatpush1.xpose.msra.mxu0 0.0
      %2097 = vmatprep.subr.mxu0 0.0
      %2098 = vmatpush1.xpose.msra.mxu0 0.0
      %2099 = vmatprep.subr.mxu0 0.0
      %2100 = vmatpush1.xpose.msra.mxu0 0.0
      %2101 = vmatprep.subr.mxu0 0.0
      %2102 = vmatpush1.xpose.msra.mxu0 0.0
      %2103 = vmatprep.subr.mxu0 0.0
      %2104 = vmatpush1.xpose.msra.mxu0 0.0
      %2105 = vmatprep.subr.mxu0 0.0
      %2106 = vmatpush1.xpose.msra.mxu0 0.0
      %2107 = vmatprep.subr.mxu0 0.0
      %2108 = vmatpush1.xpose.msra.mxu0 0.0
      %2109 = vmatprep.subr.mxu0 0.0
      %2110 = vmatpush1.xpose.msra.mxu0 0.0
      %2111 = vmatprep.subr.mxu0 0.0
      %2112 = vmatpush1.xpose.msra.mxu0 0.0
      %2113 = vmatprep.subr.mxu0 0.0
      %2114 = vmatpush1.xpose.msra.mxu0 0.0
      %2115 = vmatprep.subr.mxu0 0.0
      %2116 = vmatpush1.xpose.msra.mxu0 0.0
      %2117 = vmatprep.subr.mxu0 0.0
      %2118 = vmatpush1.xpose.msra.mxu0 0.0
      %2119 = vmatprep.subr.mxu0 0.0
      %2120 = vmatpush1.xpose.msra.mxu0 0.0
      %2121 = vmatprep.subr.mxu0 0.0
      %2122 = vmatpush1.xpose.msra.mxu0 0.0
      %2123 = vmatprep.subr.mxu0 0.0
      %2124 = vmatpush1.xpose.msra.mxu0 0.0
      %2125 = vmatprep.subr.mxu0 0.0
      %2126 = vmatpush1.xpose.msra.mxu0 0.0
      %2127 = vmatprep.subr.mxu0 0.0
      %2128 = vmatpush1.xpose.msra.mxu0 0.0
      %2129 = vmatprep.subr.mxu0 0.0
      %2130 = vmatpush1.xpose.msra.mxu0 0.0
      %2131 = vmatprep.subr.mxu0 0.0
      %2132 = vmatpush1.xpose.msra.mxu0 0.0
      %2133 = vmatprep.subr.mxu0 0.0
      %2134 = vmatpush1.xpose.msra.mxu0 0.0
      %2135 = vmatprep.subr.mxu0 0.0
      %2136 = vmatpush1.xpose.msra.mxu0 0.0
      %2137 = vmatprep.subr.mxu0 0.0
      %2138 = vmatpush1.xpose.msra.mxu0 0.0
      %2139 = vmatprep.subr.mxu0 0.0
      %2140 = vmatpush1.xpose.msra.mxu0 0.0
      %2141 = vmatprep.subr.mxu0 0.0
      %2142 = vmatpush1.xpose.msra.mxu0 0.0
      %2143 = vmatprep.mubr.f32.mxu0 0.0
      %2144 = vmatmul.mubr.f32.gmra.mrb[0].mxu0 %v2075
      %v2145 = vpop.f32.mrb[0].mxu0
      %v2146 = vadd.f32 0.0, %v2145
      %v2147 = vpop.f32.mrb[0].mxu0
      %2148 = vdwg.mxu0
      %v2149 = vmul.f32 %v2146, 0.35355338
      %v2150 = vadd.f32 %v2149, %v1814
      %v2151 = vsel %vm772, %v2150, -inf
      %2152 = vmax.xlane.f32.xlu0 %v2151
      %v2153 = vpop.xlane.xlu0 %2152
      %v2154 = vsub.f32 %v2150, %v2153
      %v2155 = vmul.f32 %v2154, 1.442695
      %v2156 = vpow.pop %v2155
      %v2157 = vsel %vm772, %v2156, 0.0
      %2158 = vadd.xlane.f32.xlu0 %v2157
      %v2159 = vpop.xlane.xlu0 %2158
      %v2160 = vrcp.pop %v2159
      %v2161 = vmul.f32 %v2156, %v2160
      %2162 = vrot.lane.b32.xlu0 %v1730, 80
      %v2163 = vpop.permute.xlu0 %2162
      %v2166 = vsel %vm772, %v2161, 0
      %2168 = vmatprep.subr.mxu0 0.0
      %2169 = vmatpush1.msra.mxu0 %v2163
      %2170 = vmatprep.subr.mxu0 0.0
      %2171 = vmatpush1.msra.mxu0 0.0
      %2172 = vmatprep.subr.mxu0 0.0
      %2173 = vmatpush1.msra.mxu0 0.0
      %2174 = vmatprep.subr.mxu0 0.0
      %2175 = vmatpush1.msra.mxu0 0.0
      %2176 = vmatprep.subr.mxu0 0.0
      %2177 = vmatpush1.msra.mxu0 0.0
      %2178 = vmatprep.subr.mxu0 0.0
      %2179 = vmatpush1.msra.mxu0 0.0
      %2180 = vmatprep.subr.mxu0 0.0
      %2181 = vmatpush1.msra.mxu0 0.0
      %2182 = vmatprep.subr.mxu0 0.0
      %2183 = vmatpush1.msra.mxu0 0.0
      %2184 = vmatprep.subr.mxu0 0.0
      %2185 = vmatpush1.msra.mxu0 0.0
      %2186 = vmatprep.subr.mxu0 0.0
      %2187 = vmatpush1.msra.mxu0 0.0
      %2188 = vmatprep.subr.mxu0 0.0
      %2189 = vmatpush1.msra.mxu0 0.0
      %2190 = vmatprep.subr.mxu0 0.0
      %2191 = vmatpush1.msra.mxu0 0.0
      %2192 = vmatprep.subr.mxu0 0.0
      %2193 = vmatpush1.msra.mxu0 0.0
      %2194 = vmatprep.subr.mxu0 0.0
      %2195 = vmatpush1.msra.mxu0 0.0
      %2196 = vmatprep.subr.mxu0 0.0
      %2197 = vmatpush1.msra.mxu0 0.0
      %2198 = vmatprep.subr.mxu0 0.0
      %2199 = vmatpush1.msra.mxu0 0.0
      %2200 = vmatprep.subr.mxu0 0.0
      %2201 = vmatpush1.msra.mxu0 0.0
      %2202 = vmatprep.subr.mxu0 0.0
      %2203 = vmatpush1.msra.mxu0 0.0
      %2204 = vmatprep.subr.mxu0 0.0
      %2205 = vmatpush1.msra.mxu0 0.0
      %2206 = vmatprep.subr.mxu0 0.0
      %2207 = vmatpush1.msra.mxu0 0.0
      %2208 = vmatprep.subr.mxu0 0.0
      %2209 = vmatpush1.msra.mxu0 0.0
      %2210 = vmatprep.subr.mxu0 0.0
      %2211 = vmatpush1.msra.mxu0 0.0
      %2212 = vmatprep.subr.mxu0 0.0
      %2213 = vmatpush1.msra.mxu0 0.0
      %2214 = vmatprep.subr.mxu0 0.0
      %2215 = vmatpush1.msra.mxu0 0.0
      %2216 = vmatprep.subr.mxu0 0.0
      %2217 = vmatpush1.msra.mxu0 0.0
      %2218 = vmatprep.subr.mxu0 0.0
      %2219 = vmatpush1.msra.mxu0 0.0
      %2220 = vmatprep.subr.mxu0 0.0
      %2221 = vmatpush1.msra.mxu0 0.0
      %2222 = vmatprep.subr.mxu0 0.0
      %2223 = vmatpush1.msra.mxu0 0.0
      %2224 = vmatprep.subr.mxu0 0.0
      %2225 = vmatpush1.msra.mxu0 0.0
      %2226 = vmatprep.subr.mxu0 0.0
      %2227 = vmatpush1.msra.mxu0 0.0
      %2228 = vmatprep.subr.mxu0 0.0
      %2229 = vmatpush1.msra.mxu0 0.0
      %2230 = vmatprep.subr.mxu0 0.0
      %2231 = vmatpush1.msra.mxu0 0.0
      %2232 = vmatprep.mubr.f32.mxu0 0.0
      %2233 = vmatmul.mubr.f32.gmra.mrb[0].mxu0 %v2166
      %v2234 = vpop.f32.mrb[0].mxu0
      %v2235 = vadd.f32 0.0, %v2234
      %v2236 = vpop.f32.mrb[0].mxu0
      %2237 = vdwg.mxu0
      %2238 = vrot.lane.b32.xlu0 %v1646, 104
      %v2239 = vpop.permute.xlu0 %2238
      %2240 = vrot.lane.b32.xlu0 %v1730, 104
      %v2241 = vpop.permute.xlu0 %2240
      %v2242 = vsel %vm772, %v2239, 0
      %v2244 = vsel %vm772, %v2241, 0
      %2246 = vmatprep.subr.mxu0 0.0
      %2247 = vmatpush1.xpose.msra.mxu0 %v2244
      %2248 = vmatprep.subr.mxu0 0.0
      %2249 = vmatpush1.xpose.msra.mxu0 0.0
      %2250 = vmatprep.subr.mxu0 0.0
      %2251 = vmatpush1.xpose.msra.mxu0 0.0
      %2252 = vmatprep.subr.mxu0 0.0
      %2253 = vmatpush1.xpose.msra.mxu0 0.0
      %2254 = vmatprep.subr.mxu0 0.0
      %2255 = vmatpush1.xpose.msra.mxu0 0.0
      %2256 = vmatprep.subr.mxu0 0.0
      %2257 = vmatpush1.xpose.msra.mxu0 0.0
      %2258 = vmatprep.subr.mxu0 0.0
      %2259 = vmatpush1.xpose.msra.mxu0 0.0
      %2260 = vmatprep.subr.mxu0 0.0
      %2261 = vmatpush1.xpose.msra.mxu0 0.0
      %2262 = vmatprep.subr.mxu0 0.0
      %2263 = vmatpush1.xpose.msra.mxu0 0.0
      %2264 = vmatprep.subr.mxu0 0.0
      %2265 = vmatpush1.xpose.msra.mxu0 0.0
      %2266 = vmatprep.subr.mxu0 0.0
      %2267 = vmatpush1.xpose.msra.mxu0 0.0
      %2268 = vmatprep.subr.mxu0 0.0
      %2269 = vmatpush1.xpose.msra.mxu0 0.0
      %2270 = vmatprep.subr.mxu0 0.0
      %2271 = vmatpush1.xpose.msra.mxu0 0.0
      %2272 = vmatprep.subr.mxu0 0.0
      %2273 = vmatpush1.xpose.msra.mxu0 0.0
      %2274 = vmatprep.subr.mxu0 0.0
      %2275 = vmatpush1.xpose.msra.mxu0 0.0
      %2276 = vmatprep.subr.mxu0 0.0
      %2277 = vmatpush1.xpose.msra.mxu0 0.0
      %2278 = vmatprep.subr.mxu0 0.0
      %2279 = vmatpush1.xpose.msra.mxu0 0.0
      %2280 = vmatprep.subr.mxu0 0.0
      %2281 = vmatpush1.xpose.msra.mxu0 0.0
      %2282 = vmatprep.subr.mxu0 0.0
      %2283 = vmatpush1.xpose.msra.mxu0 0.0
      %2284 = vmatprep.subr.mxu0 0.0
      %2285 = vmatpush1.xpose.msra.mxu0 0.0
      %2286 = vmatprep.subr.mxu0 0.0
      %2287 = vmatpush1.xpose.msra.mxu0 0.0
      %2288 = vmatprep.subr.mxu0 0.0
      %2289 = vmatpush1.xpose.msra.mxu0 0.0
      %2290 = vmatprep.subr.mxu0 0.0
      %2291 = vmatpush1.xpose.msra.mxu0 0.0
      %2292 = vmatprep.subr.mxu0 0.0
      %2293 = vmatpush1.xpose.msra.mxu0 0.0
      %2294 = vmatprep.subr.mxu0 0.0
      %2295 = vmatpush1.xpose.msra.mxu0 0.0
      %2296 = vmatprep.subr.mxu0 0.0
      %2297 = vmatpush1.xpose.msra.mxu0 0.0
      %2298 = vmatprep.subr.mxu0 0.0
      %2299 = vmatpush1.xpose.msra.mxu0 0.0
      %2300 = vmatprep.subr.mxu0 0.0
      %2301 = vmatpush1.xpose.msra.mxu0 0.0
      %2302 = vmatprep.subr.mxu0 0.0
      %2303 = vmatpush1.xpose.msra.mxu0 0.0
      %2304 = vmatprep.subr.mxu0 0.0
      %2305 = vmatpush1.xpose.msra.mxu0 0.0
      %2306 = vmatprep.subr.mxu0 0.0
      %2307 = vmatpush1.xpose.msra.mxu0 0.0
      %2308 = vmatprep.subr.mxu0 0.0
      %2309 = vmatpush1.xpose.msra.mxu0 0.0
      %2310 = vmatprep.mubr.f32.mxu0 0.0
      %2311 = vmatmul.mubr.f32.gmra.mrb[0].mxu0 %v2242
      %v2312 = vpop.f32.mrb[0].mxu0
      %v2313 = vadd.f32 0.0, %v2312
      %v2314 = vpop.f32.mrb[0].mxu0
      %2315 = vdwg.mxu0
      %v2316 = vmul.f32 %v2313, 0.35355338
      %v2317 = vadd.f32 %v2316, %v1814
      %v2318 = vsel %vm772, %v2317, -inf
      %2319 = vmax.xlane.f32.xlu0 %v2318
      %v2320 = vpop.xlane.xlu0 %2319
      %v2321 = vsub.f32 %v2317, %v2320
      %v2322 = vmul.f32 %v2321, 1.442695
      %v2323 = vpow.pop %v2322
      %v2324 = vsel %vm772, %v2323, 0.0
      %2325 = vadd.xlane.f32.xlu0 %v2324
      %v2326 = vpop.xlane.xlu0 %2325
      %v2327 = vrcp.pop %v2326
      %v2328 = vmul.f32 %v2323, %v2327
      %2329 = vrot.lane.b32.xlu0 %v1730, 72
      %v2330 = vpop.permute.xlu0 %2329
      %v2333 = vsel %vm772, %v2328, 0
      %2335 = vmatprep.subr.mxu0 0.0
      %2336 = vmatpush1.msra.mxu0 %v2330
      %2337 = vmatprep.subr.mxu0 0.0
      %2338 = vmatpush1.msra.mxu0 0.0
      %2339 = vmatprep.subr.mxu0 0.0
      %2340 = vmatpush1.msra.mxu0 0.0
      %2341 = vmatprep.subr.mxu0 0.0
      %2342 = vmatpush1.msra.mxu0 0.0
      %2343 = vmatprep.subr.mxu0 0.0
      %2344 = vmatpush1.msra.mxu0 0.0
      %2345 = vmatprep.subr.mxu0 0.0
      %2346 = vmatpush1.msra.mxu0 0.0
      %2347 = vmatprep.subr.mxu0 0.0
      %2348 = vmatpush1.msra.mxu0 0.0
      %2349 = vmatprep.subr.mxu0 0.0
      %2350 = vmatpush1.msra.mxu0 0.0
      %2351 = vmatprep.subr.mxu0 0.0
      %2352 = vmatpush1.msra.mxu0 0.0
      %2353 = vmatprep.subr.mxu0 0.0
      %2354 = vmatpush1.msra.mxu0 0.0
      %2355 = vmatprep.subr.mxu0 0.0
      %2356 = vmatpush1.msra.mxu0 0.0
      %2357 = vmatprep.subr.mxu0 0.0
      %2358 = vmatpush1.msra.mxu0 0.0
      %2359 = vmatprep.subr.mxu0 0.0
      %2360 = vmatpush1.msra.mxu0 0.0
      %2361 = vmatprep.subr.mxu0 0.0
      %2362 = vmatpush1.msra.mxu0 0.0
      %2363 = vmatprep.subr.mxu0 0.0
      %2364 = vmatpush1.msra.mxu0 0.0
      %2365 = vmatprep.subr.mxu0 0.0
      %2366 = vmatpush1.msra.mxu0 0.0
      %2367 = vmatprep.subr.mxu0 0.0
      %2368 = vmatpush1.msra.mxu0 0.0
      %2369 = vmatprep.subr.mxu0 0.0
      %2370 = vmatpush1.msra.mxu0 0.0
      %2371 = vmatprep.subr.mxu0 0.0
      %2372 = vmatpush1.msra.mxu0 0.0
      %2373 = vmatprep.subr.mxu0 0.0
      %2374 = vmatpush1.msra.mxu0 0.0
      %2375 = vmatprep.subr.mxu0 0.0
      %2376 = vmatpush1.msra.mxu0 0.0
      %2377 = vmatprep.subr.mxu0 0.0
      %2378 = vmatpush1.msra.mxu0 0.0
      %2379 = vmatprep.subr.mxu0 0.0
      %2380 = vmatpush1.msra.mxu0 0.0
      %2381 = vmatprep.subr.mxu0 0.0
      %2382 = vmatpush1.msra.mxu0 0.0
      %2383 = vmatprep.subr.mxu0 0.0
      %2384 = vmatpush1.msra.mxu0 0.0
      %2385 = vmatprep.subr.mxu0 0.0
      %2386 = vmatpush1.msra.mxu0 0.0
      %2387 = vmatprep.subr.mxu0 0.0
      %2388 = vmatpush1.msra.mxu0 0.0
      %2389 = vmatprep.subr.mxu0 0.0
      %2390 = vmatpush1.msra.mxu0 0.0
      %2391 = vmatprep.subr.mxu0 0.0
      %2392 = vmatpush1.msra.mxu0 0.0
      %2393 = vmatprep.subr.mxu0 0.0
      %2394 = vmatpush1.msra.mxu0 0.0
      %2395 = vmatprep.subr.mxu0 0.0
      %2396 = vmatpush1.msra.mxu0 0.0
      %2397 = vmatprep.subr.mxu0 0.0
      %2398 = vmatpush1.msra.mxu0 0.0
      %2399 = vmatprep.mubr.f32.mxu0 0.0
      %2400 = vmatmul.mubr.f32.gmra.mrb[0].mxu0 %v2333
      %v2401 = vpop.f32.mrb[0].mxu0
      %v2402 = vadd.f32 0.0, %v2401
      %v2403 = vpop.f32.mrb[0].mxu0
      %2404 = vdwg.mxu0
      %2406 = vrot.lane.b32.xlu0 %v2068, 8
      %v2407 = vpop.permute.xlu0 %2406
      %2410 = vrot.lane.b32.xlu0 %v2235, 16
      %v2411 = vpop.permute.xlu0 %2410
      %2414 = vrot.lane.b32.xlu0 %v2402, 24
      %v2415 = vpop.permute.xlu0 %2414
      %v2417 = vsel %vm772, %v1901, %v2407
      %v2418 = vsel %vm1450, %v2417, %v2411
      %v2419 = vsel %vm1452, %v2418, %v2415
      %v2420 = vld [vmem:[%s13] sm:$0xff]
      %v2421 = vld [vmem:[%s13 + $0x8] sm:$0xff]
      %v2422 = vld [vmem:[%s13 + $0x10] sm:$0xff]
      %v2423 = vld [vmem:[%s13 + $0x18] sm:$0xff]
      %v2424 = vld [vmem:[%s14] sm:$0x1]
      %v2426 = vlaneseq
      %v2427 = vshrl.u32 %v2426, 7
      %v2428 = vsub.s32 0, %v2427
      %v2429 = vrot.slane %v2424, %v2428
      %v2432 = vsel %vm695, %v2419, 0
      %2434 = vmatprep.subr.mxu0 0.0
      %2435 = vmatpush1.msra.mxu0 %v2420
      %2436 = vmatprep.subr.mxu0 0.0
      %2437 = vmatpush1.msra.mxu0 %v2421
      %2438 = vmatprep.subr.mxu0 0.0
      %2439 = vmatpush1.msra.mxu0 %v2422
      %2440 = vmatprep.subr.mxu0 0.0
      %2441 = vmatpush1.msra.mxu0 %v2423
      %2442 = vmatprep.subr.mxu0 0.0
      %2443 = vmatpush1.msra.mxu0 0.0
      %2444 = vmatprep.subr.mxu0 0.0
      %2445 = vmatpush1.msra.mxu0 0.0
      %2446 = vmatprep.subr.mxu0 0.0
      %2447 = vmatpush1.msra.mxu0 0.0
      %2448 = vmatprep.subr.mxu0 0.0
      %2449 = vmatpush1.msra.mxu0 0.0
      %2450 = vmatprep.subr.mxu0 0.0
      %2451 = vmatpush1.msra.mxu0 0.0
      %2452 = vmatprep.subr.mxu0 0.0
      %2453 = vmatpush1.msra.mxu0 0.0
      %2454 = vmatprep.subr.mxu0 0.0
      %2455 = vmatpush1.msra.mxu0 0.0
      %2456 = vmatprep.subr.mxu0 0.0
      %2457 = vmatpush1.msra.mxu0 0.0
      %2458 = vmatprep.subr.mxu0 0.0
      %2459 = vmatpush1.msra.mxu0 0.0
      %2460 = vmatprep.subr.mxu0 0.0
      %2461 = vmatpush1.msra.mxu0 0.0
      %2462 = vmatprep.subr.mxu0 0.0
      %2463 = vmatpush1.msra.mxu0 0.0
      %2464 = vmatprep.subr.mxu0 0.0
      %2465 = vmatpush1.msra.mxu0 0.0
      %2466 = vmatprep.subr.mxu0 0.0
      %2467 = vmatpush1.msra.mxu0 0.0
      %2468 = vmatprep.subr.mxu0 0.0
      %2469 = vmatpush1.msra.mxu0 0.0
      %2470 = vmatprep.subr.mxu0 0.0
      %2471 = vmatpush1.msra.mxu0 0.0
      %2472 = vmatprep.subr.mxu0 0.0
      %2473 = vmatpush1.msra.mxu0 0.0
      %2474 = vmatprep.subr.mxu0 0.0
      %2475 = vmatpush1.msra.mxu0 0.0
      %2476 = vmatprep.subr.mxu0 0.0
      %2477 = vmatpush1.msra.mxu0 0.0
      %2478 = vmatprep.subr.mxu0 0.0
      %2479 = vmatpush1.msra.mxu0 0.0
      %2480 = vmatprep.subr.mxu0 0.0
      %2481 = vmatpush1.msra.mxu0 0.0
      %2482 = vmatprep.subr.mxu0 0.0
      %2483 = vmatpush1.msra.mxu0 0.0
      %2484 = vmatprep.subr.mxu0 0.0
      %2485 = vmatpush1.msra.mxu0 0.0
      %2486 = vmatprep.subr.mxu0 0.0
      %2487 = vmatpush1.msra.mxu0 0.0
      %2488 = vmatprep.subr.mxu0 0.0
      %2489 = vmatpush1.msra.mxu0 0.0
      %2490 = vmatprep.subr.mxu0 0.0
      %2491 = vmatpush1.msra.mxu0 0.0
      %2492 = vmatprep.subr.mxu0 0.0
      %2493 = vmatpush1.msra.mxu0 0.0
      %2494 = vmatprep.subr.mxu0 0.0
      %2495 = vmatpush1.msra.mxu0 0.0
      %2496 = vmatprep.subr.mxu0 0.0
      %2497 = vmatpush1.msra.mxu0 0.0
      %2498 = vmatprep.mubr.f32.mxu0 0.0
      %2499 = vmatmul.mubr.f32.gmra.mrb[0].mxu0 %v2432
      %v2500 = vpop.f32.mrb[0].mxu0
      %v2501 = vadd.f32 %v2429, %v2500
      %v2502 = vpop.f32.mrb[0].mxu0
      %2503 = vdwg.mxu0
      %v2504 = vadd.f32 %v1564, %v2501
      %v2505 = vld [vmem:[%s15 + $0x2] sm:$0x1]
      %v2506 = vld [vmem:[%s15 + $0x3] sm:$0x1]
      %v2507 = vsel %vm695, %v2504, 0.0
      %2508 = vadd.xlane.f32.xlu0 %v2507
      %v2509 = vpop.xlane.xlu0 %2508
      %v2510 = vmul.f32 %v2509, %v1544
      %v2511 = vsub.f32 %v2504, %v2510
      %v2512 = vmul.f32 %v2511, %v2511
      %v2513 = vsel %vm695, %v2512, 0.0
      %2514 = vadd.xlane.f32.xlu0 %v2513
      %v2515 = vpop.xlane.xlu0 %2514
      %v2516 = vmul.f32 %v2515, %v1544
      %v2517 = vadd.f32 %v2516, 1e-05
      %v2518 = vrsqrt.pop %v2517
      %v2519 = vmul.f32 %v2511, %v2518
      %v2520 = vlaneseq
      %v2521 = vshrl.u32 %v2520, 7
      %v2522 = vsub.s32 0, %v2521
      %v2523 = vrot.slane %v2505, %v2522
      %v2524 = vmul.f32 %v2519, %v2523
      %v2525 = vlaneseq
      %v2526 = vshrl.u32 %v2525, 7
      %v2527 = vsub.s32 0, %v2526
      %v2528 = vrot.slane %v2506, %v2527
      %v2529 = vadd.f32 %v2524, %v2528
      %v2530 = vld [vmem:[%s16] sm:$0xff]
      %v2531 = vld [vmem:[%s16 + $0x8] sm:$0xff]
      %v2532 = vld [vmem:[%s16 + $0x10] sm:$0xff]
      %v2533 = vld [vmem:[%s16 + $0x18] sm:$0xff]
      %v2534 = vld [vmem:[%s17] sm:$0x1]
      %v2536 = vlaneseq
      %v2537 = vshrl.u32 %v2536, 7
      %v2538 = vsub.s32 0, %v2537
      %v2539 = vrot.slane %v2534, %v2538
      %v2542 = vsel %vm695, %v2529, 0
      %2544 = vmatprep.subr.mxu0 0.0
      %2545 = vmatpush1.msra.mxu0 %v2530
      %2546 = vmatprep.subr.mxu0 0.0
      %2547 = vmatpush1.msra.mxu0 %v2531
      %2548 = vmatprep.subr.mxu0 0.0
      %2549 = vmatpush1.msra.mxu0 %v2532
      %2550 = vmatprep.subr.mxu0 0.0
      %2551 = vmatpush1.msra.mxu0 %v2533
      %2552 = vmatprep.subr.mxu0 0.0
      %2553 = vmatpush1.msra.mxu0 0.0
      %2554 = vmatprep.subr.mxu0 0.0
      %2555 = vmatpush1.msra.mxu0 0.0
      %2556 = vmatprep.subr.mxu0 0.0
      %2557 = vmatpush1.msra.mxu0 0.0
      %2558 = vmatprep.subr.mxu0 0.0
      %2559 = vmatpush1.msra.mxu0 0.0
      %2560 = vmatprep.subr.mxu0 0.0
      %2561 = vmatpush1.msra.mxu0 0.0
      %2562 = vmatprep.subr.mxu0 0.0
      %2563 = vmatpush1.msra.mxu0 0.0
      %2564 = vmatprep.subr.mxu0 0.0
      %2565 = vmatpush1.msra.mxu0 0.0
      %2566 = vmatprep.subr.mxu0 0.0
      %2567 = vmatpush1.msra.mxu0 0.0
      %2568 = vmatprep.subr.mxu0 0.0
      %2569 = vmatpush1.msra.mxu0 0.0
      %2570 = vmatprep.subr.mxu0 0.0
      %2571 = vmatpush1.msra.mxu0 0.0
      %2572 = vmatprep.subr.mxu0 0.0
      %2573 = vmatpush1.msra.mxu0 0.0
      %2574 = vmatprep.subr.mxu0 0.0
      %2575 = vmatpush1.msra.mxu0 0.0
      %2576 = vmatprep.subr.mxu0 0.0
      %2577 = vmatpush1.msra.mxu0 0.0
      %2578 = vmatprep.subr.mxu0 0.0
      %2579 = vmatpush1.msra.mxu0 0.0
      %2580 = vmatprep.subr.mxu0 0.0
      %2581 = vmatpush1.msra.mxu0 0.0
      %2582 = vmatprep.subr.mxu0 0.0
      %2583 = vmatpush1.msra.mxu0 0.0
      %2584 = vmatprep.subr.mxu0 0.0
      %2585 = vmatpush1.msra.mxu0 0.0
      %2586 = vmatprep.subr.mxu0 0.0
      %2587 = vmatpush1.msra.mxu0 0.0
      %2588 = vmatprep.subr.mxu0 0.0
      %2589 = vmatpush1.msra.mxu0 0.0
      %2590 = vmatprep.subr.mxu0 0.0
      %2591 = vmatpush1.msra.mxu0 0.0
      %2592 = vmatprep.subr.mxu0 0.0
      %2593 = vmatpush1.msra.mxu0 0.0
      %2594 = vmatprep.subr.mxu0 0.0
      %2595 = vmatpush1.msra.mxu0 0.0
      %2596 = vmatprep.subr.mxu0 0.0
      %2597 = vmatpush1.msra.mxu0 0.0
      %2598 = vmatprep.subr.mxu0 0.0
      %2599 = vmatpush1.msra.mxu0 0.0
      %2600 = vmatprep.subr.mxu0 0.0
      %2601 = vmatpush1.msra.mxu0 0.0
      %2602 = vmatprep.subr.mxu0 0.0
      %2603 = vmatpush1.msra.mxu0 0.0
      %2604 = vmatprep.subr.mxu0 0.0
      %2605 = vmatpush1.msra.mxu0 0.0
      %2606 = vmatprep.subr.mxu0 0.0
      %2607 = vmatpush1.msra.mxu0 0.0
      %2608 = vmatprep.mubr.f32.mxu0 0.0
      %2609 = vmatmul.mubr.f32.gmra.mrb[0].mxu0 %v2542
      %v2610 = vpop.f32.mrb[0].mxu0
      %v2611 = vadd.f32 %v2539, %v2610
      %v2612 = vpop.f32.mrb[0].mxu0
      %2613 = vdwg.mxu0
      %v2614 = vmax.f32 %v2611, 0.0
      %v2615 = vld [vmem:[%s18] sm:$0xff]
      %v2616 = vld [vmem:[%s18 + $0x8] sm:$0xff]
      %v2617 = vld [vmem:[%s18 + $0x10] sm:$0xff]
      %v2618 = vld [vmem:[%s18 + $0x18] sm:$0xff]
      %v2619 = vld [vmem:[%s18 + $0x20] sm:$0xff]
      %v2620 = vld [vmem:[%s18 + $0x28] sm:$0xff]
      %v2621 = vld [vmem:[%s18 + $0x30] sm:$0xff]
      %v2622 = vld [vmem:[%s18 + $0x38] sm:$0xff]
      %v2623 = vld [vmem:[%s18 + $0x40] sm:$0xff]
      %v2624 = vld [vmem:[%s18 + $0x48] sm:$0xff]
      %v2625 = vld [vmem:[%s18 + $0x50] sm:$0xff]
      %v2626 = vld [vmem:[%s18 + $0x58] sm:$0xff]
      %v2627 = vld [vmem:[%s18 + $0x60] sm:$0xff]
      %v2628 = vld [vmem:[%s18 + $0x68] sm:$0xff]
      %v2629 = vld [vmem:[%s18 + $0x70] sm:$0xff]
      %v2630 = vld [vmem:[%s18 + $0x78] sm:$0xff]
      %v2631 = vld [vmem:[%s19] sm:$0x1]
      %v2633 = vlaneseq
      %v2634 = vshrl.u32 %v2633, 7
      %v2635 = vsub.s32 0, %v2634
      %v2636 = vrot.slane %v2631, %v2635
      %2638 = vmatprep.subr.mxu0 0.0
      %2639 = vmatpush1.msra.mxu0 %v2615
      %2640 = vmatprep.subr.mxu0 0.0
      %2641 = vmatpush1.msra.mxu0 %v2616
      %2642 = vmatprep.subr.mxu0 0.0
      %2643 = vmatpush1.msra.mxu0 %v2617
      %2644 = vmatprep.subr.mxu0 0.0
      %2645 = vmatpush1.msra.mxu0 %v2618
      %2646 = vmatprep.subr.mxu0 0.0
      %2647 = vmatpush1.msra.mxu0 %v2619
      %2648 = vmatprep.subr.mxu0 0.0
      %2649 = vmatpush1.msra.mxu0 %v2620
      %2650 = vmatprep.subr.mxu0 0.0
      %2651 = vmatpush1.msra.mxu0 %v2621
      %2652 = vmatprep.subr.mxu0 0.0
      %2653 = vmatpush1.msra.mxu0 %v2622
      %2654 = vmatprep.subr.mxu0 0.0
      %2655 = vmatpush1.msra.mxu0 %v2623
      %2656 = vmatprep.subr.mxu0 0.0
      %2657 = vmatpush1.msra.mxu0 %v2624
      %2658 = vmatprep.subr.mxu0 0.0
      %2659 = vmatpush1.msra.mxu0 %v2625
      %2660 = vmatprep.subr.mxu0 0.0
      %2661 = vmatpush1.msra.mxu0 %v2626
      %2662 = vmatprep.subr.mxu0 0.0
      %2663 = vmatpush1.msra.mxu0 %v2627
      %2664 = vmatprep.subr.mxu0 0.0
      %2665 = vmatpush1.msra.mxu0 %v2628
      %2666 = vmatprep.subr.mxu0 0.0
      %2667 = vmatpush1.msra.mxu0 %v2629
      %2668 = vmatprep.subr.mxu0 0.0
      %2669 = vmatpush1.msra.mxu0 %v2630
      %2670 = vmatprep.subr.mxu0 0.0
      %2671 = vmatpush1.msra.mxu0 0.0
      %2672 = vmatprep.subr.mxu0 0.0
      %2673 = vmatpush1.msra.mxu0 0.0
      %2674 = vmatprep.subr.mxu0 0.0
      %2675 = vmatpush1.msra.mxu0 0.0
      %2676 = vmatprep.subr.mxu0 0.0
      %2677 = vmatpush1.msra.mxu0 0.0
      %2678 = vmatprep.subr.mxu0 0.0
      %2679 = vmatpush1.msra.mxu0 0.0
      %2680 = vmatprep.subr.mxu0 0.0
      %2681 = vmatpush1.msra.mxu0 0.0
      %2682 = vmatprep.subr.mxu0 0.0
      %2683 = vmatpush1.msra.mxu0 0.0
      %2684 = vmatprep.subr.mxu0 0.0
      %2685 = vmatpush1.msra.mxu0 0.0
      %2686 = vmatprep.subr.mxu0 0.0
      %2687 = vmatpush1.msra.mxu0 0.0
      %2688 = vmatprep.subr.mxu0 0.0
      %2689 = vmatpush1.msra.mxu0 0.0
      %2690 = vmatprep.subr.mxu0 0.0
      %2691 = vmatpush1.msra.mxu0 0.0
      %2692 = vmatprep.subr.mxu0 0.0
      %2693 = vmatpush1.msra.mxu0 0.0
      %2694 = vmatprep.subr.mxu0 0.0
      %2695 = vmatpush1.msra.mxu0 0.0
      %2696 = vmatprep.subr.mxu0 0.0
      %2697 = vmatpush1.msra.mxu0 0.0
      %2698 = vmatprep.subr.mxu0 0.0
      %2699 = vmatpush1.msra.mxu0 0.0
      %2700 = vmatprep.subr.mxu0 0.0
      %2701 = vmatpush1.msra.mxu0 0.0
      %2702 = vmatprep.mubr.f32.mxu0 0.0
      %2703 = vmatmul.mubr.f32.gmra.mrb[0].mxu0 %v2614
      %v2704 = vpop.f32.mrb[0].mxu0
      %v2705 = vadd.f32 %v2636, %v2704
      %v2706 = vpop.f32.mrb[0].mxu0
      %2707 = vdwg.mxu0
      %v2708 = vadd.f32 %v2529, %v2705
      %v2709 = vld [vmem:[%s15 + $0x4] sm:$0x1]
      %v2710 = vld [vmem:[%s15 + $0x5] sm:$0x1]
      %v2711 = vsel %vm695, %v2708, 0.0
      %2712 = vadd.xlane.f32.xlu0 %v2711
      %v2713 = vpop.xlane.xlu0 %2712
      %v2714 = vmul.f32 %v2713, %v1544
      %v2715 = vsub.f32 %v2708, %v2714
      %v2716 = vmul.f32 %v2715, %v2715
      %v2717 = vsel %vm695, %v2716, 0.0
      %2718 = vadd.xlane.f32.xlu0 %v2717
      %v2719 = vpop.xlane.xlu0 %2718
      %v2720 = vmul.f32 %v2719, %v1544
      %v2721 = vadd.f32 %v2720, 1e-05
      %v2722 = vrsqrt.pop %v2721
      %v2723 = vmul.f32 %v2715, %v2722
      %v2724 = vlaneseq
      %v2725 = vshrl.u32 %v2724, 7
      %v2726 = vsub.s32 0, %v2725
      %v2727 = vrot.slane %v2709, %v2726
      %v2728 = vmul.f32 %v2723, %v2727
      %v2729 = vlaneseq
      %v2730 = vshrl.u32 %v2729, 7
      %v2731 = vsub.s32 0, %v2730
      %v2732 = vrot.slane %v2710, %v2731
      %v2733 = vadd.f32 %v2728, %v2732
      %2734 = vst.msk [vmem:[%s669] sm:$0xff] %vm695, %v2733
      %p2735 = scmp.lt.s32.totalorder %s31, 1
      %s2736 = scalar_select %p2735, %s31, 1
      %s2737 = smul.addr %s2736, 8
      %s2738 = scalar_lea.vmem %s20, %s2737
      // Predicated region
      $region101: #{trajectory_decoder_forward.3} parent=99 // pred_check
        %p2739 = pneg %p489
      $region102: #{trajectory_decoder_forward.3} parent=99 // pred_check_branch
        %2741 = sbr.rel (%p2739) target = $region104
      $region103: #{trajectory_decoder_forward.3} parent=99 // pred_region
        _
      $region104: #{trajectory_decoder_forward.3} parent=99 // pred_fallthru
        _
    $region100: #{trajectory_decoder_forward.3} parent=5 // pred_fallthru
      _
    %p2742 = scmp.le.s32.totalorder 2, %s26
    // Predicated region
    $region105: #{trajectory_decoder_forward.3} parent=5 // pred_check
      %p2743 = pneg %p2742
    $region106: #{trajectory_decoder_forward.3} parent=5 // pred_check_branch
      %2745 = sbr.rel (%p2743) target = $region108
    $region107: #{trajectory_decoder_forward.3} parent=5 // pred_region
      %s2746 = ssub.s32 %s26, 2
      // Predicated region
      $region109: #{trajectory_decoder_forward.3} parent=107 // pred_check
        %p2747 = pneg %p495
      $region110: #{trajectory_decoder_forward.3} parent=107 // pred_check_branch
        %2749 = sbr.rel (%p2747) target = $region112
      $region111: #{trajectory_decoder_forward.3} parent=107 // pred_region
        %p2750 = scmp.lt.s32.totalorder %s32, 1
        %s2751 = scalar_select %p2750, %s32, 1
        %s2752 = smul.addr %s2751, 8
        %s2753 = scalar_lea.vmem %s20, %s2752
      $region112: #{trajectory_decoder_forward.3} parent=107 // pred_fallthru
        _
    $region108: #{trajectory_decoder_forward.3} parent=5 // pred_fallthru
      _
  $region6: #{trajectory_decoder_forward.3} parent=0 // loop_footer
    %s30 = sadd.s32 1, %s26
  $region7: #{trajectory_decoder_forward.3} parent=0 // loop_footer_branch
    %25 = sbr.rel target = $region3
  $region8: #{trajectory_decoder_forward.3} parent=0 // loop_exit
    _

</llo_original>
